<compile_context>
chip_gen: v5e
topology: v5e:2x2
jax: 0.10.0
libtpu: 0.0.40
codegen_flags: <defaults>
</compile_context>

<pallas_src>
import functools
import math

import numpy as np
import jax
import jax.numpy as jnp
from jax import lax
from jax.experimental import pallas as pl
from jax.experimental.pallas import tpu as pltpu


# ----------------------------- hardware budget -------------------------------


@functools.lru_cache(maxsize=None)
def _vmem_capacity_bytes():
    """Physical VMEM per TensorCore; conservative (v7x, 64 MiB) fallback."""
    try:
        return int(pltpu.get_tpu_info().vmem_capacity_bytes)
    except Exception:
        return 64 * 1024 * 1024


# ----------------------------- tiled linear ----------------------------------


def _linear_kernel(x_ref, w_ref, b_ref, *rest, activation, add_residual):
    """acc += x @ w (bf16 MXU, f32 acc); last K step: +bias [relu] [+res] -> out."""
    if add_residual:
        res_ref, o_ref, acc_ref = rest
    else:
        o_ref, acc_ref = rest

    k = pl.program_id(2)

    @pl.when(k == 0)
    def _():
        acc_ref[...] = jnp.zeros_like(acc_ref)

    acc_ref[...] += jnp.dot(
        x_ref[...].astype(jnp.bfloat16),
        w_ref[...].astype(jnp.bfloat16),
        preferred_element_type=jnp.float32,
    )

    @pl.when(k == pl.num_programs(2) - 1)
    def _():
        y = acc_ref[...] + b_ref[...].astype(jnp.float32)   # (1, tn) broadcasts
        if activation == "relu":
            y = jnp.maximum(y, 0.0)
        if add_residual:
            y = y + res_ref[...].astype(jnp.float32)
        o_ref[...] = y.astype(o_ref.dtype)


def _pick_tile(dim, target, aligns):
    """Return (tile, padded_dim): largest aligned divisor <= target, else pad."""
    if dim <= target:
        return dim, dim
    for a in aligns:
        t = (target // a) * a
        while t >= a:
            if dim % t == 0:
                return t, dim
            t -= a
    a = aligns[-1]
    t = max((target // a) * a, a)
    return t, ((dim + t - 1) // t) * t


def _pad2(a, rows, cols):
    dr, dc = rows - a.shape[0], cols - a.shape[1]
    if dr == 0 and dc == 0:
        return a
    return jnp.pad(a, ((0, dr), (0, dc)))


def linear(x2d, w, b, residual=None, activation=None, out_dtype=None,
           tm=512, tn=512, tk=1024):
    """y = x @ w + b [-> relu] [-> + residual], (M, N, K)-tiled, bf16 MXU."""
    M, K = x2d.shape
    N = w.shape[1]
    out_dtype = np.dtype(out_dtype if out_dtype is not None else x2d.dtype)

    xi, wi, oi = x2d.dtype.itemsize, w.dtype.itemsize, out_dtype.itemsize
    ri = residual.dtype.itemsize if residual is not None else 0

    def footprint(m, n, kk):         # double-buffered tiles + f32 accumulator
        f = 2 * (m * kk * xi + kk * n * wi + m * n * oi) + m * n * 4 + 2 * n * 4
        if residual is not None:
            f += 2 * m * n * ri
        return f

    cap = _vmem_capacity_bytes()
    budget = int(cap * 0.40)
    while footprint(min(M, tm), min(N, tn), min(K, tk)) > budget:
        if tk > 512:
            tk //= 2
        elif tn > 256:
            tn //= 2
        elif tm > 128:
            tm //= 2
        else:
            break

    tm, Mp = _pick_tile(M, tm, (8,))
    tn, Np = _pick_tile(N, tn, (256, 128))
    tk, Kp = _pick_tile(K, tk, (256, 128))

    # v7x has 2 TensorCores: ensure >= 2 parallel (i, j) blocks when possible.
    if (Mp // tm) * (Np // tn) < 2 and tm > 8:
        half = (tm // 2) // 8 * 8
        if half >= 8 and Mp % half == 0:
            tm = half

    grid = (Mp // tm, Np // tn, Kp // tk)

    xp = _pad2(x2d, Mp, Kp)
    wp = _pad2(w, Kp, Np)
    bp = _pad2(b, 1, Np)

    in_specs = [
        pl.BlockSpec((tm, tk), lambda i, j, k: (i, k)),
        pl.BlockSpec((tk, tn), lambda i, j, k: (k, j)),
        pl.BlockSpec((1, tn), lambda i, j, k: (0, j)),
    ]
    args = [xp, wp, bp]
    if residual is not None:
        in_specs.append(pl.BlockSpec((tm, tn), lambda i, j, k: (i, j)))
        args.append(_pad2(residual, Mp, Np))

    kernel = functools.partial(
        _linear_kernel, activation=activation, add_residual=residual is not None
    )
    out = pl.pallas_call(
        kernel,
        out_shape=jax.ShapeDtypeStruct((Mp, Np), out_dtype),
        grid_spec=pltpu.PrefetchScalarGridSpec(
            num_scalar_prefetch=0,
            grid=grid,
            in_specs=in_specs,
            out_specs=pl.BlockSpec((tm, tn), lambda i, j, k: (i, j)),
            scratch_shapes=[pltpu.VMEM((tm, tn), jnp.float32)],
        ),
        compiler_params=pltpu.CompilerParams(
            dimension_semantics=("parallel", "parallel", "arbitrary"),
            vmem_limit_bytes=min(int(cap * 0.85), 112 * 1024 * 1024),
        ),
    )(*args)
    if Mp != M or Np != N:
        out = out[:M, :N]
    return out


# ----------------------------- flash attention -------------------------------


def _flash_kernel(bias_ref, q_ref, k_ref, v_ref, o_ref, m_sc, l_sc, acc_sc, *,
                  scale):
    ki = pl.program_id(2)

    @pl.when(ki == 0)
    def _():
        m_sc[...] = jnp.full_like(m_sc, -jnp.inf)
        l_sc[...] = jnp.zeros_like(l_sc)
        acc_sc[...] = jnp.zeros_like(acc_sc)

    q = q_ref[0].astype(jnp.bfloat16)                 # (tq, Dh)
    k = k_ref[0].astype(jnp.bfloat16)                 # (tkv, Dh)
    v = v_ref[0].astype(jnp.bfloat16)                 # (tkv, Dh)

    s = lax.dot_general(                              # q @ k^T with f32 acc
        q, k, dimension_numbers=(((1,), (1,)), ((), ())),
        preferred_element_type=jnp.float32,
    ) * scale
    s = s + bias_ref[0]                               # additive mask bias (f32)

    m_prev = m_sc[...]
    m_new = jnp.maximum(m_prev, jnp.max(s, axis=-1, keepdims=True))
    alpha = jnp.exp(m_prev - m_new)
    p = jnp.exp(s - m_new)
    l_sc[...] = alpha * l_sc[...] + jnp.sum(p, axis=-1, keepdims=True)
    acc_sc[...] = alpha * acc_sc[...] + jnp.dot(
        p.astype(jnp.bfloat16), v, preferred_element_type=jnp.float32)
    m_sc[...] = m_new

    @pl.when(ki == pl.num_programs(2) - 1)
    def _():
        # approx reciprocal runs on the otherwise-idle EUP; not bit-exact vs torch.
        o_ref[0] = (acc_sc[...] * pl.reciprocal(l_sc[...], approx=True)
                    ).astype(o_ref.dtype)


def _seq_tile(dim, target, align):
    if dim <= target:
        return dim
    t = (target // align) * align
    while t >= align:
        if dim % t == 0:
            return t
        t -= align
    # TODO(synk): pad ragged sequence lengths instead of a whole-dim fallback.
    return dim


def flash_mha(q, k, v, bias, heads, out_dtype=None):
    """q: (B*H, Sq, Dh), k/v: (B*H, Skv, Dh), bias: (1 or B, Sq, Skv) additive."""
    BH, Sq, Dh = q.shape
    Skv = k.shape[1]
    out_dtype = out_dtype if out_dtype is not None else q.dtype
    scale = 1.0 / math.sqrt(Dh)

    tq = _seq_tile(Sq, 256, 8)
    tkv = _seq_tile(Skv, 512, 128)
    grid = (BH, Sq // tq, Skv // tkv)

    if bias.shape[0] == 1:
        bias_map = lambda bh, qi, ki: (0, qi, ki)
    else:
        bias_map = lambda bh, qi, ki: (bh // heads, qi, ki)

    kernel = functools.partial(_flash_kernel, scale=scale)
    return pl.pallas_call(
        kernel,
        out_shape=jax.ShapeDtypeStruct((BH, Sq, Dh), out_dtype),
        grid_spec=pltpu.PrefetchScalarGridSpec(
            num_scalar_prefetch=0,
            grid=grid,
            in_specs=[
                pl.BlockSpec((1, tq, tkv), bias_map),
                pl.BlockSpec((1, tq, Dh), lambda bh, qi, ki: (bh, qi, 0)),
                pl.BlockSpec((1, tkv, Dh), lambda bh, qi, ki: (bh, ki, 0)),
                pl.BlockSpec((1, tkv, Dh), lambda bh, qi, ki: (bh, ki, 0)),
            ],
            out_specs=pl.BlockSpec((1, tq, Dh), lambda bh, qi, ki: (bh, qi, 0)),
            scratch_shapes=[
                pltpu.VMEM((tq, 1), jnp.float32),
                pltpu.VMEM((tq, 1), jnp.float32),
                pltpu.VMEM((tq, Dh), jnp.float32),
            ],
        ),
        compiler_params=pltpu.CompilerParams(
            dimension_semantics=("parallel", "parallel", "arbitrary"),
        ),
    )(bias, q, k, v)


# ----------------------------- layout helpers --------------------------------


def _split_heads(y2d, B, S, H, Dh, n):
    """(B*S, n*H*Dh) fused projection -> n head-major arrays of (B*H, S, Dh)."""
    y = y2d.reshape(B, S, n, H, Dh)
    y = jnp.transpose(y, (2, 0, 3, 1, 4)).reshape(n, B * H, S, Dh)
    return tuple(y[i] for i in range(n))


def _merge_heads(o, B, S, H, Dh):
    """(B*H, S, Dh) -> (B*S, H*Dh)."""
    o = o.reshape(B, H, S, Dh)
    return jnp.transpose(o, (0, 2, 1, 3)).reshape(B * S, H * Dh)


def _mask_to_bias(mask):
    """0/1 mask -> additive bias (1 or B, Sq, Skv) f32. Per-head masks collapse."""
    m = jnp.asarray(mask)
    if m.ndim == 4:
        m = m[:, 0]
    elif m.ndim == 2:
        m = m[None]
    return jnp.where(m > 0, 0.0, -1e9).astype(jnp.float32)


# ----------------------------- model wrapper ---------------------------------


def decoder_forward(params, x, KV, mask1, mask2, head_num):
    B, S, E = x.shape
    Skv = KV.shape[1]
    Dh = E // head_num
    bias1 = _mask_to_bias(mask1)
    bias2 = _mask_to_bias(mask2)

    x2d = x.reshape(B * S, E)

    # --- masked self-attention (residual fused into output projection) ---
    p = params["mask_attn"]
    qkv = linear(x2d, p["wqkv"], p["bqkv"], out_dtype=jnp.bfloat16)
    q1, k1, v1 = _split_heads(qkv, B, S, head_num, Dh, 3)
    o1 = flash_mha(q1, k1, v1, bias1, head_num)
    mask_attention = linear(_merge_heads(o1, B, S, head_num, Dh),
                            p["wo"], p["bo"], residual=x2d,
                            out_dtype=jnp.float32)

    # --- cross attention (residual fused into output projection) ---
    p = params["attn"]
    q2d = linear(mask_attention, p["wq"], p["bq"], out_dtype=jnp.bfloat16)
    kv2d = linear(KV.reshape(B * Skv, E), p["wkv"], p["bkv"],
                  out_dtype=jnp.bfloat16)
    (q2,) = _split_heads(q2d, B, S, head_num, Dh, 1)
    k2, v2 = _split_heads(kv2d, B, Skv, head_num, Dh, 2)
    o2 = flash_mha(q2, k2, v2, bias2, head_num)
    attention = linear(_merge_heads(o2, B, S, head_num, Dh),
                       p["wo"], p["bo"], residual=mask_attention,
                       out_dtype=jnp.float32)

    # --- position-wise FFN (residual fused into second linear) ---
    h = linear(attention, params["w1"], params["b1"], activation="relu",
               out_dtype=jnp.bfloat16)
    ret = linear(h, params["w2"], params["b2"], residual=attention,
                 out_dtype=jnp.float32)
    return ret.reshape(B, S, E)


# ----------------------------- init + main -----------------------------------


def _dense_init(key, fan_in, fan_out, w_dtype=jnp.bfloat16):
    kw, kb = jax.random.split(key)
    bound = 1.0 / math.sqrt(fan_in)
    w = jax.random.uniform(kw, (fan_in, fan_out), jnp.float32, -bound, bound)
    b = jax.random.uniform(kb, (1, fan_out), jnp.float32, -bound, bound)
    return w.astype(w_dtype), b


def init_self_attention_params(key, E):
    ks = jax.random.split(key, 4)
    wq, bq = _dense_init(ks[0], E, E)
    wk, bk = _dense_init(ks[1], E, E)
    wv, bv = _dense_init(ks[2], E, E)
    wo, bo = _dense_init(ks[3], E, E)
    return dict(
        wqkv=jnp.concatenate([wq, wk, wv], axis=1),
        bqkv=jnp.concatenate([bq, bk, bv], axis=1),
        wo=wo, bo=bo,
    )


def init_cross_attention_params(key, E):
    ks = jax.random.split(key, 4)
    wq, bq = _dense_init(ks[0], E, E)
    wk, bk = _dense_init(ks[1], E, E)
    wv, bv = _dense_init(ks[2], E, E)
    wo, bo = _dense_init(ks[3], E, E)
    return dict(
        wq=wq, bq=bq,
        wkv=jnp.concatenate([wk, wv], axis=1),
        bkv=jnp.concatenate([bk, bv], axis=1),
        wo=wo, bo=bo,
    )


def init_decoder_params(key, E):
    H = E * 4
    k1, k2, k3, k4 = jax.random.split(key, 4)
    w1, b1 = _dense_init(k3, E, H)
    w2, b2 = _dense_init(k4, H, E)
    return dict(
        mask_attn=init_self_attention_params(k1, E),
        attn=init_cross_attention_params(k2, E),
        w1=w1, b1=b1, w2=w2, b2=b2,
    )


if __name__ == "__main__":
    B, S, E, HEADS = 2, 8, 32, 4
    assert E % HEADS == 0

    key = jax.random.PRNGKey(0)
    k_params, k_x, k_kv = jax.random.split(key, 3)

    params = init_decoder_params(k_params, E)
    x = jax.random.normal(k_x, (B, S, E), jnp.float32)
    KV = jax.random.normal(k_kv, (B, S, E), jnp.float32)

    # mask1: causal (decoder self-attention); mask2: full visibility (cross-attn)
    mask1 = jnp.tril(jnp.ones((S, S), jnp.float32)).reshape(1, 1, S, S)
    mask2 = jnp.ones((1, 1, S, S), jnp.float32)

    fwd = jax.jit(functools.partial(decoder_forward, head_num=HEADS))
    out = fwd(params, x, KV, mask1, mask2)
    jax.block_until_ready(out)

    assert out.shape == (B, S, E) and out.dtype == jnp.float32
    assert bool(jnp.all(jnp.isfinite(out)))
    print("KERNEL_OK")
</pallas_src>

<mosaic_0001>
module attributes {stable_mosaic.version = 11 : i64} {
  func.func @_linear_kernel(%arg0: i32, %arg1: i32, %arg2: i32, %arg3: memref<8x32xbf16, #tpu.memory_space<vmem>>, %arg4: memref<32x32xbf16, #tpu.memory_space<vmem>>, %arg5: memref<1x32xf32, #tpu.memory_space<vmem>>, %arg6: memref<8x32xf32, #tpu.memory_space<vmem>>, %arg7: memref<8x32xf32, #tpu.memory_space<vmem>>, %arg8: memref<8x32xf32, #tpu.memory_space<vmem>>) attributes {dimension_semantics = [#tpu.dimension_semantics<parallel>, #tpu.dimension_semantics<parallel>, #tpu.dimension_semantics<arbitrary>], iteration_bounds = array<i64: 2, 1, 1>, scalar_prefetch = 0 : i64, scratch_operands = 1 : i64, tpu.core_type = #tpu.core_type<tc>, window_params = [{transform_indices = @transform_0, window_bounds = array<i64: 8, 32>}, {transform_indices = @transform_1, window_bounds = array<i64: 32, 32>}, {transform_indices = @transform_2, window_bounds = array<i64: 1, 32>}, {transform_indices = @transform_3, window_bounds = array<i64: 8, 32>}, {transform_indices = @transform_4, window_bounds = array<i64: 8, 32>}]} {
    %c0_i32 = arith.constant 0 : i32
    %0 = arith.cmpi eq, %arg2, %c0_i32 : i32
    %1 = arith.extui %0 : i1 to i32
    %c0_i32_0 = arith.constant 0 : i32
    %2 = arith.cmpi ne, %1, %c0_i32_0 : i32
    scf.if %2 {
      %cst_10 = arith.constant 0.000000e+00 : f32
      %12 = vector.broadcast %cst_10 : f32 to vector<8x32xf32>
      %c0_11 = arith.constant 0 : index
      %c0_12 = arith.constant 0 : index
      %13 = vector.load %arg8[%c0_11, %c0_12] : memref<8x32xf32, #tpu.memory_space<vmem>>, vector<8x32xf32>
      tpu.vector_store %arg8[%c0_11, %c0_12], %12 {strides = array<i32>} : memref<8x32xf32, #tpu.memory_space<vmem>>, vector<8x32xf32>,
    } else {
    }
    %c0 = arith.constant 0 : index
    %c0_1 = arith.constant 0 : index
    %3 = vector.load %arg8[%c0, %c0_1] : memref<8x32xf32, #tpu.memory_space<vmem>>, vector<8x32xf32>
    %c0_2 = arith.constant 0 : index
    %c0_3 = arith.constant 0 : index
    %4 = vector.load %arg3[%c0_2, %c0_3] : memref<8x32xbf16, #tpu.memory_space<vmem>>, vector<8x32xbf16>
    %c0_4 = arith.constant 0 : index
    %c0_5 = arith.constant 0 : index
    %5 = vector.load %arg4[%c0_4, %c0_5] : memref<32x32xbf16, #tpu.memory_space<vmem>>, vector<32x32xbf16>
    %cst = arith.constant dense<0.000000e+00> : vector<8x32xf32>
    %6 = tpu.matmul %4, %5, %cst {dimension_numbers = #tpu.dot_dimension_numbers<[1], [0], [0], [1], [0, 0, 1, 1], [], []>} : vector<8x32xbf16>, vector<32x32xbf16>, vector<8x32xf32> -> vector<8x32xf32>
    %7 = arith.addf %3, %6 : vector<8x32xf32>
    %c0_6 = arith.constant 0 : index
    %c0_7 = arith.constant 0 : index
    %8 = vector.load %arg8[%c0_6, %c0_7] : memref<8x32xf32, #tpu.memory_space<vmem>>, vector<8x32xf32>
    tpu.vector_store %arg8[%c0_6, %c0_7], %7 {strides = array<i32>} : memref<8x32xf32, #tpu.memory_space<vmem>>, vector<8x32xf32>,
    %c0_i32_8 = arith.constant 0 : i32
    %9 = arith.cmpi eq, %arg2, %c0_i32_8 : i32
    %10 = arith.extui %9 : i1 to i32
    %c0_i32_9 = arith.constant 0 : i32
    %11 = arith.cmpi ne, %10, %c0_i32_9 : i32
    scf.if %11 {
      %c0_10 = arith.constant 0 : index
      %c0_11 = arith.constant 0 : index
      %12 = vector.load %arg8[%c0_10, %c0_11] : memref<8x32xf32, #tpu.memory_space<vmem>>, vector<8x32xf32>
      %c0_12 = arith.constant 0 : index
      %c0_13 = arith.constant 0 : index
      %13 = vector.load %arg5[%c0_12, %c0_13] : memref<1x32xf32, #tpu.memory_space<vmem>>, vector<1x32xf32>
      %14 = vector.broadcast %13 : vector<1x32xf32> to vector<8x32xf32>
      %15 = arith.addf %12, %14 : vector<8x32xf32>
      %c0_14 = arith.constant 0 : index
      %c0_15 = arith.constant 0 : index
      %16 = vector.load %arg6[%c0_14, %c0_15] : memref<8x32xf32, #tpu.memory_space<vmem>>, vector<8x32xf32>
      %17 = arith.addf %15, %16 : vector<8x32xf32>
      %c0_16 = arith.constant 0 : index
      %c0_17 = arith.constant 0 : index
      %18 = vector.load %arg7[%c0_16, %c0_17] : memref<8x32xf32, #tpu.memory_space<vmem>>, vector<8x32xf32>
      tpu.vector_store %arg7[%c0_16, %c0_17], %17 {strides = array<i32>} : memref<8x32xf32, #tpu.memory_space<vmem>>, vector<8x32xf32>,
    } else {
    }
    return
  }
  func.func @transform_0(%arg0: i32, %arg1: i32, %arg2: i32) -> (i32, i32) {
    %c0_i32 = arith.constant 0 : i32
    return %arg0, %arg2 : i32, i32
  }
  func.func @transform_1(%arg0: i32, %arg1: i32, %arg2: i32) -> (i32, i32) {
    %c0_i32 = arith.constant 0 : i32
    return %arg2, %arg1 : i32, i32
  }
  func.func @transform_2(%arg0: i32, %arg1: i32, %arg2: i32) -> (i32, i32) {
    %c0_i32 = arith.constant 0 : i32
    %c0_i32_0 = arith.constant 0 : i32
    return %c0_i32, %arg1 : i32, i32
  }
  func.func @transform_3(%arg0: i32, %arg1: i32, %arg2: i32) -> (i32, i32) {
    %c0_i32 = arith.constant 0 : i32
    return %arg0, %arg1 : i32, i32
  }
  func.func @transform_4(%arg0: i32, %arg1: i32, %arg2: i32) -> (i32, i32) {
    %c0_i32 = arith.constant 0 : i32
    return %arg0, %arg1 : i32, i32
  }
}

module attributes {stable_mosaic.version = 11 : i64} {
  func.func @_linear_kernel(%arg0: i32, %arg1: i32, %arg2: i32, %arg3: memref<8x32xf32, #tpu.memory_space<vmem>>, %arg4: memref<32x96xbf16, #tpu.memory_space<vmem>>, %arg5: memref<1x96xf32, #tpu.memory_space<vmem>>, %arg6: memref<8x96xbf16, #tpu.memory_space<vmem>>, %arg7: memref<8x96xf32, #tpu.memory_space<vmem>>) attributes {dimension_semantics = [#tpu.dimension_semantics<parallel>, #tpu.dimension_semantics<parallel>, #tpu.dimension_semantics<arbitrary>], iteration_bounds = array<i64: 2, 1, 1>, scalar_prefetch = 0 : i64, scratch_operands = 1 : i64, tpu.core_type = #tpu.core_type<tc>, window_params = [{transform_indices = @transform_0, window_bounds = array<i64: 8, 32>}, {transform_indices = @transform_1, window_bounds = array<i64: 32, 96>}, {transform_indices = @transform_2, window_bounds = array<i64: 1, 96>}, {transform_indices = @transform_3, window_bounds = array<i64: 8, 96>}]} {
    %c0_i32 = arith.constant 0 : i32
    %0 = arith.cmpi eq, %arg2, %c0_i32 : i32
    %1 = arith.extui %0 : i1 to i32
    %c0_i32_0 = arith.constant 0 : i32
    %2 = arith.cmpi ne, %1, %c0_i32_0 : i32
    scf.if %2 {
      %cst_10 = arith.constant 0.000000e+00 : f32
      %13 = vector.broadcast %cst_10 : f32 to vector<8x96xf32>
      %c0_11 = arith.constant 0 : index
      %c0_12 = arith.constant 0 : index
      %14 = vector.load %arg7[%c0_11, %c0_12] : memref<8x96xf32, #tpu.memory_space<vmem>>, vector<8x96xf32>
      tpu.vector_store %arg7[%c0_11, %c0_12], %13 {strides = array<i32>} : memref<8x96xf32, #tpu.memory_space<vmem>>, vector<8x96xf32>,
    } else {
    }
    %c0 = arith.constant 0 : index
    %c0_1 = arith.constant 0 : index
    %3 = vector.load %arg7[%c0, %c0_1] : memref<8x96xf32, #tpu.memory_space<vmem>>, vector<8x96xf32>
    %c0_2 = arith.constant 0 : index
    %c0_3 = arith.constant 0 : index
    %4 = vector.load %arg3[%c0_2, %c0_3] : memref<8x32xf32, #tpu.memory_space<vmem>>, vector<8x32xf32>
    %5 = arith.truncf %4 : vector<8x32xf32> to vector<8x32xbf16>
    %c0_4 = arith.constant 0 : index
    %c0_5 = arith.constant 0 : index
    %6 = vector.load %arg4[%c0_4, %c0_5] : memref<32x96xbf16, #tpu.memory_space<vmem>>, vector<32x96xbf16>
    %cst = arith.constant dense<0.000000e+00> : vector<8x96xf32>
    %7 = tpu.matmul %5, %6, %cst {dimension_numbers = #tpu.dot_dimension_numbers<[1], [0], [0], [1], [0, 0, 1, 1], [], []>} : vector<8x32xbf16>, vector<32x96xbf16>, vector<8x96xf32> -> vector<8x96xf32>
    %8 = arith.addf %3, %7 : vector<8x96xf32>
    %c0_6 = arith.constant 0 : index
    %c0_7 = arith.constant 0 : index
    %9 = vector.load %arg7[%c0_6, %c0_7] : memref<8x96xf32, #tpu.memory_space<vmem>>, vector<8x96xf32>
    tpu.vector_store %arg7[%c0_6, %c0_7], %8 {strides = array<i32>} : memref<8x96xf32, #tpu.memory_space<vmem>>, vector<8x96xf32>,
    %c0_i32_8 = arith.constant 0 : i32
    %10 = arith.cmpi eq, %arg2, %c0_i32_8 : i32
    %11 = arith.extui %10 : i1 to i32
    %c0_i32_9 = arith.constant 0 : i32
    %12 = arith.cmpi ne, %11, %c0_i32_9 : i32
    scf.if %12 {
      %c0_10 = arith.constant 0 : index
      %c0_11 = arith.constant 0 : index
      %13 = vector.load %arg7[%c0_10, %c0_11] : memref<8x96xf32, #tpu.memory_space<vmem>>, vector<8x96xf32>
      %c0_12 = arith.constant 0 : index
      %c0_13 = arith.constant 0 : index
      %14 = vector.load %arg5[%c0_12, %c0_13] : memref<1x96xf32, #tpu.memory_space<vmem>>, vector<1x96xf32>
      %15 = vector.broadcast %14 : vector<1x96xf32> to vector<8x96xf32>
      %16 = arith.addf %13, %15 : vector<8x96xf32>
      %17 = arith.truncf %16 : vector<8x96xf32> to vector<8x96xbf16>
      %c0_14 = arith.constant 0 : index
      %c0_15 = arith.constant 0 : index
      %18 = vector.load %arg6[%c0_14, %c0_15] : memref<8x96xbf16, #tpu.memory_space<vmem>>, vector<8x96xbf16>
      tpu.vector_store %arg6[%c0_14, %c0_15], %17 {strides = array<i32>} : memref<8x96xbf16, #tpu.memory_space<vmem>>, vector<8x96xbf16>,
    } else {
    }
    return
  }
  func.func @transform_0(%arg0: i32, %arg1: i32, %arg2: i32) -> (i32, i32) {
    %c0_i32 = arith.constant 0 : i32
    return %arg0, %arg2 : i32, i32
  }
  func.func @transform_1(%arg0: i32, %arg1: i32, %arg2: i32) -> (i32, i32) {
    %c0_i32 = arith.constant 0 : i32
    return %arg2, %arg1 : i32, i32
  }
  func.func @transform_2(%arg0: i32, %arg1: i32, %arg2: i32) -> (i32, i32) {
    %c0_i32 = arith.constant 0 : i32
    %c0_i32_0 = arith.constant 0 : i32
    return %c0_i32, %arg1 : i32, i32
  }
  func.func @transform_3(%arg0: i32, %arg1: i32, %arg2: i32) -> (i32, i32) {
    %c0_i32 = arith.constant 0 : i32
    return %arg0, %arg1 : i32, i32
  }
}

module attributes {stable_mosaic.version = 11 : i64} {
  func.func @_flash_kernel(%arg0: i32, %arg1: i32, %arg2: i32, %arg3: memref<1x8x8xf32, #tpu.memory_space<vmem>>, %arg4: memref<1x8x8xbf16, #tpu.memory_space<vmem>>, %arg5: memref<1x8x8xbf16, #tpu.memory_space<vmem>>, %arg6: memref<1x8x8xbf16, #tpu.memory_space<vmem>>, %arg7: memref<1x8x8xbf16, #tpu.memory_space<vmem>>, %arg8: memref<8x1xf32, #tpu.memory_space<vmem>>, %arg9: memref<8x1xf32, #tpu.memory_space<vmem>>, %arg10: memref<8x8xf32, #tpu.memory_space<vmem>>) attributes {dimension_semantics = [#tpu.dimension_semantics<parallel>, #tpu.dimension_semantics<parallel>, #tpu.dimension_semantics<arbitrary>], iteration_bounds = array<i64: 8, 1, 1>, scalar_prefetch = 0 : i64, scratch_operands = 3 : i64, tpu.core_type = #tpu.core_type<tc>, window_params = [{transform_indices = @transform_0, window_bounds = array<i64: 1, 8, 8>}, {transform_indices = @transform_1, window_bounds = array<i64: 1, 8, 8>}, {transform_indices = @transform_2, window_bounds = array<i64: 1, 8, 8>}, {transform_indices = @transform_3, window_bounds = array<i64: 1, 8, 8>}, {transform_indices = @transform_4, window_bounds = array<i64: 1, 8, 8>}]} {
    %c0_i32 = arith.constant 0 : i32
    %0 = arith.cmpi eq, %arg2, %c0_i32 : i32
    %1 = arith.extui %0 : i1 to i32
    %c0_i32_0 = arith.constant 0 : i32
    %2 = arith.cmpi ne, %1, %c0_i32_0 : i32
    scf.if %2 {
      %cst_30 = arith.constant 0xFF800000 : f32
      %41 = vector.broadcast %cst_30 : f32 to vector<8x1xf32>
      %c0_31 = arith.constant 0 : index
      %c0_32 = arith.constant 0 : index
      %42 = vector.load %arg8[%c0_31, %c0_32] : memref<8x1xf32, #tpu.memory_space<vmem>>, vector<8x1xf32>
      tpu.vector_store %arg8[%c0_31, %c0_32], %41 {strides = array<i32>} : memref<8x1xf32, #tpu.memory_space<vmem>>, vector<8x1xf32>,
      %cst_33 = arith.constant 0.000000e+00 : f32
      %43 = vector.broadcast %cst_33 : f32 to vector<8x1xf32>
      %c0_34 = arith.constant 0 : index
      %c0_35 = arith.constant 0 : index
      %44 = vector.load %arg9[%c0_34, %c0_35] : memref<8x1xf32, #tpu.memory_space<vmem>>, vector<8x1xf32>
      tpu.vector_store %arg9[%c0_34, %c0_35], %43 {strides = array<i32>} : memref<8x1xf32, #tpu.memory_space<vmem>>, vector<8x1xf32>,
      %cst_36 = arith.constant 0.000000e+00 : f32
      %45 = vector.broadcast %cst_36 : f32 to vector<8x8xf32>
      %c0_37 = arith.constant 0 : index
      %c0_38 = arith.constant 0 : index
      %46 = vector.load %arg10[%c0_37, %c0_38] : memref<8x8xf32, #tpu.memory_space<vmem>>, vector<8x8xf32>
      tpu.vector_store %arg10[%c0_37, %c0_38], %45 {strides = array<i32>} : memref<8x8xf32, #tpu.memory_space<vmem>>, vector<8x8xf32>,
    } else {
    }
    %c0 = arith.constant 0 : index
    %c0_1 = arith.constant 0 : index
    %c0_2 = arith.constant 0 : index
    %3 = vector.load %arg4[%c0, %c0_1, %c0_2] : memref<1x8x8xbf16, #tpu.memory_space<vmem>>, vector<1x8x8xbf16>
    %4 = vector.shape_cast %3 : vector<1x8x8xbf16> to vector<8x8xbf16>
    %c0_3 = arith.constant 0 : index
    %c0_4 = arith.constant 0 : index
    %c0_5 = arith.constant 0 : index
    %5 = vector.load %arg5[%c0_3, %c0_4, %c0_5] : memref<1x8x8xbf16, #tpu.memory_space<vmem>>, vector<1x8x8xbf16>
    %6 = vector.shape_cast %5 : vector<1x8x8xbf16> to vector<8x8xbf16>
    %c0_6 = arith.constant 0 : index
    %c0_7 = arith.constant 0 : index
    %c0_8 = arith.constant 0 : index
    %7 = vector.load %arg6[%c0_6, %c0_7, %c0_8] : memref<1x8x8xbf16, #tpu.memory_space<vmem>>, vector<1x8x8xbf16>
    %8 = vector.shape_cast %7 : vector<1x8x8xbf16> to vector<8x8xbf16>
    %cst = arith.constant dense<0.000000e+00> : vector<8x8xf32>
    %9 = tpu.matmul %4, %6, %cst {dimension_numbers = #tpu.dot_dimension_numbers<[1], [1], [0], [0], [0, 0, 1, 0], [], []>} : vector<8x8xbf16>, vector<8x8xbf16>, vector<8x8xf32> -> vector<8x8xf32>
    %cst_9 = arith.constant 0.353553385 : f32
    %10 = vector.broadcast %cst_9 : f32 to vector<8x8xf32>
    %11 = arith.mulf %9, %10 : vector<8x8xf32>
    %c0_10 = arith.constant 0 : index
    %c0_11 = arith.constant 0 : index
    %c0_12 = arith.constant 0 : index
    %12 = vector.load %arg3[%c0_10, %c0_11, %c0_12] : memref<1x8x8xf32, #tpu.memory_space<vmem>>, vector<1x8x8xf32>
    %13 = vector.shape_cast %12 : vector<1x8x8xf32> to vector<8x8xf32>
    %14 = arith.addf %11, %13 : vector<8x8xf32>
    %c0_13 = arith.constant 0 : index
    %c0_14 = arith.constant 0 : index
    %15 = vector.load %arg8[%c0_13, %c0_14] : memref<8x1xf32, #tpu.memory_space<vmem>>, vector<8x1xf32>
    %cst_15 = arith.constant dense<0xFF800000> : vector<8xf32>
    %16 = vector.multi_reduction <maximumf>, %14, %cst_15 [1] : vector<8x8xf32> to vector<8xf32>
    %17 = vector.shape_cast %16 : vector<8xf32> to vector<8x1xf32>
    %18 = arith.maximumf %15, %17 : vector<8x1xf32>
    %19 = arith.subf %15, %18 : vector<8x1xf32>
    %20 = math.exp %19 : vector<8x1xf32>
    %21 = vector.broadcast %18 : vector<8x1xf32> to vector<8x8xf32>
    %22 = arith.subf %14, %21 : vector<8x8xf32>
    %23 = math.exp %22 : vector<8x8xf32>
    %c0_16 = arith.constant 0 : index
    %c0_17 = arith.constant 0 : index
    %24 = vector.load %arg9[%c0_16, %c0_17] : memref<8x1xf32, #tpu.memory_space<vmem>>, vector<8x1xf32>
    %25 = arith.mulf %20, %24 : vector<8x1xf32>
    %cst_18 = arith.constant dense<0.000000e+00> : vector<8xf32>
    %26 = vector.multi_reduction <add>, %23, %cst_18 [1] : vector<8x8xf32> to vector<8xf32>
    %27 = vector.shape_cast %26 : vector<8xf32> to vector<8x1xf32>
    %28 = arith.addf %25, %27 : vector<8x1xf32>
    %c0_19 = arith.constant 0 : index
    %c0_20 = arith.constant 0 : index
    %29 = vector.load %arg9[%c0_19, %c0_20] : memref<8x1xf32, #tpu.memory_space<vmem>>, vector<8x1xf32>
    tpu.vector_store %arg9[%c0_19, %c0_20], %28 {strides = array<i32>} : memref<8x1xf32, #tpu.memory_space<vmem>>, vector<8x1xf32>,
    %c0_21 = arith.constant 0 : index
    %c0_22 = arith.constant 0 : index
    %30 = vector.load %arg10[%c0_21, %c0_22] : memref<8x8xf32, #tpu.memory_space<vmem>>, vector<8x8xf32>
    %31 = vector.broadcast %20 : vector<8x1xf32> to vector<8x8xf32>
    %32 = arith.mulf %31, %30 : vector<8x8xf32>
    %33 = arith.truncf %23 : vector<8x8xf32> to vector<8x8xbf16>
    %cst_23 = arith.constant dense<0.000000e+00> : vector<8x8xf32>
    %34 = tpu.matmul %33, %8, %cst_23 {dimension_numbers = #tpu.dot_dimension_numbers<[1], [0], [0], [1], [0, 0, 1, 1], [], []>} : vector<8x8xbf16>, vector<8x8xbf16>, vector<8x8xf32> -> vector<8x8xf32>
    %35 = arith.addf %32, %34 : vector<8x8xf32>
    %c0_24 = arith.constant 0 : index
    %c0_25 = arith.constant 0 : index
    %36 = vector.load %arg10[%c0_24, %c0_25] : memref<8x8xf32, #tpu.memory_space<vmem>>, vector<8x8xf32>
    tpu.vector_store %arg10[%c0_24, %c0_25], %35 {strides = array<i32>} : memref<8x8xf32, #tpu.memory_space<vmem>>, vector<8x8xf32>,
    %c0_26 = arith.constant 0 : index
    %c0_27 = arith.constant 0 : index
    %37 = vector.load %arg8[%c0_26, %c0_27] : memref<8x1xf32, #tpu.memory_space<vmem>>, vector<8x1xf32>
    tpu.vector_store %arg8[%c0_26, %c0_27], %18 {strides = array<i32>} : memref<8x1xf32, #tpu.memory_space<vmem>>, vector<8x1xf32>,
    %c0_i32_28 = arith.constant 0 : i32
    %38 = arith.cmpi eq, %arg2, %c0_i32_28 : i32
    %39 = arith.extui %38 : i1 to i32
    %c0_i32_29 = arith.constant 0 : i32
    %40 = arith.cmpi ne, %39, %c0_i32_29 : i32
    scf.if %40 {
      %c0_30 = arith.constant 0 : index
      %c0_31 = arith.constant 0 : index
      %41 = vector.load %arg10[%c0_30, %c0_31] : memref<8x8xf32, #tpu.memory_space<vmem>>, vector<8x8xf32>
      %c0_32 = arith.constant 0 : index
      %c0_33 = arith.constant 0 : index
      %42 = vector.load %arg9[%c0_32, %c0_33] : memref<8x1xf32, #tpu.memory_space<vmem>>, vector<8x1xf32>
      %43 = tpu.reciprocal %42 {approx = true} : vector<8x1xf32> -> vector<8x1xf32>
      %44 = vector.broadcast %43 : vector<8x1xf32> to vector<8x8xf32>
      %45 = arith.mulf %41, %44 : vector<8x8xf32>
      %46 = arith.truncf %45 : vector<8x8xf32> to vector<8x8xbf16>
      %c0_34 = arith.constant 0 : index
      %c0_35 = arith.constant 0 : index
      %c0_36 = arith.constant 0 : index
      %47 = vector.load %arg7[%c0_34, %c0_35, %c0_36] : memref<1x8x8xbf16, #tpu.memory_space<vmem>>, vector<1x8x8xbf16>
      %48 = vector.shape_cast %47 : vector<1x8x8xbf16> to vector<8x8xbf16>
      %49 = vector.shape_cast %46 : vector<8x8xbf16> to vector<1x8x8xbf16>
      tpu.vector_store %arg7[%c0_34, %c0_35, %c0_36], %49 {strides = array<i32>} : memref<1x8x8xbf16, #tpu.memory_space<vmem>>, vector<1x8x8xbf16>,
    } else {
    }
    return
  }
  func.func @transform_0(%arg0: i32, %arg1: i32, %arg2: i32) -> (i32, i32, i32) {
    %c0_i32 = arith.constant 0 : i32
    %c0_i32_0 = arith.constant 0 : i32
    return %c0_i32, %arg1, %arg2 : i32, i32, i32
  }
  func.func @transform_1(%arg0: i32, %arg1: i32, %arg2: i32) -> (i32, i32, i32) {
    %c0_i32 = arith.constant 0 : i32
    %c0_i32_0 = arith.constant 0 : i32
    return %arg0, %arg1, %c0_i32 : i32, i32, i32
  }
  func.func @transform_2(%arg0: i32, %arg1: i32, %arg2: i32) -> (i32, i32, i32) {
    %c0_i32 = arith.constant 0 : i32
    %c0_i32_0 = arith.constant 0 : i32
    return %arg0, %arg2, %c0_i32 : i32, i32, i32
  }
  func.func @transform_3(%arg0: i32, %arg1: i32, %arg2: i32) -> (i32, i32, i32) {
    %c0_i32 = arith.constant 0 : i32
    %c0_i32_0 = arith.constant 0 : i32
    return %arg0, %arg2, %c0_i32 : i32, i32, i32
  }
  func.func @transform_4(%arg0: i32, %arg1: i32, %arg2: i32) -> (i32, i32, i32) {
    %c0_i32 = arith.constant 0 : i32
    %c0_i32_0 = arith.constant 0 : i32
    return %arg0, %arg1, %c0_i32 : i32, i32, i32
  }
}

module attributes {stable_mosaic.version = 11 : i64} {
  func.func @_linear_kernel(%arg0: i32, %arg1: i32, %arg2: i32, %arg3: memref<8x32xf32, #tpu.memory_space<vmem>>, %arg4: memref<32x32xbf16, #tpu.memory_space<vmem>>, %arg5: memref<1x32xf32, #tpu.memory_space<vmem>>, %arg6: memref<8x32xbf16, #tpu.memory_space<vmem>>, %arg7: memref<8x32xf32, #tpu.memory_space<vmem>>) attributes {dimension_semantics = [#tpu.dimension_semantics<parallel>, #tpu.dimension_semantics<parallel>, #tpu.dimension_semantics<arbitrary>], iteration_bounds = array<i64: 2, 1, 1>, scalar_prefetch = 0 : i64, scratch_operands = 1 : i64, tpu.core_type = #tpu.core_type<tc>, window_params = [{transform_indices = @transform_0, window_bounds = array<i64: 8, 32>}, {transform_indices = @transform_1, window_bounds = array<i64: 32, 32>}, {transform_indices = @transform_2, window_bounds = array<i64: 1, 32>}, {transform_indices = @transform_3, window_bounds = array<i64: 8, 32>}]} {
    %c0_i32 = arith.constant 0 : i32
    %0 = arith.cmpi eq, %arg2, %c0_i32 : i32
    %1 = arith.extui %0 : i1 to i32
    %c0_i32_0 = arith.constant 0 : i32
    %2 = arith.cmpi ne, %1, %c0_i32_0 : i32
    scf.if %2 {
      %cst_10 = arith.constant 0.000000e+00 : f32
      %13 = vector.broadcast %cst_10 : f32 to vector<8x32xf32>
      %c0_11 = arith.constant 0 : index
      %c0_12 = arith.constant 0 : index
      %14 = vector.load %arg7[%c0_11, %c0_12] : memref<8x32xf32, #tpu.memory_space<vmem>>, vector<8x32xf32>
      tpu.vector_store %arg7[%c0_11, %c0_12], %13 {strides = array<i32>} : memref<8x32xf32, #tpu.memory_space<vmem>>, vector<8x32xf32>,
    } else {
    }
    %c0 = arith.constant 0 : index
    %c0_1 = arith.constant 0 : index
    %3 = vector.load %arg7[%c0, %c0_1] : memref<8x32xf32, #tpu.memory_space<vmem>>, vector<8x32xf32>
    %c0_2 = arith.constant 0 : index
    %c0_3 = arith.constant 0 : index
    %4 = vector.load %arg3[%c0_2, %c0_3] : memref<8x32xf32, #tpu.memory_space<vmem>>, vector<8x32xf32>
    %5 = arith.truncf %4 : vector<8x32xf32> to vector<8x32xbf16>
    %c0_4 = arith.constant 0 : index
    %c0_5 = arith.constant 0 : index
    %6 = vector.load %arg4[%c0_4, %c0_5] : memref<32x32xbf16, #tpu.memory_space<vmem>>, vector<32x32xbf16>
    %cst = arith.constant dense<0.000000e+00> : vector<8x32xf32>
    %7 = tpu.matmul %5, %6, %cst {dimension_numbers = #tpu.dot_dimension_numbers<[1], [0], [0], [1], [0, 0, 1, 1], [], []>} : vector<8x32xbf16>, vector<32x32xbf16>, vector<8x32xf32> -> vector<8x32xf32>
    %8 = arith.addf %3, %7 : vector<8x32xf32>
    %c0_6 = arith.constant 0 : index
    %c0_7 = arith.constant 0 : index
    %9 = vector.load %arg7[%c0_6, %c0_7] : memref<8x32xf32, #tpu.memory_space<vmem>>, vector<8x32xf32>
    tpu.vector_store %arg7[%c0_6, %c0_7], %8 {strides = array<i32>} : memref<8x32xf32, #tpu.memory_space<vmem>>, vector<8x32xf32>,
    %c0_i32_8 = arith.constant 0 : i32
    %10 = arith.cmpi eq, %arg2, %c0_i32_8 : i32
    %11 = arith.extui %10 : i1 to i32
    %c0_i32_9 = arith.constant 0 : i32
    %12 = arith.cmpi ne, %11, %c0_i32_9 : i32
    scf.if %12 {
      %c0_10 = arith.constant 0 : index
      %c0_11 = arith.constant 0 : index
      %13 = vector.load %arg7[%c0_10, %c0_11] : memref<8x32xf32, #tpu.memory_space<vmem>>, vector<8x32xf32>
      %c0_12 = arith.constant 0 : index
      %c0_13 = arith.constant 0 : index
      %14 = vector.load %arg5[%c0_12, %c0_13] : memref<1x32xf32, #tpu.memory_space<vmem>>, vector<1x32xf32>
      %15 = vector.broadcast %14 : vector<1x32xf32> to vector<8x32xf32>
      %16 = arith.addf %13, %15 : vector<8x32xf32>
      %17 = arith.truncf %16 : vector<8x32xf32> to vector<8x32xbf16>
      %c0_14 = arith.constant 0 : index
      %c0_15 = arith.constant 0 : index
      %18 = vector.load %arg6[%c0_14, %c0_15] : memref<8x32xbf16, #tpu.memory_space<vmem>>, vector<8x32xbf16>
      tpu.vector_store %arg6[%c0_14, %c0_15], %17 {strides = array<i32>} : memref<8x32xbf16, #tpu.memory_space<vmem>>, vector<8x32xbf16>,
    } else {
    }
    return
  }
  func.func @transform_0(%arg0: i32, %arg1: i32, %arg2: i32) -> (i32, i32) {
    %c0_i32 = arith.constant 0 : i32
    return %arg0, %arg2 : i32, i32
  }
  func.func @transform_1(%arg0: i32, %arg1: i32, %arg2: i32) -> (i32, i32) {
    %c0_i32 = arith.constant 0 : i32
    return %arg2, %arg1 : i32, i32
  }
  func.func @transform_2(%arg0: i32, %arg1: i32, %arg2: i32) -> (i32, i32) {
    %c0_i32 = arith.constant 0 : i32
    %c0_i32_0 = arith.constant 0 : i32
    return %c0_i32, %arg1 : i32, i32
  }
  func.func @transform_3(%arg0: i32, %arg1: i32, %arg2: i32) -> (i32, i32) {
    %c0_i32 = arith.constant 0 : i32
    return %arg0, %arg1 : i32, i32
  }
}

module attributes {stable_mosaic.version = 11 : i64} {
  func.func @_linear_kernel(%arg0: i32, %arg1: i32, %arg2: i32, %arg3: memref<8x32xf32, #tpu.memory_space<vmem>>, %arg4: memref<32x64xbf16, #tpu.memory_space<vmem>>, %arg5: memref<1x64xf32, #tpu.memory_space<vmem>>, %arg6: memref<8x64xbf16, #tpu.memory_space<vmem>>, %arg7: memref<8x64xf32, #tpu.memory_space<vmem>>) attributes {dimension_semantics = [#tpu.dimension_semantics<parallel>, #tpu.dimension_semantics<parallel>, #tpu.dimension_semantics<arbitrary>], iteration_bounds = array<i64: 2, 1, 1>, scalar_prefetch = 0 : i64, scratch_operands = 1 : i64, tpu.core_type = #tpu.core_type<tc>, window_params = [{transform_indices = @transform_0, window_bounds = array<i64: 8, 32>}, {transform_indices = @transform_1, window_bounds = array<i64: 32, 64>}, {transform_indices = @transform_2, window_bounds = array<i64: 1, 64>}, {transform_indices = @transform_3, window_bounds = array<i64: 8, 64>}]} {
    %c0_i32 = arith.constant 0 : i32
    %0 = arith.cmpi eq, %arg2, %c0_i32 : i32
    %1 = arith.extui %0 : i1 to i32
    %c0_i32_0 = arith.constant 0 : i32
    %2 = arith.cmpi ne, %1, %c0_i32_0 : i32
    scf.if %2 {
      %cst_10 = arith.constant 0.000000e+00 : f32
      %13 = vector.broadcast %cst_10 : f32 to vector<8x64xf32>
      %c0_11 = arith.constant 0 : index
      %c0_12 = arith.constant 0 : index
      %14 = vector.load %arg7[%c0_11, %c0_12] : memref<8x64xf32, #tpu.memory_space<vmem>>, vector<8x64xf32>
      tpu.vector_store %arg7[%c0_11, %c0_12], %13 {strides = array<i32>} : memref<8x64xf32, #tpu.memory_space<vmem>>, vector<8x64xf32>,
    } else {
    }
    %c0 = arith.constant 0 : index
    %c0_1 = arith.constant 0 : index
    %3 = vector.load %arg7[%c0, %c0_1] : memref<8x64xf32, #tpu.memory_space<vmem>>, vector<8x64xf32>
    %c0_2 = arith.constant 0 : index
    %c0_3 = arith.constant 0 : index
    %4 = vector.load %arg3[%c0_2, %c0_3] : memref<8x32xf32, #tpu.memory_space<vmem>>, vector<8x32xf32>
    %5 = arith.truncf %4 : vector<8x32xf32> to vector<8x32xbf16>
    %c0_4 = arith.constant 0 : index
    %c0_5 = arith.constant 0 : index
    %6 = vector.load %arg4[%c0_4, %c0_5] : memref<32x64xbf16, #tpu.memory_space<vmem>>, vector<32x64xbf16>
    %cst = arith.constant dense<0.000000e+00> : vector<8x64xf32>
    %7 = tpu.matmul %5, %6, %cst {dimension_numbers = #tpu.dot_dimension_numbers<[1], [0], [0], [1], [0, 0, 1, 1], [], []>} : vector<8x32xbf16>, vector<32x64xbf16>, vector<8x64xf32> -> vector<8x64xf32>
    %8 = arith.addf %3, %7 : vector<8x64xf32>
    %c0_6 = arith.constant 0 : index
    %c0_7 = arith.constant 0 : index
    %9 = vector.load %arg7[%c0_6, %c0_7] : memref<8x64xf32, #tpu.memory_space<vmem>>, vector<8x64xf32>
    tpu.vector_store %arg7[%c0_6, %c0_7], %8 {strides = array<i32>} : memref<8x64xf32, #tpu.memory_space<vmem>>, vector<8x64xf32>,
    %c0_i32_8 = arith.constant 0 : i32
    %10 = arith.cmpi eq, %arg2, %c0_i32_8 : i32
    %11 = arith.extui %10 : i1 to i32
    %c0_i32_9 = arith.constant 0 : i32
    %12 = arith.cmpi ne, %11, %c0_i32_9 : i32
    scf.if %12 {
      %c0_10 = arith.constant 0 : index
      %c0_11 = arith.constant 0 : index
      %13 = vector.load %arg7[%c0_10, %c0_11] : memref<8x64xf32, #tpu.memory_space<vmem>>, vector<8x64xf32>
      %c0_12 = arith.constant 0 : index
      %c0_13 = arith.constant 0 : index
      %14 = vector.load %arg5[%c0_12, %c0_13] : memref<1x64xf32, #tpu.memory_space<vmem>>, vector<1x64xf32>
      %15 = vector.broadcast %14 : vector<1x64xf32> to vector<8x64xf32>
      %16 = arith.addf %13, %15 : vector<8x64xf32>
      %17 = arith.truncf %16 : vector<8x64xf32> to vector<8x64xbf16>
      %c0_14 = arith.constant 0 : index
      %c0_15 = arith.constant 0 : index
      %18 = vector.load %arg6[%c0_14, %c0_15] : memref<8x64xbf16, #tpu.memory_space<vmem>>, vector<8x64xbf16>
      tpu.vector_store %arg6[%c0_14, %c0_15], %17 {strides = array<i32>} : memref<8x64xbf16, #tpu.memory_space<vmem>>, vector<8x64xbf16>,
    } else {
    }
    return
  }
  func.func @transform_0(%arg0: i32, %arg1: i32, %arg2: i32) -> (i32, i32) {
    %c0_i32 = arith.constant 0 : i32
    return %arg0, %arg2 : i32, i32
  }
  func.func @transform_1(%arg0: i32, %arg1: i32, %arg2: i32) -> (i32, i32) {
    %c0_i32 = arith.constant 0 : i32
    return %arg2, %arg1 : i32, i32
  }
  func.func @transform_2(%arg0: i32, %arg1: i32, %arg2: i32) -> (i32, i32) {
    %c0_i32 = arith.constant 0 : i32
    %c0_i32_0 = arith.constant 0 : i32
    return %c0_i32, %arg1 : i32, i32
  }
  func.func @transform_3(%arg0: i32, %arg1: i32, %arg2: i32) -> (i32, i32) {
    %c0_i32 = arith.constant 0 : i32
    return %arg0, %arg1 : i32, i32
  }
}

module attributes {stable_mosaic.version = 11 : i64} {
  func.func @_linear_kernel(%arg0: i32, %arg1: i32, %arg2: i32, %arg3: memref<8x32xf32, #tpu.memory_space<vmem>>, %arg4: memref<32x128xbf16, #tpu.memory_space<vmem>>, %arg5: memref<1x128xf32, #tpu.memory_space<vmem>>, %arg6: memref<8x128xbf16, #tpu.memory_space<vmem>>, %arg7: memref<8x128xf32, #tpu.memory_space<vmem>>) attributes {dimension_semantics = [#tpu.dimension_semantics<parallel>, #tpu.dimension_semantics<parallel>, #tpu.dimension_semantics<arbitrary>], iteration_bounds = array<i64: 2, 1, 1>, scalar_prefetch = 0 : i64, scratch_operands = 1 : i64, tpu.core_type = #tpu.core_type<tc>, window_params = [{transform_indices = @transform_0, window_bounds = array<i64: 8, 32>}, {transform_indices = @transform_1, window_bounds = array<i64: 32, 128>}, {transform_indices = @transform_2, window_bounds = array<i64: 1, 128>}, {transform_indices = @transform_3, window_bounds = array<i64: 8, 128>}]} {
    %c0_i32 = arith.constant 0 : i32
    %0 = arith.cmpi eq, %arg2, %c0_i32 : i32
    %1 = arith.extui %0 : i1 to i32
    %c0_i32_0 = arith.constant 0 : i32
    %2 = arith.cmpi ne, %1, %c0_i32_0 : i32
    scf.if %2 {
      %cst_10 = arith.constant 0.000000e+00 : f32
      %13 = vector.broadcast %cst_10 : f32 to vector<8x128xf32>
      %c0_11 = arith.constant 0 : index
      %c0_12 = arith.constant 0 : index
      %14 = vector.load %arg7[%c0_11, %c0_12] : memref<8x128xf32, #tpu.memory_space<vmem>>, vector<8x128xf32>
      tpu.vector_store %arg7[%c0_11, %c0_12], %13 {strides = array<i32>} : memref<8x128xf32, #tpu.memory_space<vmem>>, vector<8x128xf32>,
    } else {
    }
    %c0 = arith.constant 0 : index
    %c0_1 = arith.constant 0 : index
    %3 = vector.load %arg7[%c0, %c0_1] : memref<8x128xf32, #tpu.memory_space<vmem>>, vector<8x128xf32>
    %c0_2 = arith.constant 0 : index
    %c0_3 = arith.constant 0 : index
    %4 = vector.load %arg3[%c0_2, %c0_3] : memref<8x32xf32, #tpu.memory_space<vmem>>, vector<8x32xf32>
    %5 = arith.truncf %4 : vector<8x32xf32> to vector<8x32xbf16>
    %c0_4 = arith.constant 0 : index
    %c0_5 = arith.constant 0 : index
    %6 = vector.load %arg4[%c0_4, %c0_5] : memref<32x128xbf16, #tpu.memory_space<vmem>>, vector<32x128xbf16>
    %cst = arith.constant dense<0.000000e+00> : vector<8x128xf32>
    %7 = tpu.matmul %5, %6, %cst {dimension_numbers = #tpu.dot_dimension_numbers<[1], [0], [0], [1], [0, 0, 1, 1], [], []>} : vector<8x32xbf16>, vector<32x128xbf16>, vector<8x128xf32> -> vector<8x128xf32>
    %8 = arith.addf %3, %7 : vector<8x128xf32>
    %c0_6 = arith.constant 0 : index
    %c0_7 = arith.constant 0 : index
    %9 = vector.load %arg7[%c0_6, %c0_7] : memref<8x128xf32, #tpu.memory_space<vmem>>, vector<8x128xf32>
    tpu.vector_store %arg7[%c0_6, %c0_7], %8 {strides = array<i32>} : memref<8x128xf32, #tpu.memory_space<vmem>>, vector<8x128xf32>,
    %c0_i32_8 = arith.constant 0 : i32
    %10 = arith.cmpi eq, %arg2, %c0_i32_8 : i32
    %11 = arith.extui %10 : i1 to i32
    %c0_i32_9 = arith.constant 0 : i32
    %12 = arith.cmpi ne, %11, %c0_i32_9 : i32
    scf.if %12 {
      %c0_10 = arith.constant 0 : index
      %c0_11 = arith.constant 0 : index
      %13 = vector.load %arg7[%c0_10, %c0_11] : memref<8x128xf32, #tpu.memory_space<vmem>>, vector<8x128xf32>
      %c0_12 = arith.constant 0 : index
      %c0_13 = arith.constant 0 : index
      %14 = vector.load %arg5[%c0_12, %c0_13] : memref<1x128xf32, #tpu.memory_space<vmem>>, vector<1x128xf32>
      %15 = vector.broadcast %14 : vector<1x128xf32> to vector<8x128xf32>
      %16 = arith.addf %13, %15 : vector<8x128xf32>
      %cst_14 = arith.constant 0.000000e+00 : f32
      %17 = vector.broadcast %cst_14 : f32 to vector<8x128xf32>
      %18 = arith.maximumf %16, %17 : vector<8x128xf32>
      %19 = arith.truncf %18 : vector<8x128xf32> to vector<8x128xbf16>
      %c0_15 = arith.constant 0 : index
      %c0_16 = arith.constant 0 : index
      %20 = vector.load %arg6[%c0_15, %c0_16] : memref<8x128xbf16, #tpu.memory_space<vmem>>, vector<8x128xbf16>
      tpu.vector_store %arg6[%c0_15, %c0_16], %19 {strides = array<i32>} : memref<8x128xbf16, #tpu.memory_space<vmem>>, vector<8x128xbf16>,
    } else {
    }
    return
  }
  func.func @transform_0(%arg0: i32, %arg1: i32, %arg2: i32) -> (i32, i32) {
    %c0_i32 = arith.constant 0 : i32
    return %arg0, %arg2 : i32, i32
  }
  func.func @transform_1(%arg0: i32, %arg1: i32, %arg2: i32) -> (i32, i32) {
    %c0_i32 = arith.constant 0 : i32
    return %arg2, %arg1 : i32, i32
  }
  func.func @transform_2(%arg0: i32, %arg1: i32, %arg2: i32) -> (i32, i32) {
    %c0_i32 = arith.constant 0 : i32
    %c0_i32_0 = arith.constant 0 : i32
    return %c0_i32, %arg1 : i32, i32
  }
  func.func @transform_3(%arg0: i32, %arg1: i32, %arg2: i32) -> (i32, i32) {
    %c0_i32 = arith.constant 0 : i32
    return %arg0, %arg1 : i32, i32
  }
}

module attributes {stable_mosaic.version = 11 : i64} {
  func.func @_linear_kernel(%arg0: i32, %arg1: i32, %arg2: i32, %arg3: memref<8x128xbf16, #tpu.memory_space<vmem>>, %arg4: memref<128x32xbf16, #tpu.memory_space<vmem>>, %arg5: memref<1x32xf32, #tpu.memory_space<vmem>>, %arg6: memref<8x32xf32, #tpu.memory_space<vmem>>, %arg7: memref<8x32xf32, #tpu.memory_space<vmem>>, %arg8: memref<8x32xf32, #tpu.memory_space<vmem>>) attributes {dimension_semantics = [#tpu.dimension_semantics<parallel>, #tpu.dimension_semantics<parallel>, #tpu.dimension_semantics<arbitrary>], iteration_bounds = array<i64: 2, 1, 1>, scalar_prefetch = 0 : i64, scratch_operands = 1 : i64, tpu.core_type = #tpu.core_type<tc>, window_params = [{transform_indices = @transform_0, window_bounds = array<i64: 8, 128>}, {transform_indices = @transform_1, window_bounds = array<i64: 128, 32>}, {transform_indices = @transform_2, window_bounds = array<i64: 1, 32>}, {transform_indices = @transform_3, window_bounds = array<i64: 8, 32>}, {transform_indices = @transform_4, window_bounds = array<i64: 8, 32>}]} {
    %c0_i32 = arith.constant 0 : i32
    %0 = arith.cmpi eq, %arg2, %c0_i32 : i32
    %1 = arith.extui %0 : i1 to i32
    %c0_i32_0 = arith.constant 0 : i32
    %2 = arith.cmpi ne, %1, %c0_i32_0 : i32
    scf.if %2 {
      %cst_10 = arith.constant 0.000000e+00 : f32
      %12 = vector.broadcast %cst_10 : f32 to vector<8x32xf32>
      %c0_11 = arith.constant 0 : index
      %c0_12 = arith.constant 0 : index
      %13 = vector.load %arg8[%c0_11, %c0_12] : memref<8x32xf32, #tpu.memory_space<vmem>>, vector<8x32xf32>
      tpu.vector_store %arg8[%c0_11, %c0_12], %12 {strides = array<i32>} : memref<8x32xf32, #tpu.memory_space<vmem>>, vector<8x32xf32>,
    } else {
    }
    %c0 = arith.constant 0 : index
    %c0_1 = arith.constant 0 : index
    %3 = vector.load %arg8[%c0, %c0_1] : memref<8x32xf32, #tpu.memory_space<vmem>>, vector<8x32xf32>
    %c0_2 = arith.constant 0 : index
    %c0_3 = arith.constant 0 : index
    %4 = vector.load %arg3[%c0_2, %c0_3] : memref<8x128xbf16, #tpu.memory_space<vmem>>, vector<8x128xbf16>
    %c0_4 = arith.constant 0 : index
    %c0_5 = arith.constant 0 : index
    %5 = vector.load %arg4[%c0_4, %c0_5] : memref<128x32xbf16, #tpu.memory_space<vmem>>, vector<128x32xbf16>
    %cst = arith.constant dense<0.000000e+00> : vector<8x32xf32>
    %6 = tpu.matmul %4, %5, %cst {dimension_numbers = #tpu.dot_dimension_numbers<[1], [0], [0], [1], [0, 0, 1, 1], [], []>} : vector<8x128xbf16>, vector<128x32xbf16>, vector<8x32xf32> -> vector<8x32xf32>
    %7 = arith.addf %3, %6 : vector<8x32xf32>
    %c0_6 = arith.constant 0 : index
    %c0_7 = arith.constant 0 : index
    %8 = vector.load %arg8[%c0_6, %c0_7] : memref<8x32xf32, #tpu.memory_space<vmem>>, vector<8x32xf32>
    tpu.vector_store %arg8[%c0_6, %c0_7], %7 {strides = array<i32>} : memref<8x32xf32, #tpu.memory_space<vmem>>, vector<8x32xf32>,
    %c0_i32_8 = arith.constant 0 : i32
    %9 = arith.cmpi eq, %arg2, %c0_i32_8 : i32
    %10 = arith.extui %9 : i1 to i32
    %c0_i32_9 = arith.constant 0 : i32
    %11 = arith.cmpi ne, %10, %c0_i32_9 : i32
    scf.if %11 {
      %c0_10 = arith.constant 0 : index
      %c0_11 = arith.constant 0 : index
      %12 = vector.load %arg8[%c0_10, %c0_11] : memref<8x32xf32, #tpu.memory_space<vmem>>, vector<8x32xf32>
      %c0_12 = arith.constant 0 : index
      %c0_13 = arith.constant 0 : index
      %13 = vector.load %arg5[%c0_12, %c0_13] : memref<1x32xf32, #tpu.memory_space<vmem>>, vector<1x32xf32>
      %14 = vector.broadcast %13 : vector<1x32xf32> to vector<8x32xf32>
      %15 = arith.addf %12, %14 : vector<8x32xf32>
      %c0_14 = arith.constant 0 : index
      %c0_15 = arith.constant 0 : index
      %16 = vector.load %arg6[%c0_14, %c0_15] : memref<8x32xf32, #tpu.memory_space<vmem>>, vector<8x32xf32>
      %17 = arith.addf %15, %16 : vector<8x32xf32>
      %c0_16 = arith.constant 0 : index
      %c0_17 = arith.constant 0 : index
      %18 = vector.load %arg7[%c0_16, %c0_17] : memref<8x32xf32, #tpu.memory_space<vmem>>, vector<8x32xf32>
      tpu.vector_store %arg7[%c0_16, %c0_17], %17 {strides = array<i32>} : memref<8x32xf32, #tpu.memory_space<vmem>>, vector<8x32xf32>,
    } else {
    }
    return
  }
  func.func @transform_0(%arg0: i32, %arg1: i32, %arg2: i32) -> (i32, i32) {
    %c0_i32 = arith.constant 0 : i32
    return %arg0, %arg2 : i32, i32
  }
  func.func @transform_1(%arg0: i32, %arg1: i32, %arg2: i32) -> (i32, i32) {
    %c0_i32 = arith.constant 0 : i32
    return %arg2, %arg1 : i32, i32
  }
  func.func @transform_2(%arg0: i32, %arg1: i32, %arg2: i32) -> (i32, i32) {
    %c0_i32 = arith.constant 0 : i32
    %c0_i32_0 = arith.constant 0 : i32
    return %c0_i32, %arg1 : i32, i32
  }
  func.func @transform_3(%arg0: i32, %arg1: i32, %arg2: i32) -> (i32, i32) {
    %c0_i32 = arith.constant 0 : i32
    return %arg0, %arg1 : i32, i32
  }
  func.func @transform_4(%arg0: i32, %arg1: i32, %arg2: i32) -> (i32, i32) {
    %c0_i32 = arith.constant 0 : i32
    return %arg0, %arg1 : i32, i32
  }
}

</mosaic_0001>

<llo_original>
// kernel: decoder_forward.9
$region0: #{decoder_forward.9}
  #allocation0 [shape = 'u32[]', space=smem, size = 0x4, offset = 0x4, fixed_abs, tag = 'smem constant byte address 0x4 - core index']
  #allocation1 [shape = 'u32[72,128]{1,0:T(1,128)}', space=vmem, size = 0x9000, scoped, tag = 'internal scratch']
  #allocation2 [shape = 'f32[8,96]{1,0:T(8,128)}', space=vmem, size = 0x1000, scoped, tag = 'scratch operand']
  %s0 = inlined_call_operand.vmem [shape: f32[16,32], index: 0, kind: input, shape index: {}]
  %s1 = inlined_call_operand.hbm [shape: bf16[32,96], index: 1, kind: input, shape index: {}]
  %s2 = inlined_call_operand.vmem [shape: f32[1,96], index: 2, kind: input, shape index: {}]
  %s3 = inlined_call_operand.vmem [shape: bf16[16,96], index: 3, kind: output, shape index: {}]
  %s4 = sld [smem:[#allocation0]]
  $region57: #{decoder_forward.9} parent=0
    _
  %s6 = ssub.s32 1, %s4
  %s7 = scalar_select 0, %s6, %s4
  $region1: #{decoder_forward.9} parent=0
    #allocation3 [shape = 'u8[8192]{0}', space=vmem, size = 0x2000, scoped, tag = 'input window, operand 1, single buffered']
    #allocation4 [shape = 's32[2]{0}', space=sflag, size = 0x8, scoped, tag = 'scoped memory for decoder_forward.9']
    %8 = vsyncpa [#allocation4], 0
    loop: start=0, step=1, limit=4
    $region2: #{decoder_forward.9} parent=1 // loop_pre_header
      _
    $region3: #{decoder_forward.9} parent=1 // loop_header
      %s10 = sphi 0, %s14
      %p11 = scmp.ge.s32.totalorder %s10, 4
      %s17 = sphi 0, %s36
      %s18 = sphi 0, %s32
      %s19 = sphi 0, %s28
      %s20 = sphi 0, %s17
      %s21 = sphi 0, %s18
      %s22 = sphi 0, %s19
      %s23 = sphi 0, %s20
      %s24 = sphi 0, %s21
      %s25 = sphi 0, %s22
      %s41 = sphi 0, %s43
      %s44 = sphi 0, %s41
      %s45 = sphi 0, %s44
      %s61 = sphi 0, %s45
      %s69 = sphi 0, %s71
      %s72 = sphi 0, %s69
      %s73 = sphi 0, %s72
      %s89 = sphi 0, %s73
      %s95 = sphi 0, %s97
      %s98 = sphi 0, %s95
      %s99 = sphi 0, %s98
      %s115 = sphi 0, %s99
      %s123 = sphi 0, %s125
      %s126 = sphi 0, %s123
      %s127 = sphi 0, %s126
      %s143 = sphi 0, %s127
    $region4: #{decoder_forward.9} parent=1 // loop_header_branch
      %13 = sbr.rel (%p11) target = $region8
    $region5: #{decoder_forward.9} parent=1 // loop_body
      %s15 = ssub.s32 %s10, 1
      %s16 = ssub.s32 %s10, 2
      %s26 = sadd.s32 1, %s19
      %p27 = scmp.ge.s32.totalorder %s26, 1
      %s28 = scalar_select %p27, 0, %s26
      %s29 = sadd.s32 1, %s18
      %s30 = scalar_select %p27, %s29, %s18
      %p31 = scmp.ge.s32.totalorder %s30, 1
      %s32 = scalar_select %p31, 0, %s30
      %s33 = sadd.s32 1, %s17
      %s34 = scalar_select %p31, %s33, %s17
      %p35 = scmp.ge.s32.totalorder %s34, 2
      %s36 = scalar_select %p35, 0, %s34
      %s37 = ssub.s32 %s17, %s36
      %s38 = ssub.s32 %s19, %s28
      %s39 = sor.u32 %s37, %s38
      %p40 = scmp.eq.s32.totalorder %s39, 0
      %s42 = sadd.s32 %s41, 1
      %s43 = scalar_select %p40, %s41, %s42
      %p46 = pneg %p40
      %p47 = scmp.eq.s32.totalorder %s10, 1
      %p48 = por %p46, %p47
      %p49 = scmp.ne.s32.totalorder %s41, %s44
      %p50 = scmp.eq.s32.totalorder %s10, 0
      %p51 = por %p49, %p50
      %p52 = scmp.ne.s32.totalorder %s41, %s44
      %p53 = scmp.eq.s32.totalorder %s15, 1
      %p54 = por %p52, %p53
      %p55 = scmp.ne.s32.totalorder %s44, %s45
      %p56 = scmp.eq.s32.totalorder %s15, 0
      %p57 = por %p55, %p56
      %p58 = scmp.ne.s32.totalorder %s44, %s45
      %p59 = scmp.eq.s32.totalorder %s16, 1
      %p60 = por %p58, %p59
      %p62 = scmp.ne.s32.totalorder %s45, %s61
      %p63 = scmp.eq.s32.totalorder %s16, 0
      %p64 = por %p62, %p63
      %s65 = ssub.s32 %s19, %s28
      %s66 = ssub.s32 %s18, %s32
      %s67 = sor.u32 %s65, %s66
      %p68 = scmp.eq.s32.totalorder %s67, 0
      %s70 = sadd.s32 %s69, 1
      %s71 = scalar_select %p68, %s69, %s70
      %p74 = pneg %p68
      %p75 = scmp.eq.s32.totalorder %s10, 1
      %p76 = por %p74, %p75
      %p77 = scmp.ne.s32.totalorder %s69, %s72
      %p78 = scmp.eq.s32.totalorder %s10, 0
      %p79 = por %p77, %p78
      %p80 = scmp.ne.s32.totalorder %s69, %s72
      %p81 = scmp.eq.s32.totalorder %s15, 1
      %p82 = por %p80, %p81
      %p83 = scmp.ne.s32.totalorder %s72, %s73
      %p84 = scmp.eq.s32.totalorder %s15, 0
      %p85 = por %p83, %p84
      %p86 = scmp.ne.s32.totalorder %s72, %s73
      %p87 = scmp.eq.s32.totalorder %s16, 1
      %p88 = por %p86, %p87
      %p90 = scmp.ne.s32.totalorder %s73, %s89
      %p91 = scmp.eq.s32.totalorder %s16, 0
      %p92 = por %p90, %p91
      %s93 = ssub.s32 %s18, %s32
      %p94 = scmp.eq.s32.totalorder %s93, 0
      %s96 = sadd.s32 %s95, 1
      %s97 = scalar_select %p94, %s95, %s96
      %p100 = pneg %p94
      %p101 = scmp.eq.s32.totalorder %s10, 1
      %p102 = por %p100, %p101
      %p103 = scmp.ne.s32.totalorder %s95, %s98
      %p104 = scmp.eq.s32.totalorder %s10, 0
      %p105 = por %p103, %p104
      %p106 = scmp.ne.s32.totalorder %s95, %s98
      %p107 = scmp.eq.s32.totalorder %s15, 1
      %p108 = por %p106, %p107
      %p109 = scmp.ne.s32.totalorder %s98, %s99
      %p110 = scmp.eq.s32.totalorder %s15, 0
      %p111 = por %p109, %p110
      %p112 = scmp.ne.s32.totalorder %s98, %s99
      %p113 = scmp.eq.s32.totalorder %s16, 1
      %p114 = por %p112, %p113
      %p116 = scmp.ne.s32.totalorder %s99, %s115
      %p117 = scmp.eq.s32.totalorder %s16, 0
      %p118 = por %p116, %p117
      %s119 = ssub.s32 %s17, %s36
      %s120 = ssub.s32 %s18, %s32
      %s121 = sor.u32 %s119, %s120
      %p122 = scmp.eq.s32.totalorder %s121, 0
      %s124 = sadd.s32 %s123, 1
      %s125 = scalar_select %p122, %s123, %s124
      %p128 = pneg %p122
      %p129 = scmp.eq.s32.totalorder %s10, 1
      %p130 = por %p128, %p129
      %p131 = scmp.ne.s32.totalorder %s123, %s126
      %p132 = scmp.eq.s32.totalorder %s10, 0
      %p133 = por %p131, %p132
      %p134 = scmp.ne.s32.totalorder %s123, %s126
      %p135 = scmp.eq.s32.totalorder %s15, 1
      %p136 = por %p134, %p135
      %p137 = scmp.ne.s32.totalorder %s126, %s127
      %p138 = scmp.eq.s32.totalorder %s15, 0
      %p139 = por %p137, %p138
      %p140 = scmp.ne.s32.totalorder %s126, %s127
      %p141 = scmp.eq.s32.totalorder %s16, 1
      %p142 = por %p140, %p141
      %p144 = scmp.ne.s32.totalorder %s127, %s143
      %p145 = scmp.eq.s32.totalorder %s16, 0
      %p146 = por %p144, %p145
      %p147 = scmp.le.s32.totalorder 1, %s10
      %p148 = scmp.lt.s32.totalorder %s10, 3
      %p149 = pnand %p147, %p148
      %p150 = pneg %p149
      // Predicated region
      $region9: #{decoder_forward.9} parent=5 // pred_check
        _
      $region10: #{decoder_forward.9} parent=5 // pred_check_branch
        %152 = sbr.rel (%p149) target = $region12
      $region11: #{decoder_forward.9} parent=5 // pred_region
        %s153 = ssub.s32 %s10, 1
        // Predicated region
        $region13: #{decoder_forward.9} parent=11 // pred_check
          %p154 = pneg %p85
        $region14: #{decoder_forward.9} parent=11 // pred_check_branch
          %156 = sbr.rel (%p154) target = $region16
        $region15: #{decoder_forward.9} parent=11 // pred_region
          %s157 = smul.u32 4, %s22
          %159 = vsyncadd [#allocation4], 0
          %s160 = sadd.s32 %s21, %s157
          %s161 = smul.addr %s160, 4
          %s162 = scalar_lea.hbm %s1, %s161
          %s163 = sshll.u32 %s162, 4
          %s164 = int_to_ptr.hbm [resolvable:$true] %s163
          %s165 = sshll.u32 [#allocation3], 4
          %s166 = int_to_ptr.vmem [resolvable:$true] %s165
          %171 = dma.hbm_to_vmem [thread:$0]  %s164, 256, %s166, [#allocation4], 64, 64, 4
        $region16: #{decoder_forward.9} parent=11 // pred_fallthru
          _
        // Predicated region
        $region17: #{decoder_forward.9} parent=11 // pred_check
          %p172 = pneg %p111
        $region18: #{decoder_forward.9} parent=11 // pred_check_branch
          %174 = sbr.rel (%p172) target = $region20
        $region19: #{decoder_forward.9} parent=11 // pred_region
          %p175 = scmp.lt.s32.totalorder %s21, 0
          %s176 = scalar_select %p175, %s21, 0
          %s177 = scalar_lea.vmem %s2, %s176
        $region20: #{decoder_forward.9} parent=11 // pred_fallthru
          _
      $region12: #{decoder_forward.9} parent=5 // pred_fallthru
        _
      %p178 = scmp.lt.s32.totalorder %s10, 2
      // Predicated region
      $region21: #{decoder_forward.9} parent=5 // pred_check
        %p179 = pneg %p178
      $region22: #{decoder_forward.9} parent=5 // pred_check_branch
        %181 = sbr.rel (%p179) target = $region24
      $region23: #{decoder_forward.9} parent=5 // pred_region
        // Predicated region
        $region25: #{decoder_forward.9} parent=23 // pred_check
          %p182 = pneg %p51
        $region26: #{decoder_forward.9} parent=23 // pred_check_branch
          %184 = sbr.rel (%p182) target = $region28
        $region27: #{decoder_forward.9} parent=23 // pred_region
          %p185 = scmp.lt.s32.totalorder %s17, 1
          %s186 = scalar_select %p185, %s17, 1
          %p187 = scmp.lt.s32.totalorder %s19, 0
          %s188 = scalar_select %p187, %s19, 0
          %s189 = sadd.s32 %s188, %s186
          %s190 = smul.addr %s189, 8
          %s191 = scalar_lea.vmem %s0, %s190
        $region28: #{decoder_forward.9} parent=23 // pred_fallthru
          _
      $region24: #{decoder_forward.9} parent=5 // pred_fallthru
        _
      %p192 = scmp.le.s32.totalorder 1, %s10
      %p193 = scmp.lt.s32.totalorder %s10, 3
      %p194 = pnand %p192, %p193
      %p195 = pneg %p194
      // Predicated region
      $region29: #{decoder_forward.9} parent=5 // pred_check
        _
      $region30: #{decoder_forward.9} parent=5 // pred_check_branch
        %197 = sbr.rel (%p194) target = $region32
      $region31: #{decoder_forward.9} parent=5 // pred_region
        %s198 = ssub.s32 %s10, 1
        // Predicated region
        $region33: #{decoder_forward.9} parent=31 // pred_check
          %p199 = pneg %p85
        $region34: #{decoder_forward.9} parent=31 // pred_check_branch
          %201 = sbr.rel (%p199) target = $region36
        $region35: #{decoder_forward.9} parent=31 // pred_region
          %203 = dma.done [#allocation4], 256
        $region36: #{decoder_forward.9} parent=31 // pred_fallthru
          _
        %p204 = scmp.lt.s32.totalorder %s20, 1
        %s205 = scalar_select %p204, %s20, 1
        %p206 = scmp.lt.s32.totalorder %s22, 0
        %s207 = scalar_select %p206, %s22, 0
        %s208 = sadd.s32 %s207, %s205
        %s209 = smul.addr %s208, 8
        %s210 = scalar_lea.vmem %s0, %s209
        %p211 = pneg %p57
        %p212 = pneg %p54
        %p213 = pneg %p85
        %p214 = pneg %p82
        %p215 = scmp.lt.s32.totalorder %s21, 0
        %s216 = scalar_select %p215, %s21, 0
        %s217 = scalar_lea.vmem %s2, %s216
        %p218 = pneg %p111
        %p219 = pneg %p108
        %p220 = pneg %p139
        %p221 = pneg %p136
        %p222 = scmp.lt.s32.totalorder %s20, 1
        %s223 = scalar_select %p222, %s20, 1
        %p224 = scmp.lt.s32.totalorder %s21, 0
        %s225 = scalar_select %p224, %s21, 0
        %s226 = sadd.s32 %s225, %s223
        %s227 = smul.addr %s226, 4
        %s228 = scalar_lea.vmem %s3, %s227
        %p229 = scmp.lt.s32.totalorder %s20, 1
        %s230 = scalar_select %p229, %s20, 1
        %p231 = scmp.lt.s32.totalorder %s22, 0
        %s232 = scalar_select %p231, %s22, 0
        %s233 = sadd.s32 %s232, %s230
        %s234 = smul.addr %s233, 8
        %s235 = scalar_lea.vmem %s0, %s234
        %s236 = smul.u32 4, %s22
        %p237 = scmp.lt.s32.totalorder %s21, 0
        %s238 = scalar_select %p237, %s21, 0
        %s239 = scalar_lea.vmem %s2, %s238
        %p240 = scmp.lt.s32.totalorder %s20, 1
        %s241 = scalar_select %p240, %s20, 1
        %p242 = scmp.lt.s32.totalorder %s21, 0
        %s243 = scalar_select %p242, %s21, 0
        %s244 = sadd.s32 %s243, %s241
        %s245 = smul.addr %s244, 4
        %s246 = scalar_lea.vmem %s3, %s245
        %p248 = scmp.eq.s32.totalorder %s22, 0
        // Predicated region
        $region37: #{decoder_forward.9} parent=31 // pred_check
          %p249 = pneg %p248
        $region38: #{decoder_forward.9} parent=31 // pred_check_branch
          %251 = sbr.rel (%p249) target = $region40
        $region39: #{decoder_forward.9} parent=31 // pred_region
          %vm252 = vcmask 785408
          %253 = vst.msk [vmem:[#allocation2] sm:$0xff] %vm252, 0.0
        $region40: #{decoder_forward.9} parent=31 // pred_fallthru
          _
        %v254 = vld [vmem:[#allocation2] sm:$0xff]
        %v255 = vld [vmem:[%s235] sm:$0xff]
        %v256 = vpack.c.bf16 %v255, %v255
        %v257 = vld [vmem:[#allocation3] sm:$0xf]
        %v258 = vld [vmem:[#allocation3 + $0x4] sm:$0xf]
        %v259 = vld [vmem:[#allocation3 + $0x8] sm:$0xf]
        %v260 = vld [vmem:[#allocation3 + $0xc] sm:$0xf]
        %v265 = vunpack.c.l.b16 %v257
        %v266 = vunpack.c.l.b16 %v258
        %v267 = vunpack.c.l.b16 %v259
        %v268 = vunpack.c.l.b16 %v260
        %v269 = vpack.c.b16 %v266, %v265
        %v270 = vpack.c.b16 %v268, %v267
        %vm273 = vcmask 261120
        %v275 = vsel %vm273, %v256, 0
        %277 = vmatpush.bf16.msra.mxu0 0
        %278 = vmatpush.bf16.msra.mxu0 0
        %279 = vmatpush.bf16.msra.mxu0 0
        %280 = vmatpush.bf16.msra.mxu0 0
        %281 = vmatpush.bf16.msra.mxu0 0
        %282 = vmatpush.bf16.msra.mxu0 0
        %283 = vmatpush.bf16.msra.mxu0 %v270
        %284 = vmatpush.bf16.msra.mxu0 %v269
        %285 = vmatmul.bf16.gmra.mxu0 %v275
        %v286 = vpop.f32.mrf.mxu0
        %v287 = vadd.f32 0.0, %v286
        %v288 = vpop.f32.mrf.mxu0
        %289 = vdwg.mxu0
        %v290 = vadd.f32 %v254, %v287
        %vm291 = vcmask 785408
        %292 = vst.msk [vmem:[#allocation2] sm:$0xff] %vm291, %v290
        // Predicated region
        $region41: #{decoder_forward.9} parent=31 // pred_check
          %p293 = pneg %p248
        $region42: #{decoder_forward.9} parent=31 // pred_check_branch
          %295 = sbr.rel (%p293) target = $region44
        $region43: #{decoder_forward.9} parent=31 // pred_region
          %v296 = vld [vmem:[#allocation2] sm:$0xff]
          %v297 = vld [vmem:[%s239] sm:$0x1]
          %v299 = vperm.slane %v297, 0
          %v301 = vadd.f32 %v296, %v299
          %v302 = vpack.c.bf16 %v301, %v301
          %vm303 = vcmask 781312
          %304 = vst.msk [vmem:[%s246] sm:$0xf] %vm303, %v302
        $region44: #{decoder_forward.9} parent=31 // pred_fallthru
          _
        %p305 = scmp.lt.s32.totalorder %s20, 1
        %s306 = scalar_select %p305, %s20, 1
        %p307 = scmp.lt.s32.totalorder %s21, 0
        %s308 = scalar_select %p307, %s21, 0
        %s309 = sadd.s32 %s308, %s306
        %s310 = smul.addr %s309, 4
        %s311 = scalar_lea.vmem %s3, %s310
        // Predicated region
        $region45: #{decoder_forward.9} parent=31 // pred_check
          %p312 = pneg %p136
        $region46: #{decoder_forward.9} parent=31 // pred_check_branch
          %314 = sbr.rel (%p312) target = $region48
        $region47: #{decoder_forward.9} parent=31 // pred_region
          _
        $region48: #{decoder_forward.9} parent=31 // pred_fallthru
          _
      $region32: #{decoder_forward.9} parent=5 // pred_fallthru
        _
      %p315 = scmp.le.s32.totalorder 2, %s10
      // Predicated region
      $region49: #{decoder_forward.9} parent=5 // pred_check
        %p316 = pneg %p315
      $region50: #{decoder_forward.9} parent=5 // pred_check_branch
        %318 = sbr.rel (%p316) target = $region52
      $region51: #{decoder_forward.9} parent=5 // pred_region
        %s319 = ssub.s32 %s10, 2
        // Predicated region
        $region53: #{decoder_forward.9} parent=51 // pred_check
          %p320 = pneg %p142
        $region54: #{decoder_forward.9} parent=51 // pred_check_branch
          %322 = sbr.rel (%p320) target = $region56
        $region55: #{decoder_forward.9} parent=51 // pred_region
          %p323 = scmp.lt.s32.totalorder %s23, 1
          %s324 = scalar_select %p323, %s23, 1
          %p325 = scmp.lt.s32.totalorder %s24, 0
          %s326 = scalar_select %p325, %s24, 0
          %s327 = sadd.s32 %s326, %s324
          %s328 = smul.addr %s327, 4
          %s329 = scalar_lea.vmem %s3, %s328
        $region56: #{decoder_forward.9} parent=51 // pred_fallthru
          _
      $region52: #{decoder_forward.9} parent=5 // pred_fallthru
        _
    $region6: #{decoder_forward.9} parent=1 // loop_footer
      %s14 = sadd.s32 1, %s10
    $region7: #{decoder_forward.9} parent=1 // loop_footer_branch
      %9 = sbr.rel target = $region3
    $region8: #{decoder_forward.9} parent=1 // loop_exit
      _
    %330 = vsyncpa [#allocation4], 1
    %s331 = scalar_lea.sflag [#allocation4], 1
    %332 = vsyncpa %s331, 1

// kernel: decoder_forward.11
$region0: #{decoder_forward.11}
  #allocation0 [shape = 'u32[]', space=smem, size = 0x4, offset = 0x4, fixed_abs, tag = 'smem constant byte address 0x4 - core index']
  #allocation1 [shape = 'u32[72,128]{1,0:T(1,128)}', space=vmem, size = 0x9000, scoped, tag = 'internal scratch']
  #allocation2 [shape = 'f32[8,32]{1,0:T(8,128)}', space=vmem, size = 0x1000, scoped, tag = 'scratch operand']
  %s0 = inlined_call_operand.vmem [shape: bf16[16,32], index: 0, kind: input, shape index: {}]
  %s1 = inlined_call_operand.vmem [shape: bf16[32,32], index: 1, kind: input, shape index: {}]
  %s2 = inlined_call_operand.vmem [shape: f32[1,32], index: 2, kind: input, shape index: {}]
  %s3 = inlined_call_operand.vmem [shape: f32[16,32], index: 3, kind: input, shape index: {}]
  %s4 = inlined_call_operand.vmem [shape: f32[16,32], index: 4, kind: output, shape index: {}]
  %s5 = sld [smem:[#allocation0]]
  $region57: #{decoder_forward.11} parent=0
    _
  %s7 = ssub.s32 1, %s5
  %s8 = scalar_select 0, %s7, %s5
  loop: start=0, step=1, limit=4
  $region2: #{decoder_forward.11} parent=0 // loop_pre_header
    _
  $region3: #{decoder_forward.11} parent=0 // loop_header
    %s10 = sphi 0, %s14
    %p11 = scmp.ge.s32.totalorder %s10, 4
    %s17 = sphi 0, %s36
    %s18 = sphi 0, %s32
    %s19 = sphi 0, %s28
    %s20 = sphi 0, %s17
    %s21 = sphi 0, %s18
    %s22 = sphi 0, %s19
    %s23 = sphi 0, %s20
    %s24 = sphi 0, %s21
    %s25 = sphi 0, %s22
    %s41 = sphi 0, %s43
    %s44 = sphi 0, %s41
    %s45 = sphi 0, %s44
    %s61 = sphi 0, %s45
    %s69 = sphi 0, %s71
    %s72 = sphi 0, %s69
    %s73 = sphi 0, %s72
    %s89 = sphi 0, %s73
    %s95 = sphi 0, %s97
    %s98 = sphi 0, %s95
    %s99 = sphi 0, %s98
    %s115 = sphi 0, %s99
    %s123 = sphi 0, %s125
    %s126 = sphi 0, %s123
    %s127 = sphi 0, %s126
    %s143 = sphi 0, %s127
    %s151 = sphi 0, %s153
    %s154 = sphi 0, %s151
    %s155 = sphi 0, %s154
    %s171 = sphi 0, %s155
  $region4: #{decoder_forward.11} parent=0 // loop_header_branch
    %13 = sbr.rel (%p11) target = $region8
  $region5: #{decoder_forward.11} parent=0 // loop_body
    %s15 = ssub.s32 %s10, 1
    %s16 = ssub.s32 %s10, 2
    %s26 = sadd.s32 1, %s19
    %p27 = scmp.ge.s32.totalorder %s26, 1
    %s28 = scalar_select %p27, 0, %s26
    %s29 = sadd.s32 1, %s18
    %s30 = scalar_select %p27, %s29, %s18
    %p31 = scmp.ge.s32.totalorder %s30, 1
    %s32 = scalar_select %p31, 0, %s30
    %s33 = sadd.s32 1, %s17
    %s34 = scalar_select %p31, %s33, %s17
    %p35 = scmp.ge.s32.totalorder %s34, 2
    %s36 = scalar_select %p35, 0, %s34
    %s37 = ssub.s32 %s17, %s36
    %s38 = ssub.s32 %s19, %s28
    %s39 = sor.u32 %s37, %s38
    %p40 = scmp.eq.s32.totalorder %s39, 0
    %s42 = sadd.s32 %s41, 1
    %s43 = scalar_select %p40, %s41, %s42
    %p46 = pneg %p40
    %p47 = scmp.eq.s32.totalorder %s10, 1
    %p48 = por %p46, %p47
    %p49 = scmp.ne.s32.totalorder %s41, %s44
    %p50 = scmp.eq.s32.totalorder %s10, 0
    %p51 = por %p49, %p50
    %p52 = scmp.ne.s32.totalorder %s41, %s44
    %p53 = scmp.eq.s32.totalorder %s15, 1
    %p54 = por %p52, %p53
    %p55 = scmp.ne.s32.totalorder %s44, %s45
    %p56 = scmp.eq.s32.totalorder %s15, 0
    %p57 = por %p55, %p56
    %p58 = scmp.ne.s32.totalorder %s44, %s45
    %p59 = scmp.eq.s32.totalorder %s16, 1
    %p60 = por %p58, %p59
    %p62 = scmp.ne.s32.totalorder %s45, %s61
    %p63 = scmp.eq.s32.totalorder %s16, 0
    %p64 = por %p62, %p63
    %s65 = ssub.s32 %s19, %s28
    %s66 = ssub.s32 %s18, %s32
    %s67 = sor.u32 %s65, %s66
    %p68 = scmp.eq.s32.totalorder %s67, 0
    %s70 = sadd.s32 %s69, 1
    %s71 = scalar_select %p68, %s69, %s70
    %p74 = pneg %p68
    %p75 = scmp.eq.s32.totalorder %s10, 1
    %p76 = por %p74, %p75
    %p77 = scmp.ne.s32.totalorder %s69, %s72
    %p78 = scmp.eq.s32.totalorder %s10, 0
    %p79 = por %p77, %p78
    %p80 = scmp.ne.s32.totalorder %s69, %s72
    %p81 = scmp.eq.s32.totalorder %s15, 1
    %p82 = por %p80, %p81
    %p83 = scmp.ne.s32.totalorder %s72, %s73
    %p84 = scmp.eq.s32.totalorder %s15, 0
    %p85 = por %p83, %p84
    %p86 = scmp.ne.s32.totalorder %s72, %s73
    %p87 = scmp.eq.s32.totalorder %s16, 1
    %p88 = por %p86, %p87
    %p90 = scmp.ne.s32.totalorder %s73, %s89
    %p91 = scmp.eq.s32.totalorder %s16, 0
    %p92 = por %p90, %p91
    %s93 = ssub.s32 %s18, %s32
    %p94 = scmp.eq.s32.totalorder %s93, 0
    %s96 = sadd.s32 %s95, 1
    %s97 = scalar_select %p94, %s95, %s96
    %p100 = pneg %p94
    %p101 = scmp.eq.s32.totalorder %s10, 1
    %p102 = por %p100, %p101
    %p103 = scmp.ne.s32.totalorder %s95, %s98
    %p104 = scmp.eq.s32.totalorder %s10, 0
    %p105 = por %p103, %p104
    %p106 = scmp.ne.s32.totalorder %s95, %s98
    %p107 = scmp.eq.s32.totalorder %s15, 1
    %p108 = por %p106, %p107
    %p109 = scmp.ne.s32.totalorder %s98, %s99
    %p110 = scmp.eq.s32.totalorder %s15, 0
    %p111 = por %p109, %p110
    %p112 = scmp.ne.s32.totalorder %s98, %s99
    %p113 = scmp.eq.s32.totalorder %s16, 1
    %p114 = por %p112, %p113
    %p116 = scmp.ne.s32.totalorder %s99, %s115
    %p117 = scmp.eq.s32.totalorder %s16, 0
    %p118 = por %p116, %p117
    %s119 = ssub.s32 %s17, %s36
    %s120 = ssub.s32 %s18, %s32
    %s121 = sor.u32 %s119, %s120
    %p122 = scmp.eq.s32.totalorder %s121, 0
    %s124 = sadd.s32 %s123, 1
    %s125 = scalar_select %p122, %s123, %s124
    %p128 = pneg %p122
    %p129 = scmp.eq.s32.totalorder %s10, 1
    %p130 = por %p128, %p129
    %p131 = scmp.ne.s32.totalorder %s123, %s126
    %p132 = scmp.eq.s32.totalorder %s10, 0
    %p133 = por %p131, %p132
    %p134 = scmp.ne.s32.totalorder %s123, %s126
    %p135 = scmp.eq.s32.totalorder %s15, 1
    %p136 = por %p134, %p135
    %p137 = scmp.ne.s32.totalorder %s126, %s127
    %p138 = scmp.eq.s32.totalorder %s15, 0
    %p139 = por %p137, %p138
    %p140 = scmp.ne.s32.totalorder %s126, %s127
    %p141 = scmp.eq.s32.totalorder %s16, 1
    %p142 = por %p140, %p141
    %p144 = scmp.ne.s32.totalorder %s127, %s143
    %p145 = scmp.eq.s32.totalorder %s16, 0
    %p146 = por %p144, %p145
    %s147 = ssub.s32 %s17, %s36
    %s148 = ssub.s32 %s18, %s32
    %s149 = sor.u32 %s147, %s148
    %p150 = scmp.eq.s32.totalorder %s149, 0
    %s152 = sadd.s32 %s151, 1
    %s153 = scalar_select %p150, %s151, %s152
    %p156 = pneg %p150
    %p157 = scmp.eq.s32.totalorder %s10, 1
    %p158 = por %p156, %p157
    %p159 = scmp.ne.s32.totalorder %s151, %s154
    %p160 = scmp.eq.s32.totalorder %s10, 0
    %p161 = por %p159, %p160
    %p162 = scmp.ne.s32.totalorder %s151, %s154
    %p163 = scmp.eq.s32.totalorder %s15, 1
    %p164 = por %p162, %p163
    %p165 = scmp.ne.s32.totalorder %s154, %s155
    %p166 = scmp.eq.s32.totalorder %s15, 0
    %p167 = por %p165, %p166
    %p168 = scmp.ne.s32.totalorder %s154, %s155
    %p169 = scmp.eq.s32.totalorder %s16, 1
    %p170 = por %p168, %p169
    %p172 = scmp.ne.s32.totalorder %s155, %s171
    %p173 = scmp.eq.s32.totalorder %s16, 0
    %p174 = por %p172, %p173
    %p175 = scmp.le.s32.totalorder 1, %s10
    %p176 = scmp.lt.s32.totalorder %s10, 3
    %p177 = pnand %p175, %p176
    %p178 = pneg %p177
    // Predicated region
    $region9: #{decoder_forward.11} parent=5 // pred_check
      _
    $region10: #{decoder_forward.11} parent=5 // pred_check_branch
      %180 = sbr.rel (%p177) target = $region12
    $region11: #{decoder_forward.11} parent=5 // pred_region
      %s181 = ssub.s32 %s10, 1
      // Predicated region
      $region13: #{decoder_forward.11} parent=11 // pred_check
        %p182 = pneg %p85
      $region14: #{decoder_forward.11} parent=11 // pred_check_branch
        %184 = sbr.rel (%p182) target = $region16
      $region15: #{decoder_forward.11} parent=11 // pred_region
        %s185 = smul.u32 4, %s22
        %p186 = scmp.lt.s32.totalorder %s185, 3
        %s187 = scalar_select %p186, %s185, 3
        %p188 = scmp.lt.s32.totalorder %s21, 0
        %s189 = scalar_select %p188, %s21, 0
        %s190 = sadd.s32 %s189, %s187
        %s191 = smul.addr %s190, 4
        %s192 = scalar_lea.vmem %s1, %s191
        %s193 = smul.u32 4, %s22
      $region16: #{decoder_forward.11} parent=11 // pred_fallthru
        _
      // Predicated region
      $region17: #{decoder_forward.11} parent=11 // pred_check
        %p194 = pneg %p111
      $region18: #{decoder_forward.11} parent=11 // pred_check_branch
        %196 = sbr.rel (%p194) target = $region20
      $region19: #{decoder_forward.11} parent=11 // pred_region
        %p197 = scmp.lt.s32.totalorder %s21, 0
        %s198 = scalar_select %p197, %s21, 0
        %s199 = scalar_lea.vmem %s2, %s198
      $region20: #{decoder_forward.11} parent=11 // pred_fallthru
        _
    $region12: #{decoder_forward.11} parent=5 // pred_fallthru
      _
    %p200 = scmp.lt.s32.totalorder %s10, 2
    // Predicated region
    $region21: #{decoder_forward.11} parent=5 // pred_check
      %p201 = pneg %p200
    $region22: #{decoder_forward.11} parent=5 // pred_check_branch
      %203 = sbr.rel (%p201) target = $region24
    $region23: #{decoder_forward.11} parent=5 // pred_region
      // Predicated region
      $region25: #{decoder_forward.11} parent=23 // pred_check
        %p204 = pneg %p51
      $region26: #{decoder_forward.11} parent=23 // pred_check_branch
        %206 = sbr.rel (%p204) target = $region28
      $region27: #{decoder_forward.11} parent=23 // pred_region
        %p207 = scmp.lt.s32.totalorder %s17, 1
        %s208 = scalar_select %p207, %s17, 1
        %p209 = scmp.lt.s32.totalorder %s19, 0
        %s210 = scalar_select %p209, %s19, 0
        %s211 = sadd.s32 %s210, %s208
        %s212 = smul.addr %s211, 4
        %s213 = scalar_lea.vmem %s0, %s212
      $region28: #{decoder_forward.11} parent=23 // pred_fallthru
        _
      // Predicated region
      $region29: #{decoder_forward.11} parent=23 // pred_check
        %p214 = pneg %p133
      $region30: #{decoder_forward.11} parent=23 // pred_check_branch
        %216 = sbr.rel (%p214) target = $region32
      $region31: #{decoder_forward.11} parent=23 // pred_region
        %p217 = scmp.lt.s32.totalorder %s17, 1
        %s218 = scalar_select %p217, %s17, 1
        %p219 = scmp.lt.s32.totalorder %s18, 0
        %s220 = scalar_select %p219, %s18, 0
        %s221 = sadd.s32 %s220, %s218
        %s222 = smul.addr %s221, 8
        %s223 = scalar_lea.vmem %s3, %s222
      $region32: #{decoder_forward.11} parent=23 // pred_fallthru
        _
    $region24: #{decoder_forward.11} parent=5 // pred_fallthru
      _
    %p224 = scmp.le.s32.totalorder 1, %s10
    %p225 = scmp.lt.s32.totalorder %s10, 3
    %p226 = pnand %p224, %p225
    %p227 = pneg %p226
    // Predicated region
    $region33: #{decoder_forward.11} parent=5 // pred_check
      _
    $region34: #{decoder_forward.11} parent=5 // pred_check_branch
      %229 = sbr.rel (%p226) target = $region36
    $region35: #{decoder_forward.11} parent=5 // pred_region
      %s230 = ssub.s32 %s10, 1
      %p231 = scmp.lt.s32.totalorder %s20, 1
      %s232 = scalar_select %p231, %s20, 1
      %p233 = scmp.lt.s32.totalorder %s22, 0
      %s234 = scalar_select %p233, %s22, 0
      %s235 = sadd.s32 %s234, %s232
      %s236 = smul.addr %s235, 4
      %s237 = scalar_lea.vmem %s0, %s236
      %p238 = pneg %p57
      %p239 = pneg %p54
      %s240 = smul.u32 4, %s22
      %p241 = scmp.lt.s32.totalorder %s240, 3
      %s242 = scalar_select %p241, %s240, 3
      %p243 = scmp.lt.s32.totalorder %s21, 0
      %s244 = scalar_select %p243, %s21, 0
      %s245 = sadd.s32 %s244, %s242
      %s246 = smul.addr %s245, 4
      %s247 = scalar_lea.vmem %s1, %s246
      %p248 = pneg %p85
      %p249 = pneg %p82
      %p250 = scmp.lt.s32.totalorder %s21, 0
      %s251 = scalar_select %p250, %s21, 0
      %s252 = scalar_lea.vmem %s2, %s251
      %p253 = pneg %p111
      %p254 = pneg %p108
      %p255 = scmp.lt.s32.totalorder %s20, 1
      %s256 = scalar_select %p255, %s20, 1
      %p257 = scmp.lt.s32.totalorder %s21, 0
      %s258 = scalar_select %p257, %s21, 0
      %s259 = sadd.s32 %s258, %s256
      %s260 = smul.addr %s259, 8
      %s261 = scalar_lea.vmem %s3, %s260
      %p262 = pneg %p139
      %p263 = pneg %p136
      %p264 = pneg %p167
      %p265 = pneg %p164
      %p266 = scmp.lt.s32.totalorder %s20, 1
      %s267 = scalar_select %p266, %s20, 1
      %p268 = scmp.lt.s32.totalorder %s21, 0
      %s269 = scalar_select %p268, %s21, 0
      %s270 = sadd.s32 %s269, %s267
      %s271 = smul.addr %s270, 8
      %s272 = scalar_lea.vmem %s4, %s271
      %p273 = scmp.lt.s32.totalorder %s20, 1
      %s274 = scalar_select %p273, %s20, 1
      %p275 = scmp.lt.s32.totalorder %s22, 0
      %s276 = scalar_select %p275, %s22, 0
      %s277 = sadd.s32 %s276, %s274
      %s278 = smul.addr %s277, 4
      %s279 = scalar_lea.vmem %s0, %s278
      %s280 = smul.u32 4, %s22
      %p281 = scmp.lt.s32.totalorder %s280, 3
      %s282 = scalar_select %p281, %s280, 3
      %p283 = scmp.lt.s32.totalorder %s21, 0
      %s284 = scalar_select %p283, %s21, 0
      %s285 = sadd.s32 %s284, %s282
      %s286 = smul.addr %s285, 4
      %s287 = scalar_lea.vmem %s1, %s286
      %s288 = smul.u32 4, %s22
      %p289 = scmp.lt.s32.totalorder %s21, 0
      %s290 = scalar_select %p289, %s21, 0
      %s291 = scalar_lea.vmem %s2, %s290
      %p292 = scmp.lt.s32.totalorder %s20, 1
      %s293 = scalar_select %p292, %s20, 1
      %p294 = scmp.lt.s32.totalorder %s21, 0
      %s295 = scalar_select %p294, %s21, 0
      %s296 = sadd.s32 %s295, %s293
      %s297 = smul.addr %s296, 8
      %s298 = scalar_lea.vmem %s3, %s297
      %p299 = scmp.lt.s32.totalorder %s20, 1
      %s300 = scalar_select %p299, %s20, 1
      %p301 = scmp.lt.s32.totalorder %s21, 0
      %s302 = scalar_select %p301, %s21, 0
      %s303 = sadd.s32 %s302, %s300
      %s304 = smul.addr %s303, 8
      %s305 = scalar_lea.vmem %s4, %s304
      %p307 = scmp.eq.s32.totalorder %s22, 0
      // Predicated region
      $region37: #{decoder_forward.11} parent=35 // pred_check
        %p308 = pneg %p307
      $region38: #{decoder_forward.11} parent=35 // pred_check_branch
        %310 = sbr.rel (%p308) target = $region40
      $region39: #{decoder_forward.11} parent=35 // pred_region
        %vm311 = vcmask 261120
        %312 = vst.msk [vmem:[#allocation2] sm:$0xff] %vm311, 0.0
      $region40: #{decoder_forward.11} parent=35 // pred_fallthru
        _
      %v313 = vld [vmem:[#allocation2] sm:$0xff]
      %v314 = vld [vmem:[%s279] sm:$0xf]
      %v315 = vld [vmem:[%s287] sm:$0xf]
      %v316 = vld [vmem:[%s287 + $0x4] sm:$0xf]
      %v317 = vld [vmem:[%s287 + $0x8] sm:$0xf]
      %v318 = vld [vmem:[%s287 + $0xc] sm:$0xf]
      %v323 = vunpack.c.l.b16 %v315
      %v324 = vunpack.c.l.b16 %v316
      %v325 = vunpack.c.l.b16 %v317
      %v326 = vunpack.c.l.b16 %v318
      %v327 = vpack.c.b16 %v324, %v323
      %v328 = vpack.c.b16 %v326, %v325
      %vm331 = vcmask 261120
      %v333 = vsel %vm331, %v314, 0
      %335 = vmatpush.bf16.msra.mxu0 0
      %336 = vmatpush.bf16.msra.mxu0 0
      %337 = vmatpush.bf16.msra.mxu0 0
      %338 = vmatpush.bf16.msra.mxu0 0
      %339 = vmatpush.bf16.msra.mxu0 0
      %340 = vmatpush.bf16.msra.mxu0 0
      %341 = vmatpush.bf16.msra.mxu0 %v328
      %342 = vmatpush.bf16.msra.mxu0 %v327
      %343 = vmatmul.bf16.gmra.mxu0 %v333
      %v344 = vpop.f32.mrf.mxu0
      %v345 = vadd.f32 0.0, %v344
      %v346 = vpop.f32.mrf.mxu0
      %347 = vdwg.mxu0
      %v348 = vadd.f32 %v313, %v345
      %349 = vst.msk [vmem:[#allocation2] sm:$0xff] %vm331, %v348
      // Predicated region
      $region41: #{decoder_forward.11} parent=35 // pred_check
        %p350 = pneg %p307
      $region42: #{decoder_forward.11} parent=35 // pred_check_branch
        %352 = sbr.rel (%p350) target = $region44
      $region43: #{decoder_forward.11} parent=35 // pred_region
        %v353 = vld [vmem:[#allocation2] sm:$0xff]
        %v354 = vld [vmem:[%s291] sm:$0x1]
        %v356 = vperm.slane %v354, 0
        %v358 = vadd.f32 %v353, %v356
        %v359 = vld [vmem:[%s298] sm:$0xff]
        %v360 = vadd.f32 %v358, %v359
        %361 = vst.msk [vmem:[%s305] sm:$0xff] %vm331, %v360
      $region44: #{decoder_forward.11} parent=35 // pred_fallthru
        _
      %p362 = scmp.lt.s32.totalorder %s20, 1
      %s363 = scalar_select %p362, %s20, 1
      %p364 = scmp.lt.s32.totalorder %s21, 0
      %s365 = scalar_select %p364, %s21, 0
      %s366 = sadd.s32 %s365, %s363
      %s367 = smul.addr %s366, 8
      %s368 = scalar_lea.vmem %s4, %s367
      // Predicated region
      $region45: #{decoder_forward.11} parent=35 // pred_check
        %p369 = pneg %p164
      $region46: #{decoder_forward.11} parent=35 // pred_check_branch
        %371 = sbr.rel (%p369) target = $region48
      $region47: #{decoder_forward.11} parent=35 // pred_region
        _
      $region48: #{decoder_forward.11} parent=35 // pred_fallthru
        _
    $region36: #{decoder_forward.11} parent=5 // pred_fallthru
      _
    %p372 = scmp.le.s32.totalorder 2, %s10
    // Predicated region
    $region49: #{decoder_forward.11} parent=5 // pred_check
      %p373 = pneg %p372
    $region50: #{decoder_forward.11} parent=5 // pred_check_branch
      %375 = sbr.rel (%p373) target = $region52
    $region51: #{decoder_forward.11} parent=5 // pred_region
      %s376 = ssub.s32 %s10, 2
      // Predicated region
      $region53: #{decoder_forward.11} parent=51 // pred_check
        %p377 = pneg %p170
      $region54: #{decoder_forward.11} parent=51 // pred_check_branch
        %379 = sbr.rel (%p377) target = $region56
      $region55: #{decoder_forward.11} parent=51 // pred_region
        %p380 = scmp.lt.s32.totalorder %s23, 1
        %s381 = scalar_select %p380, %s23, 1
        %p382 = scmp.lt.s32.totalorder %s24, 0
        %s383 = scalar_select %p382, %s24, 0
        %s384 = sadd.s32 %s383, %s381
        %s385 = smul.addr %s384, 8
        %s386 = scalar_lea.vmem %s4, %s385
      $region56: #{decoder_forward.11} parent=51 // pred_fallthru
        _
    $region52: #{decoder_forward.11} parent=5 // pred_fallthru
      _
  $region6: #{decoder_forward.11} parent=0 // loop_footer
    %s14 = sadd.s32 1, %s10
  $region7: #{decoder_forward.11} parent=0 // loop_footer_branch
    %9 = sbr.rel target = $region3
  $region8: #{decoder_forward.11} parent=0 // loop_exit
    _

// kernel: decoder_forward.12
$region0: #{decoder_forward.12}
  #allocation0 [shape = 'u32[]', space=smem, size = 0x4, offset = 0x4, fixed_abs, tag = 'smem constant byte address 0x4 - core index']
  #allocation1 [shape = 'u32[72,128]{1,0:T(1,128)}', space=vmem, size = 0x9000, scoped, tag = 'internal scratch']
  #allocation2 [shape = 'f32[8,32]{1,0:T(8,128)}', space=vmem, size = 0x1000, scoped, tag = 'scratch operand']
  %s0 = inlined_call_operand.vmem [shape: f32[16,32], index: 0, kind: input, shape index: {}]
  %s1 = inlined_call_operand.vmem [shape: bf16[32,32], index: 1, kind: input, shape index: {}]
  %s2 = inlined_call_operand.vmem [shape: f32[1,32], index: 2, kind: input, shape index: {}]
  %s3 = inlined_call_operand.vmem [shape: bf16[16,32], index: 3, kind: output, shape index: {}]
  %s4 = sld [smem:[#allocation0]]
  $region53: #{decoder_forward.12} parent=0
    _
  %s6 = ssub.s32 1, %s4
  %s7 = scalar_select 0, %s6, %s4
  loop: start=0, step=1, limit=4
  $region2: #{decoder_forward.12} parent=0 // loop_pre_header
    _
  $region3: #{decoder_forward.12} parent=0 // loop_header
    %s9 = sphi 0, %s13
    %p10 = scmp.ge.s32.totalorder %s9, 4
    %s16 = sphi 0, %s35
    %s17 = sphi 0, %s31
    %s18 = sphi 0, %s27
    %s19 = sphi 0, %s16
    %s20 = sphi 0, %s17
    %s21 = sphi 0, %s18
    %s22 = sphi 0, %s19
    %s23 = sphi 0, %s20
    %s24 = sphi 0, %s21
    %s40 = sphi 0, %s42
    %s43 = sphi 0, %s40
    %s44 = sphi 0, %s43
    %s60 = sphi 0, %s44
    %s68 = sphi 0, %s70
    %s71 = sphi 0, %s68
    %s72 = sphi 0, %s71
    %s88 = sphi 0, %s72
    %s94 = sphi 0, %s96
    %s97 = sphi 0, %s94
    %s98 = sphi 0, %s97
    %s114 = sphi 0, %s98
    %s122 = sphi 0, %s124
    %s125 = sphi 0, %s122
    %s126 = sphi 0, %s125
    %s142 = sphi 0, %s126
  $region4: #{decoder_forward.12} parent=0 // loop_header_branch
    %12 = sbr.rel (%p10) target = $region8
  $region5: #{decoder_forward.12} parent=0 // loop_body
    %s14 = ssub.s32 %s9, 1
    %s15 = ssub.s32 %s9, 2
    %s25 = sadd.s32 1, %s18
    %p26 = scmp.ge.s32.totalorder %s25, 1
    %s27 = scalar_select %p26, 0, %s25
    %s28 = sadd.s32 1, %s17
    %s29 = scalar_select %p26, %s28, %s17
    %p30 = scmp.ge.s32.totalorder %s29, 1
    %s31 = scalar_select %p30, 0, %s29
    %s32 = sadd.s32 1, %s16
    %s33 = scalar_select %p30, %s32, %s16
    %p34 = scmp.ge.s32.totalorder %s33, 2
    %s35 = scalar_select %p34, 0, %s33
    %s36 = ssub.s32 %s16, %s35
    %s37 = ssub.s32 %s18, %s27
    %s38 = sor.u32 %s36, %s37
    %p39 = scmp.eq.s32.totalorder %s38, 0
    %s41 = sadd.s32 %s40, 1
    %s42 = scalar_select %p39, %s40, %s41
    %p45 = pneg %p39
    %p46 = scmp.eq.s32.totalorder %s9, 1
    %p47 = por %p45, %p46
    %p48 = scmp.ne.s32.totalorder %s40, %s43
    %p49 = scmp.eq.s32.totalorder %s9, 0
    %p50 = por %p48, %p49
    %p51 = scmp.ne.s32.totalorder %s40, %s43
    %p52 = scmp.eq.s32.totalorder %s14, 1
    %p53 = por %p51, %p52
    %p54 = scmp.ne.s32.totalorder %s43, %s44
    %p55 = scmp.eq.s32.totalorder %s14, 0
    %p56 = por %p54, %p55
    %p57 = scmp.ne.s32.totalorder %s43, %s44
    %p58 = scmp.eq.s32.totalorder %s15, 1
    %p59 = por %p57, %p58
    %p61 = scmp.ne.s32.totalorder %s44, %s60
    %p62 = scmp.eq.s32.totalorder %s15, 0
    %p63 = por %p61, %p62
    %s64 = ssub.s32 %s18, %s27
    %s65 = ssub.s32 %s17, %s31
    %s66 = sor.u32 %s64, %s65
    %p67 = scmp.eq.s32.totalorder %s66, 0
    %s69 = sadd.s32 %s68, 1
    %s70 = scalar_select %p67, %s68, %s69
    %p73 = pneg %p67
    %p74 = scmp.eq.s32.totalorder %s9, 1
    %p75 = por %p73, %p74
    %p76 = scmp.ne.s32.totalorder %s68, %s71
    %p77 = scmp.eq.s32.totalorder %s9, 0
    %p78 = por %p76, %p77
    %p79 = scmp.ne.s32.totalorder %s68, %s71
    %p80 = scmp.eq.s32.totalorder %s14, 1
    %p81 = por %p79, %p80
    %p82 = scmp.ne.s32.totalorder %s71, %s72
    %p83 = scmp.eq.s32.totalorder %s14, 0
    %p84 = por %p82, %p83
    %p85 = scmp.ne.s32.totalorder %s71, %s72
    %p86 = scmp.eq.s32.totalorder %s15, 1
    %p87 = por %p85, %p86
    %p89 = scmp.ne.s32.totalorder %s72, %s88
    %p90 = scmp.eq.s32.totalorder %s15, 0
    %p91 = por %p89, %p90
    %s92 = ssub.s32 %s17, %s31
    %p93 = scmp.eq.s32.totalorder %s92, 0
    %s95 = sadd.s32 %s94, 1
    %s96 = scalar_select %p93, %s94, %s95
    %p99 = pneg %p93
    %p100 = scmp.eq.s32.totalorder %s9, 1
    %p101 = por %p99, %p100
    %p102 = scmp.ne.s32.totalorder %s94, %s97
    %p103 = scmp.eq.s32.totalorder %s9, 0
    %p104 = por %p102, %p103
    %p105 = scmp.ne.s32.totalorder %s94, %s97
    %p106 = scmp.eq.s32.totalorder %s14, 1
    %p107 = por %p105, %p106
    %p108 = scmp.ne.s32.totalorder %s97, %s98
    %p109 = scmp.eq.s32.totalorder %s14, 0
    %p110 = por %p108, %p109
    %p111 = scmp.ne.s32.totalorder %s97, %s98
    %p112 = scmp.eq.s32.totalorder %s15, 1
    %p113 = por %p111, %p112
    %p115 = scmp.ne.s32.totalorder %s98, %s114
    %p116 = scmp.eq.s32.totalorder %s15, 0
    %p117 = por %p115, %p116
    %s118 = ssub.s32 %s16, %s35
    %s119 = ssub.s32 %s17, %s31
    %s120 = sor.u32 %s118, %s119
    %p121 = scmp.eq.s32.totalorder %s120, 0
    %s123 = sadd.s32 %s122, 1
    %s124 = scalar_select %p121, %s122, %s123
    %p127 = pneg %p121
    %p128 = scmp.eq.s32.totalorder %s9, 1
    %p129 = por %p127, %p128
    %p130 = scmp.ne.s32.totalorder %s122, %s125
    %p131 = scmp.eq.s32.totalorder %s9, 0
    %p132 = por %p130, %p131
    %p133 = scmp.ne.s32.totalorder %s122, %s125
    %p134 = scmp.eq.s32.totalorder %s14, 1
    %p135 = por %p133, %p134
    %p136 = scmp.ne.s32.totalorder %s125, %s126
    %p137 = scmp.eq.s32.totalorder %s14, 0
    %p138 = por %p136, %p137
    %p139 = scmp.ne.s32.totalorder %s125, %s126
    %p140 = scmp.eq.s32.totalorder %s15, 1
    %p141 = por %p139, %p140
    %p143 = scmp.ne.s32.totalorder %s126, %s142
    %p144 = scmp.eq.s32.totalorder %s15, 0
    %p145 = por %p143, %p144
    %p146 = scmp.le.s32.totalorder 1, %s9
    %p147 = scmp.lt.s32.totalorder %s9, 3
    %p148 = pnand %p146, %p147
    %p149 = pneg %p148
    // Predicated region
    $region9: #{decoder_forward.12} parent=5 // pred_check
      _
    $region10: #{decoder_forward.12} parent=5 // pred_check_branch
      %151 = sbr.rel (%p148) target = $region12
    $region11: #{decoder_forward.12} parent=5 // pred_region
      %s152 = ssub.s32 %s9, 1
      // Predicated region
      $region13: #{decoder_forward.12} parent=11 // pred_check
        %p153 = pneg %p84
      $region14: #{decoder_forward.12} parent=11 // pred_check_branch
        %155 = sbr.rel (%p153) target = $region16
      $region15: #{decoder_forward.12} parent=11 // pred_region
        %s156 = smul.u32 4, %s21
        %p157 = scmp.lt.s32.totalorder %s156, 3
        %s158 = scalar_select %p157, %s156, 3
        %p159 = scmp.lt.s32.totalorder %s20, 0
        %s160 = scalar_select %p159, %s20, 0
        %s161 = sadd.s32 %s160, %s158
        %s162 = smul.addr %s161, 4
        %s163 = scalar_lea.vmem %s1, %s162
        %s164 = smul.u32 4, %s21
      $region16: #{decoder_forward.12} parent=11 // pred_fallthru
        _
      // Predicated region
      $region17: #{decoder_forward.12} parent=11 // pred_check
        %p165 = pneg %p110
      $region18: #{decoder_forward.12} parent=11 // pred_check_branch
        %167 = sbr.rel (%p165) target = $region20
      $region19: #{decoder_forward.12} parent=11 // pred_region
        %p168 = scmp.lt.s32.totalorder %s20, 0
        %s169 = scalar_select %p168, %s20, 0
        %s170 = scalar_lea.vmem %s2, %s169
      $region20: #{decoder_forward.12} parent=11 // pred_fallthru
        _
    $region12: #{decoder_forward.12} parent=5 // pred_fallthru
      _
    %p171 = scmp.lt.s32.totalorder %s9, 2
    // Predicated region
    $region21: #{decoder_forward.12} parent=5 // pred_check
      %p172 = pneg %p171
    $region22: #{decoder_forward.12} parent=5 // pred_check_branch
      %174 = sbr.rel (%p172) target = $region24
    $region23: #{decoder_forward.12} parent=5 // pred_region
      // Predicated region
      $region25: #{decoder_forward.12} parent=23 // pred_check
        %p175 = pneg %p50
      $region26: #{decoder_forward.12} parent=23 // pred_check_branch
        %177 = sbr.rel (%p175) target = $region28
      $region27: #{decoder_forward.12} parent=23 // pred_region
        %p178 = scmp.lt.s32.totalorder %s16, 1
        %s179 = scalar_select %p178, %s16, 1
        %p180 = scmp.lt.s32.totalorder %s18, 0
        %s181 = scalar_select %p180, %s18, 0
        %s182 = sadd.s32 %s181, %s179
        %s183 = smul.addr %s182, 8
        %s184 = scalar_lea.vmem %s0, %s183
      $region28: #{decoder_forward.12} parent=23 // pred_fallthru
        _
    $region24: #{decoder_forward.12} parent=5 // pred_fallthru
      _
    %p185 = scmp.le.s32.totalorder 1, %s9
    %p186 = scmp.lt.s32.totalorder %s9, 3
    %p187 = pnand %p185, %p186
    %p188 = pneg %p187
    // Predicated region
    $region29: #{decoder_forward.12} parent=5 // pred_check
      _
    $region30: #{decoder_forward.12} parent=5 // pred_check_branch
      %190 = sbr.rel (%p187) target = $region32
    $region31: #{decoder_forward.12} parent=5 // pred_region
      %s191 = ssub.s32 %s9, 1
      %p192 = scmp.lt.s32.totalorder %s19, 1
      %s193 = scalar_select %p192, %s19, 1
      %p194 = scmp.lt.s32.totalorder %s21, 0
      %s195 = scalar_select %p194, %s21, 0
      %s196 = sadd.s32 %s195, %s193
      %s197 = smul.addr %s196, 8
      %s198 = scalar_lea.vmem %s0, %s197
      %p199 = pneg %p56
      %p200 = pneg %p53
      %s201 = smul.u32 4, %s21
      %p202 = scmp.lt.s32.totalorder %s201, 3
      %s203 = scalar_select %p202, %s201, 3
      %p204 = scmp.lt.s32.totalorder %s20, 0
      %s205 = scalar_select %p204, %s20, 0
      %s206 = sadd.s32 %s205, %s203
      %s207 = smul.addr %s206, 4
      %s208 = scalar_lea.vmem %s1, %s207
      %p209 = pneg %p84
      %p210 = pneg %p81
      %p211 = scmp.lt.s32.totalorder %s20, 0
      %s212 = scalar_select %p211, %s20, 0
      %s213 = scalar_lea.vmem %s2, %s212
      %p214 = pneg %p110
      %p215 = pneg %p107
      %p216 = pneg %p138
      %p217 = pneg %p135
      %p218 = scmp.lt.s32.totalorder %s19, 1
      %s219 = scalar_select %p218, %s19, 1
      %p220 = scmp.lt.s32.totalorder %s20, 0
      %s221 = scalar_select %p220, %s20, 0
      %s222 = sadd.s32 %s221, %s219
      %s223 = smul.addr %s222, 4
      %s224 = scalar_lea.vmem %s3, %s223
      %p225 = scmp.lt.s32.totalorder %s19, 1
      %s226 = scalar_select %p225, %s19, 1
      %p227 = scmp.lt.s32.totalorder %s21, 0
      %s228 = scalar_select %p227, %s21, 0
      %s229 = sadd.s32 %s228, %s226
      %s230 = smul.addr %s229, 8
      %s231 = scalar_lea.vmem %s0, %s230
      %s232 = smul.u32 4, %s21
      %p233 = scmp.lt.s32.totalorder %s232, 3
      %s234 = scalar_select %p233, %s232, 3
      %p235 = scmp.lt.s32.totalorder %s20, 0
      %s236 = scalar_select %p235, %s20, 0
      %s237 = sadd.s32 %s236, %s234
      %s238 = smul.addr %s237, 4
      %s239 = scalar_lea.vmem %s1, %s238
      %s240 = smul.u32 4, %s21
      %p241 = scmp.lt.s32.totalorder %s20, 0
      %s242 = scalar_select %p241, %s20, 0
      %s243 = scalar_lea.vmem %s2, %s242
      %p244 = scmp.lt.s32.totalorder %s19, 1
      %s245 = scalar_select %p244, %s19, 1
      %p246 = scmp.lt.s32.totalorder %s20, 0
      %s247 = scalar_select %p246, %s20, 0
      %s248 = sadd.s32 %s247, %s245
      %s249 = smul.addr %s248, 4
      %s250 = scalar_lea.vmem %s3, %s249
      %p252 = scmp.eq.s32.totalorder %s21, 0
      // Predicated region
      $region33: #{decoder_forward.12} parent=31 // pred_check
        %p253 = pneg %p252
      $region34: #{decoder_forward.12} parent=31 // pred_check_branch
        %255 = sbr.rel (%p253) target = $region36
      $region35: #{decoder_forward.12} parent=31 // pred_region
        %vm256 = vcmask 261120
        %257 = vst.msk [vmem:[#allocation2] sm:$0xff] %vm256, 0.0
      $region36: #{decoder_forward.12} parent=31 // pred_fallthru
        _
      %v258 = vld [vmem:[#allocation2] sm:$0xff]
      %v259 = vld [vmem:[%s231] sm:$0xff]
      %v260 = vpack.c.bf16 %v259, %v259
      %v261 = vld [vmem:[%s239] sm:$0xf]
      %v262 = vld [vmem:[%s239 + $0x4] sm:$0xf]
      %v263 = vld [vmem:[%s239 + $0x8] sm:$0xf]
      %v264 = vld [vmem:[%s239 + $0xc] sm:$0xf]
      %v269 = vunpack.c.l.b16 %v261
      %v270 = vunpack.c.l.b16 %v262
      %v271 = vunpack.c.l.b16 %v263
      %v272 = vunpack.c.l.b16 %v264
      %v273 = vpack.c.b16 %v270, %v269
      %v274 = vpack.c.b16 %v272, %v271
      %vm277 = vcmask 261120
      %v279 = vsel %vm277, %v260, 0
      %281 = vmatpush.bf16.msra.mxu0 0
      %282 = vmatpush.bf16.msra.mxu0 0
      %283 = vmatpush.bf16.msra.mxu0 0
      %284 = vmatpush.bf16.msra.mxu0 0
      %285 = vmatpush.bf16.msra.mxu0 0
      %286 = vmatpush.bf16.msra.mxu0 0
      %287 = vmatpush.bf16.msra.mxu0 %v274
      %288 = vmatpush.bf16.msra.mxu0 %v273
      %289 = vmatmul.bf16.gmra.mxu0 %v279
      %v290 = vpop.f32.mrf.mxu0
      %v291 = vadd.f32 0.0, %v290
      %v292 = vpop.f32.mrf.mxu0
      %293 = vdwg.mxu0
      %v294 = vadd.f32 %v258, %v291
      %295 = vst.msk [vmem:[#allocation2] sm:$0xff] %vm277, %v294
      // Predicated region
      $region37: #{decoder_forward.12} parent=31 // pred_check
        %p296 = pneg %p252
      $region38: #{decoder_forward.12} parent=31 // pred_check_branch
        %298 = sbr.rel (%p296) target = $region40
      $region39: #{decoder_forward.12} parent=31 // pred_region
        %v299 = vld [vmem:[#allocation2] sm:$0xff]
        %v300 = vld [vmem:[%s243] sm:$0x1]
        %v302 = vperm.slane %v300, 0
        %v304 = vadd.f32 %v299, %v302
        %v305 = vpack.c.bf16 %v304, %v304
        %vm306 = vcmask 257024
        %307 = vst.msk [vmem:[%s250] sm:$0xf] %vm306, %v305
      $region40: #{decoder_forward.12} parent=31 // pred_fallthru
        _
      %p308 = scmp.lt.s32.totalorder %s19, 1
      %s309 = scalar_select %p308, %s19, 1
      %p310 = scmp.lt.s32.totalorder %s20, 0
      %s311 = scalar_select %p310, %s20, 0
      %s312 = sadd.s32 %s311, %s309
      %s313 = smul.addr %s312, 4
      %s314 = scalar_lea.vmem %s3, %s313
      // Predicated region
      $region41: #{decoder_forward.12} parent=31 // pred_check
        %p315 = pneg %p135
      $region42: #{decoder_forward.12} parent=31 // pred_check_branch
        %317 = sbr.rel (%p315) target = $region44
      $region43: #{decoder_forward.12} parent=31 // pred_region
        _
      $region44: #{decoder_forward.12} parent=31 // pred_fallthru
        _
    $region32: #{decoder_forward.12} parent=5 // pred_fallthru
      _
    %p318 = scmp.le.s32.totalorder 2, %s9
    // Predicated region
    $region45: #{decoder_forward.12} parent=5 // pred_check
      %p319 = pneg %p318
    $region46: #{decoder_forward.12} parent=5 // pred_check_branch
      %321 = sbr.rel (%p319) target = $region48
    $region47: #{decoder_forward.12} parent=5 // pred_region
      %s322 = ssub.s32 %s9, 2
      // Predicated region
      $region49: #{decoder_forward.12} parent=47 // pred_check
        %p323 = pneg %p141
      $region50: #{decoder_forward.12} parent=47 // pred_check_branch
        %325 = sbr.rel (%p323) target = $region52
      $region51: #{decoder_forward.12} parent=47 // pred_region
        %p326 = scmp.lt.s32.totalorder %s22, 1
        %s327 = scalar_select %p326, %s22, 1
        %p328 = scmp.lt.s32.totalorder %s23, 0
        %s329 = scalar_select %p328, %s23, 0
        %s330 = sadd.s32 %s329, %s327
        %s331 = smul.addr %s330, 4
        %s332 = scalar_lea.vmem %s3, %s331
      $region52: #{decoder_forward.12} parent=47 // pred_fallthru
        _
    $region48: #{decoder_forward.12} parent=5 // pred_fallthru
      _
  $region6: #{decoder_forward.12} parent=0 // loop_footer
    %s13 = sadd.s32 1, %s9
  $region7: #{decoder_forward.12} parent=0 // loop_footer_branch
    %8 = sbr.rel target = $region3
  $region8: #{decoder_forward.12} parent=0 // loop_exit
    _

// kernel: decoder_forward.10
$region0: #{decoder_forward.10}
  #allocation0 [shape = 'u32[]', space=smem, size = 0x4, offset = 0x4, fixed_abs, tag = 'smem constant byte address 0x4 - core index']
  #allocation1 [shape = 'u32[72,128]{1,0:T(1,128)}', space=vmem, size = 0x9000, scoped, tag = 'internal scratch']
  #allocation2 [shape = 'f32[8,1]{1,0:T(8,128)}', space=vmem, size = 0x1000, scoped, tag = 'scratch operand']
  #allocation3 [shape = 'f32[8,1]{1,0:T(8,128)}', space=vmem, size = 0x1000, scoped, tag = 'scratch operand']
  #allocation4 [shape = 'f32[8,8]{1,0:T(8,128)}', space=vmem, size = 0x1000, scoped, tag = 'scratch operand']
  %s0 = inlined_call_operand.vmem [shape: f32[1,8,8], index: 0, kind: input, shape index: {}]
  %s1 = inlined_call_operand.vmem [shape: bf16[8,8,8], index: 1, kind: input, shape index: {}]
  %s2 = inlined_call_operand.vmem [shape: bf16[8,8,8], index: 2, kind: input, shape index: {}]
  %s3 = inlined_call_operand.vmem [shape: bf16[8,8,8], index: 3, kind: input, shape index: {}]
  %s4 = inlined_call_operand.vmem [shape: bf16[8,8,8], index: 4, kind: output, shape index: {}]
  %s5 = sld [smem:[#allocation0]]
  $region57: #{decoder_forward.10} parent=0
    _
  %s7 = ssub.s32 1, %s5
  %s8 = scalar_select 0, %s7, %s5
  loop: start=0, step=1, limit=10
  $region2: #{decoder_forward.10} parent=0 // loop_pre_header
    _
  $region3: #{decoder_forward.10} parent=0 // loop_header
    %s10 = sphi 0, %s14
    %p11 = scmp.ge.s32.totalorder %s10, 10
    %s17 = sphi 0, %s36
    %s18 = sphi 0, %s32
    %s19 = sphi 0, %s28
    %s20 = sphi 0, %s17
    %s21 = sphi 0, %s18
    %s22 = sphi 0, %s19
    %s23 = sphi 0, %s20
    %s24 = sphi 0, %s21
    %s25 = sphi 0, %s22
    %s41 = sphi 0, %s43
    %s44 = sphi 0, %s41
    %s45 = sphi 0, %s44
    %s61 = sphi 0, %s45
    %s69 = sphi 0, %s71
    %s72 = sphi 0, %s69
    %s73 = sphi 0, %s72
    %s89 = sphi 0, %s73
    %s97 = sphi 0, %s99
    %s100 = sphi 0, %s97
    %s101 = sphi 0, %s100
    %s117 = sphi 0, %s101
    %s125 = sphi 0, %s127
    %s128 = sphi 0, %s125
    %s129 = sphi 0, %s128
    %s145 = sphi 0, %s129
    %s153 = sphi 0, %s155
    %s156 = sphi 0, %s153
    %s157 = sphi 0, %s156
    %s173 = sphi 0, %s157
  $region4: #{decoder_forward.10} parent=0 // loop_header_branch
    %13 = sbr.rel (%p11) target = $region8
  $region5: #{decoder_forward.10} parent=0 // loop_body
    %s15 = ssub.s32 %s10, 1
    %s16 = ssub.s32 %s10, 2
    %s26 = sadd.s32 1, %s19
    %p27 = scmp.ge.s32.totalorder %s26, 1
    %s28 = scalar_select %p27, 0, %s26
    %s29 = sadd.s32 1, %s18
    %s30 = scalar_select %p27, %s29, %s18
    %p31 = scmp.ge.s32.totalorder %s30, 1
    %s32 = scalar_select %p31, 0, %s30
    %s33 = sadd.s32 1, %s17
    %s34 = scalar_select %p31, %s33, %s17
    %p35 = scmp.ge.s32.totalorder %s34, 8
    %s36 = scalar_select %p35, 0, %s34
    %s37 = ssub.s32 %s18, %s32
    %s38 = ssub.s32 %s19, %s28
    %s39 = sor.u32 %s37, %s38
    %p40 = scmp.eq.s32.totalorder %s39, 0
    %s42 = sadd.s32 %s41, 1
    %s43 = scalar_select %p40, %s41, %s42
    %p46 = pneg %p40
    %p47 = scmp.eq.s32.totalorder %s10, 7
    %p48 = por %p46, %p47
    %p49 = scmp.ne.s32.totalorder %s41, %s44
    %p50 = scmp.eq.s32.totalorder %s10, 0
    %p51 = por %p49, %p50
    %p52 = scmp.ne.s32.totalorder %s41, %s44
    %p53 = scmp.eq.s32.totalorder %s15, 7
    %p54 = por %p52, %p53
    %p55 = scmp.ne.s32.totalorder %s44, %s45
    %p56 = scmp.eq.s32.totalorder %s15, 0
    %p57 = por %p55, %p56
    %p58 = scmp.ne.s32.totalorder %s44, %s45
    %p59 = scmp.eq.s32.totalorder %s16, 7
    %p60 = por %p58, %p59
    %p62 = scmp.ne.s32.totalorder %s45, %s61
    %p63 = scmp.eq.s32.totalorder %s16, 0
    %p64 = por %p62, %p63
    %s65 = ssub.s32 %s17, %s36
    %s66 = ssub.s32 %s18, %s32
    %s67 = sor.u32 %s65, %s66
    %p68 = scmp.eq.s32.totalorder %s67, 0
    %s70 = sadd.s32 %s69, 1
    %s71 = scalar_select %p68, %s69, %s70
    %p74 = pneg %p68
    %p75 = scmp.eq.s32.totalorder %s10, 7
    %p76 = por %p74, %p75
    %p77 = scmp.ne.s32.totalorder %s69, %s72
    %p78 = scmp.eq.s32.totalorder %s10, 0
    %p79 = por %p77, %p78
    %p80 = scmp.ne.s32.totalorder %s69, %s72
    %p81 = scmp.eq.s32.totalorder %s15, 7
    %p82 = por %p80, %p81
    %p83 = scmp.ne.s32.totalorder %s72, %s73
    %p84 = scmp.eq.s32.totalorder %s15, 0
    %p85 = por %p83, %p84
    %p86 = scmp.ne.s32.totalorder %s72, %s73
    %p87 = scmp.eq.s32.totalorder %s16, 7
    %p88 = por %p86, %p87
    %p90 = scmp.ne.s32.totalorder %s73, %s89
    %p91 = scmp.eq.s32.totalorder %s16, 0
    %p92 = por %p90, %p91
    %s93 = ssub.s32 %s17, %s36
    %s94 = ssub.s32 %s19, %s28
    %s95 = sor.u32 %s93, %s94
    %p96 = scmp.eq.s32.totalorder %s95, 0
    %s98 = sadd.s32 %s97, 1
    %s99 = scalar_select %p96, %s97, %s98
    %p102 = pneg %p96
    %p103 = scmp.eq.s32.totalorder %s10, 7
    %p104 = por %p102, %p103
    %p105 = scmp.ne.s32.totalorder %s97, %s100
    %p106 = scmp.eq.s32.totalorder %s10, 0
    %p107 = por %p105, %p106
    %p108 = scmp.ne.s32.totalorder %s97, %s100
    %p109 = scmp.eq.s32.totalorder %s15, 7
    %p110 = por %p108, %p109
    %p111 = scmp.ne.s32.totalorder %s100, %s101
    %p112 = scmp.eq.s32.totalorder %s15, 0
    %p113 = por %p111, %p112
    %p114 = scmp.ne.s32.totalorder %s100, %s101
    %p115 = scmp.eq.s32.totalorder %s16, 7
    %p116 = por %p114, %p115
    %p118 = scmp.ne.s32.totalorder %s101, %s117
    %p119 = scmp.eq.s32.totalorder %s16, 0
    %p120 = por %p118, %p119
    %s121 = ssub.s32 %s17, %s36
    %s122 = ssub.s32 %s19, %s28
    %s123 = sor.u32 %s121, %s122
    %p124 = scmp.eq.s32.totalorder %s123, 0
    %s126 = sadd.s32 %s125, 1
    %s127 = scalar_select %p124, %s125, %s126
    %p130 = pneg %p124
    %p131 = scmp.eq.s32.totalorder %s10, 7
    %p132 = por %p130, %p131
    %p133 = scmp.ne.s32.totalorder %s125, %s128
    %p134 = scmp.eq.s32.totalorder %s10, 0
    %p135 = por %p133, %p134
    %p136 = scmp.ne.s32.totalorder %s125, %s128
    %p137 = scmp.eq.s32.totalorder %s15, 7
    %p138 = por %p136, %p137
    %p139 = scmp.ne.s32.totalorder %s128, %s129
    %p140 = scmp.eq.s32.totalorder %s15, 0
    %p141 = por %p139, %p140
    %p142 = scmp.ne.s32.totalorder %s128, %s129
    %p143 = scmp.eq.s32.totalorder %s16, 7
    %p144 = por %p142, %p143
    %p146 = scmp.ne.s32.totalorder %s129, %s145
    %p147 = scmp.eq.s32.totalorder %s16, 0
    %p148 = por %p146, %p147
    %s149 = ssub.s32 %s17, %s36
    %s150 = ssub.s32 %s18, %s32
    %s151 = sor.u32 %s149, %s150
    %p152 = scmp.eq.s32.totalorder %s151, 0
    %s154 = sadd.s32 %s153, 1
    %s155 = scalar_select %p152, %s153, %s154
    %p158 = pneg %p152
    %p159 = scmp.eq.s32.totalorder %s10, 7
    %p160 = por %p158, %p159
    %p161 = scmp.ne.s32.totalorder %s153, %s156
    %p162 = scmp.eq.s32.totalorder %s10, 0
    %p163 = por %p161, %p162
    %p164 = scmp.ne.s32.totalorder %s153, %s156
    %p165 = scmp.eq.s32.totalorder %s15, 7
    %p166 = por %p164, %p165
    %p167 = scmp.ne.s32.totalorder %s156, %s157
    %p168 = scmp.eq.s32.totalorder %s15, 0
    %p169 = por %p167, %p168
    %p170 = scmp.ne.s32.totalorder %s156, %s157
    %p171 = scmp.eq.s32.totalorder %s16, 7
    %p172 = por %p170, %p171
    %p174 = scmp.ne.s32.totalorder %s157, %s173
    %p175 = scmp.eq.s32.totalorder %s16, 0
    %p176 = por %p174, %p175
    %p177 = scmp.le.s32.totalorder 1, %s10
    %p178 = scmp.lt.s32.totalorder %s10, 9
    %p179 = pnand %p177, %p178
    %p180 = pneg %p179
    // Predicated region
    $region9: #{decoder_forward.10} parent=5 // pred_check
      _
    $region10: #{decoder_forward.10} parent=5 // pred_check_branch
      %182 = sbr.rel (%p179) target = $region12
    $region11: #{decoder_forward.10} parent=5 // pred_region
      %s183 = ssub.s32 %s10, 1
      // Predicated region
      $region13: #{decoder_forward.10} parent=11 // pred_check
        %p184 = pneg %p57
      $region14: #{decoder_forward.10} parent=11 // pred_check_branch
        %186 = sbr.rel (%p184) target = $region16
      $region15: #{decoder_forward.10} parent=11 // pred_region
        %p187 = scmp.lt.s32.totalorder %s21, 0
        %s188 = scalar_select %p187, %s21, 0
        %p189 = scmp.lt.s32.totalorder %s22, 0
        %s190 = scalar_select %p189, %s22, 0
        %s191 = sadd.s32 %s190, %s188
        %s192 = smul.addr %s191, 8
        %s193 = scalar_lea.vmem %s0, %s192
      $region16: #{decoder_forward.10} parent=11 // pred_fallthru
        _
    $region12: #{decoder_forward.10} parent=5 // pred_fallthru
      _
    %p194 = scmp.lt.s32.totalorder %s10, 8
    // Predicated region
    $region17: #{decoder_forward.10} parent=5 // pred_check
      %p195 = pneg %p194
    $region18: #{decoder_forward.10} parent=5 // pred_check_branch
      %197 = sbr.rel (%p195) target = $region20
    $region19: #{decoder_forward.10} parent=5 // pred_region
      // Predicated region
      $region21: #{decoder_forward.10} parent=19 // pred_check
        %p198 = pneg %p79
      $region22: #{decoder_forward.10} parent=19 // pred_check_branch
        %200 = sbr.rel (%p198) target = $region24
      $region23: #{decoder_forward.10} parent=19 // pred_region
        %p201 = scmp.lt.s32.totalorder %s17, 7
        %s202 = scalar_select %p201, %s17, 7
        %p203 = scmp.lt.s32.totalorder %s18, 0
        %s204 = scalar_select %p203, %s18, 0
        %s205 = sadd.s32 %s204, %s202
        %s206 = smul.addr %s205, 4
        %s207 = scalar_lea.vmem %s1, %s206
      $region24: #{decoder_forward.10} parent=19 // pred_fallthru
        _
      // Predicated region
      $region25: #{decoder_forward.10} parent=19 // pred_check
        %p208 = pneg %p107
      $region26: #{decoder_forward.10} parent=19 // pred_check_branch
        %210 = sbr.rel (%p208) target = $region28
      $region27: #{decoder_forward.10} parent=19 // pred_region
        %p211 = scmp.lt.s32.totalorder %s17, 7
        %s212 = scalar_select %p211, %s17, 7
        %p213 = scmp.lt.s32.totalorder %s19, 0
        %s214 = scalar_select %p213, %s19, 0
        %s215 = sadd.s32 %s214, %s212
        %s216 = smul.addr %s215, 4
        %s217 = scalar_lea.vmem %s2, %s216
      $region28: #{decoder_forward.10} parent=19 // pred_fallthru
        _
      // Predicated region
      $region29: #{decoder_forward.10} parent=19 // pred_check
        %p218 = pneg %p135
      $region30: #{decoder_forward.10} parent=19 // pred_check_branch
        %220 = sbr.rel (%p218) target = $region32
      $region31: #{decoder_forward.10} parent=19 // pred_region
        %p221 = scmp.lt.s32.totalorder %s17, 7
        %s222 = scalar_select %p221, %s17, 7
        %p223 = scmp.lt.s32.totalorder %s19, 0
        %s224 = scalar_select %p223, %s19, 0
        %s225 = sadd.s32 %s224, %s222
        %s226 = smul.addr %s225, 4
        %s227 = scalar_lea.vmem %s3, %s226
      $region32: #{decoder_forward.10} parent=19 // pred_fallthru
        _
    $region20: #{decoder_forward.10} parent=5 // pred_fallthru
      _
    %p228 = scmp.le.s32.totalorder 1, %s10
    %p229 = scmp.lt.s32.totalorder %s10, 9
    %p230 = pnand %p228, %p229
    %p231 = pneg %p230
    // Predicated region
    $region33: #{decoder_forward.10} parent=5 // pred_check
      _
    $region34: #{decoder_forward.10} parent=5 // pred_check_branch
      %233 = sbr.rel (%p230) target = $region36
    $region35: #{decoder_forward.10} parent=5 // pred_region
      %s234 = ssub.s32 %s10, 1
      %p235 = scmp.lt.s32.totalorder %s21, 0
      %s236 = scalar_select %p235, %s21, 0
      %p237 = scmp.lt.s32.totalorder %s22, 0
      %s238 = scalar_select %p237, %s22, 0
      %s239 = sadd.s32 %s238, %s236
      %s240 = smul.addr %s239, 8
      %s241 = scalar_lea.vmem %s0, %s240
      %p242 = pneg %p57
      %p243 = pneg %p54
      %p244 = scmp.lt.s32.totalorder %s20, 7
      %s245 = scalar_select %p244, %s20, 7
      %p246 = scmp.lt.s32.totalorder %s21, 0
      %s247 = scalar_select %p246, %s21, 0
      %s248 = sadd.s32 %s247, %s245
      %s249 = smul.addr %s248, 4
      %s250 = scalar_lea.vmem %s1, %s249
      %p251 = pneg %p85
      %p252 = pneg %p82
      %p253 = scmp.lt.s32.totalorder %s20, 7
      %s254 = scalar_select %p253, %s20, 7
      %p255 = scmp.lt.s32.totalorder %s22, 0
      %s256 = scalar_select %p255, %s22, 0
      %s257 = sadd.s32 %s256, %s254
      %s258 = smul.addr %s257, 4
      %s259 = scalar_lea.vmem %s2, %s258
      %p260 = pneg %p113
      %p261 = pneg %p110
      %p262 = scmp.lt.s32.totalorder %s20, 7
      %s263 = scalar_select %p262, %s20, 7
      %p264 = scmp.lt.s32.totalorder %s22, 0
      %s265 = scalar_select %p264, %s22, 0
      %s266 = sadd.s32 %s265, %s263
      %s267 = smul.addr %s266, 4
      %s268 = scalar_lea.vmem %s3, %s267
      %p269 = pneg %p141
      %p270 = pneg %p138
      %p271 = pneg %p169
      %p272 = pneg %p166
      %p273 = scmp.lt.s32.totalorder %s20, 7
      %s274 = scalar_select %p273, %s20, 7
      %p275 = scmp.lt.s32.totalorder %s21, 0
      %s276 = scalar_select %p275, %s21, 0
      %s277 = sadd.s32 %s276, %s274
      %s278 = smul.addr %s277, 4
      %s279 = scalar_lea.vmem %s4, %s278
      %p280 = scmp.lt.s32.totalorder %s21, 0
      %s281 = scalar_select %p280, %s21, 0
      %p282 = scmp.lt.s32.totalorder %s22, 0
      %s283 = scalar_select %p282, %s22, 0
      %s284 = sadd.s32 %s283, %s281
      %s285 = smul.addr %s284, 8
      %s286 = scalar_lea.vmem %s0, %s285
      %p287 = scmp.lt.s32.totalorder %s20, 7
      %s288 = scalar_select %p287, %s20, 7
      %p289 = scmp.lt.s32.totalorder %s21, 0
      %s290 = scalar_select %p289, %s21, 0
      %s291 = sadd.s32 %s290, %s288
      %s292 = smul.addr %s291, 4
      %s293 = scalar_lea.vmem %s1, %s292
      %p294 = scmp.lt.s32.totalorder %s20, 7
      %s295 = scalar_select %p294, %s20, 7
      %p296 = scmp.lt.s32.totalorder %s22, 0
      %s297 = scalar_select %p296, %s22, 0
      %s298 = sadd.s32 %s297, %s295
      %s299 = smul.addr %s298, 4
      %s300 = scalar_lea.vmem %s2, %s299
      %p301 = scmp.lt.s32.totalorder %s20, 7
      %s302 = scalar_select %p301, %s20, 7
      %p303 = scmp.lt.s32.totalorder %s22, 0
      %s304 = scalar_select %p303, %s22, 0
      %s305 = sadd.s32 %s304, %s302
      %s306 = smul.addr %s305, 4
      %s307 = scalar_lea.vmem %s3, %s306
      %p308 = scmp.lt.s32.totalorder %s20, 7
      %s309 = scalar_select %p308, %s20, 7
      %p310 = scmp.lt.s32.totalorder %s21, 0
      %s311 = scalar_select %p310, %s21, 0
      %s312 = sadd.s32 %s311, %s309
      %s313 = smul.addr %s312, 4
      %s314 = scalar_lea.vmem %s4, %s313
      %p316 = scmp.eq.s32.totalorder %s22, 0
      // Predicated region
      $region37: #{decoder_forward.10} parent=35 // pred_check
        %p317 = pneg %p316
      $region38: #{decoder_forward.10} parent=35 // pred_check_branch
        %319 = sbr.rel (%p317) target = $region40
      $region39: #{decoder_forward.10} parent=35 // pred_region
        %vm320 = vcmask 7168
        %321 = vst.msk [vmem:[#allocation2] sm:$0xff] %vm320, -inf
        %322 = vst.msk [vmem:[#allocation3] sm:$0xff] %vm320, 0.0
        %vm323 = vcmask 64512
        %324 = vst.msk [vmem:[#allocation4] sm:$0xff] %vm323, 0.0
      $region40: #{decoder_forward.10} parent=35 // pred_fallthru
        _
      %v325 = vld [vmem:[%s293] sm:$0xf]
      %v326 = vld [vmem:[%s300] sm:$0xf]
      %v327 = vld [vmem:[%s307] sm:$0xf]
      %vm328 = vcmask 64512
      %v330 = vsel %vm328, %v325, 0
      %v333 = vsel %vm328, %v326, 0
      %335 = vmatpush.bf16.xpose.msra.mxu0 0
      %336 = vmatpush.bf16.xpose.msra.mxu0 0
      %337 = vmatpush.bf16.xpose.msra.mxu0 0
      %338 = vmatpush.bf16.xpose.msra.mxu0 0
      %339 = vmatpush.bf16.xpose.msra.mxu0 0
      %340 = vmatpush.bf16.xpose.msra.mxu0 0
      %341 = vmatpush.bf16.xpose.msra.mxu0 0
      %342 = vmatpush.bf16.xpose.msra.mxu0 %v333
      %343 = vmatmul.bf16.gmra.mxu0 %v330
      %v344 = vpop.f32.mrf.mxu0
      %v345 = vadd.f32 0.0, %v344
      %v346 = vpop.f32.mrf.mxu0
      %347 = vdwg.mxu0
      %v348 = vmul.f32 %v345, 0.35355338
      %v349 = vld [vmem:[%s286] sm:$0xff]
      %v350 = vadd.f32 %v348, %v349
      %v351 = vld [vmem:[#allocation2] sm:$0xff]
      %v352 = vsel %vm328, %v350, -inf
      %353 = vmax.xlane.f32.xlu0 %v352
      %v354 = vpop.xlane.xlu0 %353
      %v355 = vmax.f32 %v351, %v354
      %v356 = vsub.f32 %v351, %v355
      %v357 = vmul.f32 %v356, 1.442695
      %v358 = vpow.pop %v357
      %360 = vset.pattern.permute.xlu0 0
      %361 = vperm.xlu0 %360, %v355
      %v362 = vpop.permute.xlu0 %361
      %v364 = vsub.f32 %v350, %v362
      %v365 = vmul.f32 %v364, 1.442695
      %v366 = vpow.pop %v365
      %v367 = vld [vmem:[#allocation3] sm:$0xff]
      %v368 = vmul.f32 %v358, %v367
      %v369 = vsel %vm328, %v366, 0.0
      %370 = vadd.xlane.f32.xlu0 %v369
      %v371 = vpop.xlane.xlu0 %370
      %v372 = vadd.f32 %v368, %v371
      %vm373 = vcmask 7168
      %374 = vst.msk [vmem:[#allocation3] sm:$0xff] %vm373, %v372
      %v375 = vld [vmem:[#allocation4] sm:$0xff]
      %377 = vset.pattern.permute.xlu0 0
      %378 = vperm.xlu0 %377, %v358
      %v379 = vpop.permute.xlu0 %378
      %v381 = vmul.f32 %v379, %v375
      %v382 = vpack.c.bf16 %v366, %v366
      %v384 = vsel %vm328, %v382, 0
      %vm386 = vcmask 1043456
      %v388 = vsel %vm386, %v327, 0
      %390 = vmatpush.bf16.msra.mxu0 0
      %391 = vmatpush.bf16.msra.mxu0 0
      %392 = vmatpush.bf16.msra.mxu0 0
      %393 = vmatpush.bf16.msra.mxu0 0
      %394 = vmatpush.bf16.msra.mxu0 0
      %395 = vmatpush.bf16.msra.mxu0 0
      %396 = vmatpush.bf16.msra.mxu0 0
      %397 = vmatpush.bf16.msra.mxu0 %v388
      %398 = vmatmul.bf16.gmra.mxu0 %v384
      %v399 = vpop.f32.mrf.mxu0
      %v400 = vadd.f32 0.0, %v399
      %v401 = vpop.f32.mrf.mxu0
      %402 = vdwg.mxu0
      %v403 = vadd.f32 %v381, %v400
      %404 = vst.msk [vmem:[#allocation4] sm:$0xff] %vm328, %v403
      %405 = vst.msk [vmem:[#allocation2] sm:$0xff] %vm373, %v355
      // Predicated region
      $region41: #{decoder_forward.10} parent=35 // pred_check
        %p406 = pneg %p316
      $region42: #{decoder_forward.10} parent=35 // pred_check_branch
        %408 = sbr.rel (%p406) target = $region44
      $region43: #{decoder_forward.10} parent=35 // pred_region
        %v409 = vld [vmem:[#allocation4] sm:$0xff]
        %v410 = vld [vmem:[#allocation3] sm:$0xff]
        %v411 = vrcp.pop %v410
        %413 = vset.pattern.permute.xlu0 0
        %414 = vperm.xlu0 %413, %v411
        %v415 = vpop.permute.xlu0 %414
        %v417 = vmul.f32 %v409, %v415
        %v418 = vpack.c.bf16 %v417, %v417
        %vm419 = vcmask 60416
        %420 = vst.msk [vmem:[%s314] sm:$0xf] %vm419, %v418
      $region44: #{decoder_forward.10} parent=35 // pred_fallthru
        _
      %p421 = scmp.lt.s32.totalorder %s20, 7
      %s422 = scalar_select %p421, %s20, 7
      %p423 = scmp.lt.s32.totalorder %s21, 0
      %s424 = scalar_select %p423, %s21, 0
      %s425 = sadd.s32 %s424, %s422
      %s426 = smul.addr %s425, 4
      %s427 = scalar_lea.vmem %s4, %s426
      // Predicated region
      $region45: #{decoder_forward.10} parent=35 // pred_check
        %p428 = pneg %p166
      $region46: #{decoder_forward.10} parent=35 // pred_check_branch
        %430 = sbr.rel (%p428) target = $region48
      $region47: #{decoder_forward.10} parent=35 // pred_region
        _
      $region48: #{decoder_forward.10} parent=35 // pred_fallthru
        _
    $region36: #{decoder_forward.10} parent=5 // pred_fallthru
      _
    %p431 = scmp.le.s32.totalorder 2, %s10
    // Predicated region
    $region49: #{decoder_forward.10} parent=5 // pred_check
      %p432 = pneg %p431
    $region50: #{decoder_forward.10} parent=5 // pred_check_branch
      %434 = sbr.rel (%p432) target = $region52
    $region51: #{decoder_forward.10} parent=5 // pred_region
      %s435 = ssub.s32 %s10, 2
      // Predicated region
      $region53: #{decoder_forward.10} parent=51 // pred_check
        %p436 = pneg %p172
      $region54: #{decoder_forward.10} parent=51 // pred_check_branch
        %438 = sbr.rel (%p436) target = $region56
      $region55: #{decoder_forward.10} parent=51 // pred_region
        %p439 = scmp.lt.s32.totalorder %s23, 7
        %s440 = scalar_select %p439, %s23, 7
        %p441 = scmp.lt.s32.totalorder %s24, 0
        %s442 = scalar_select %p441, %s24, 0
        %s443 = sadd.s32 %s442, %s440
        %s444 = smul.addr %s443, 4
        %s445 = scalar_lea.vmem %s4, %s444
      $region56: #{decoder_forward.10} parent=51 // pred_fallthru
        _
    $region52: #{decoder_forward.10} parent=5 // pred_fallthru
      _
  $region6: #{decoder_forward.10} parent=0 // loop_footer
    %s14 = sadd.s32 1, %s10
  $region7: #{decoder_forward.10} parent=0 // loop_footer_branch
    %9 = sbr.rel target = $region3
  $region8: #{decoder_forward.10} parent=0 // loop_exit
    _

// kernel: decoder_forward.13
$region0: #{decoder_forward.13}
  #allocation0 [shape = 'u32[]', space=smem, size = 0x4, offset = 0x4, fixed_abs, tag = 'smem constant byte address 0x4 - core index']
  #allocation1 [shape = 'u32[72,128]{1,0:T(1,128)}', space=vmem, size = 0x9000, scoped, tag = 'internal scratch']
  #allocation2 [shape = 'f32[8,64]{1,0:T(8,128)}', space=vmem, size = 0x1000, scoped, tag = 'scratch operand']
  %s0 = inlined_call_operand.vmem [shape: f32[16,32], index: 0, kind: input, shape index: {}]
  %s1 = inlined_call_operand.vmem [shape: bf16[32,64], index: 1, kind: input, shape index: {}]
  %s2 = inlined_call_operand.vmem [shape: f32[1,64], index: 2, kind: input, shape index: {}]
  %s3 = inlined_call_operand.vmem [shape: bf16[16,64], index: 3, kind: output, shape index: {}]
  %s4 = sld [smem:[#allocation0]]
  $region53: #{decoder_forward.13} parent=0
    _
  %s6 = ssub.s32 1, %s4
  %s7 = scalar_select 0, %s6, %s4
  loop: start=0, step=1, limit=4
  $region2: #{decoder_forward.13} parent=0 // loop_pre_header
    _
  $region3: #{decoder_forward.13} parent=0 // loop_header
    %s9 = sphi 0, %s13
    %p10 = scmp.ge.s32.totalorder %s9, 4
    %s16 = sphi 0, %s35
    %s17 = sphi 0, %s31
    %s18 = sphi 0, %s27
    %s19 = sphi 0, %s16
    %s20 = sphi 0, %s17
    %s21 = sphi 0, %s18
    %s22 = sphi 0, %s19
    %s23 = sphi 0, %s20
    %s24 = sphi 0, %s21
    %s40 = sphi 0, %s42
    %s43 = sphi 0, %s40
    %s44 = sphi 0, %s43
    %s60 = sphi 0, %s44
    %s68 = sphi 0, %s70
    %s71 = sphi 0, %s68
    %s72 = sphi 0, %s71
    %s88 = sphi 0, %s72
    %s94 = sphi 0, %s96
    %s97 = sphi 0, %s94
    %s98 = sphi 0, %s97
    %s114 = sphi 0, %s98
    %s122 = sphi 0, %s124
    %s125 = sphi 0, %s122
    %s126 = sphi 0, %s125
    %s142 = sphi 0, %s126
  $region4: #{decoder_forward.13} parent=0 // loop_header_branch
    %12 = sbr.rel (%p10) target = $region8
  $region5: #{decoder_forward.13} parent=0 // loop_body
    %s14 = ssub.s32 %s9, 1
    %s15 = ssub.s32 %s9, 2
    %s25 = sadd.s32 1, %s18
    %p26 = scmp.ge.s32.totalorder %s25, 1
    %s27 = scalar_select %p26, 0, %s25
    %s28 = sadd.s32 1, %s17
    %s29 = scalar_select %p26, %s28, %s17
    %p30 = scmp.ge.s32.totalorder %s29, 1
    %s31 = scalar_select %p30, 0, %s29
    %s32 = sadd.s32 1, %s16
    %s33 = scalar_select %p30, %s32, %s16
    %p34 = scmp.ge.s32.totalorder %s33, 2
    %s35 = scalar_select %p34, 0, %s33
    %s36 = ssub.s32 %s16, %s35
    %s37 = ssub.s32 %s18, %s27
    %s38 = sor.u32 %s36, %s37
    %p39 = scmp.eq.s32.totalorder %s38, 0
    %s41 = sadd.s32 %s40, 1
    %s42 = scalar_select %p39, %s40, %s41
    %p45 = pneg %p39
    %p46 = scmp.eq.s32.totalorder %s9, 1
    %p47 = por %p45, %p46
    %p48 = scmp.ne.s32.totalorder %s40, %s43
    %p49 = scmp.eq.s32.totalorder %s9, 0
    %p50 = por %p48, %p49
    %p51 = scmp.ne.s32.totalorder %s40, %s43
    %p52 = scmp.eq.s32.totalorder %s14, 1
    %p53 = por %p51, %p52
    %p54 = scmp.ne.s32.totalorder %s43, %s44
    %p55 = scmp.eq.s32.totalorder %s14, 0
    %p56 = por %p54, %p55
    %p57 = scmp.ne.s32.totalorder %s43, %s44
    %p58 = scmp.eq.s32.totalorder %s15, 1
    %p59 = por %p57, %p58
    %p61 = scmp.ne.s32.totalorder %s44, %s60
    %p62 = scmp.eq.s32.totalorder %s15, 0
    %p63 = por %p61, %p62
    %s64 = ssub.s32 %s18, %s27
    %s65 = ssub.s32 %s17, %s31
    %s66 = sor.u32 %s64, %s65
    %p67 = scmp.eq.s32.totalorder %s66, 0
    %s69 = sadd.s32 %s68, 1
    %s70 = scalar_select %p67, %s68, %s69
    %p73 = pneg %p67
    %p74 = scmp.eq.s32.totalorder %s9, 1
    %p75 = por %p73, %p74
    %p76 = scmp.ne.s32.totalorder %s68, %s71
    %p77 = scmp.eq.s32.totalorder %s9, 0
    %p78 = por %p76, %p77
    %p79 = scmp.ne.s32.totalorder %s68, %s71
    %p80 = scmp.eq.s32.totalorder %s14, 1
    %p81 = por %p79, %p80
    %p82 = scmp.ne.s32.totalorder %s71, %s72
    %p83 = scmp.eq.s32.totalorder %s14, 0
    %p84 = por %p82, %p83
    %p85 = scmp.ne.s32.totalorder %s71, %s72
    %p86 = scmp.eq.s32.totalorder %s15, 1
    %p87 = por %p85, %p86
    %p89 = scmp.ne.s32.totalorder %s72, %s88
    %p90 = scmp.eq.s32.totalorder %s15, 0
    %p91 = por %p89, %p90
    %s92 = ssub.s32 %s17, %s31
    %p93 = scmp.eq.s32.totalorder %s92, 0
    %s95 = sadd.s32 %s94, 1
    %s96 = scalar_select %p93, %s94, %s95
    %p99 = pneg %p93
    %p100 = scmp.eq.s32.totalorder %s9, 1
    %p101 = por %p99, %p100
    %p102 = scmp.ne.s32.totalorder %s94, %s97
    %p103 = scmp.eq.s32.totalorder %s9, 0
    %p104 = por %p102, %p103
    %p105 = scmp.ne.s32.totalorder %s94, %s97
    %p106 = scmp.eq.s32.totalorder %s14, 1
    %p107 = por %p105, %p106
    %p108 = scmp.ne.s32.totalorder %s97, %s98
    %p109 = scmp.eq.s32.totalorder %s14, 0
    %p110 = por %p108, %p109
    %p111 = scmp.ne.s32.totalorder %s97, %s98
    %p112 = scmp.eq.s32.totalorder %s15, 1
    %p113 = por %p111, %p112
    %p115 = scmp.ne.s32.totalorder %s98, %s114
    %p116 = scmp.eq.s32.totalorder %s15, 0
    %p117 = por %p115, %p116
    %s118 = ssub.s32 %s16, %s35
    %s119 = ssub.s32 %s17, %s31
    %s120 = sor.u32 %s118, %s119
    %p121 = scmp.eq.s32.totalorder %s120, 0
    %s123 = sadd.s32 %s122, 1
    %s124 = scalar_select %p121, %s122, %s123
    %p127 = pneg %p121
    %p128 = scmp.eq.s32.totalorder %s9, 1
    %p129 = por %p127, %p128
    %p130 = scmp.ne.s32.totalorder %s122, %s125
    %p131 = scmp.eq.s32.totalorder %s9, 0
    %p132 = por %p130, %p131
    %p133 = scmp.ne.s32.totalorder %s122, %s125
    %p134 = scmp.eq.s32.totalorder %s14, 1
    %p135 = por %p133, %p134
    %p136 = scmp.ne.s32.totalorder %s125, %s126
    %p137 = scmp.eq.s32.totalorder %s14, 0
    %p138 = por %p136, %p137
    %p139 = scmp.ne.s32.totalorder %s125, %s126
    %p140 = scmp.eq.s32.totalorder %s15, 1
    %p141 = por %p139, %p140
    %p143 = scmp.ne.s32.totalorder %s126, %s142
    %p144 = scmp.eq.s32.totalorder %s15, 0
    %p145 = por %p143, %p144
    %p146 = scmp.le.s32.totalorder 1, %s9
    %p147 = scmp.lt.s32.totalorder %s9, 3
    %p148 = pnand %p146, %p147
    %p149 = pneg %p148
    // Predicated region
    $region9: #{decoder_forward.13} parent=5 // pred_check
      _
    $region10: #{decoder_forward.13} parent=5 // pred_check_branch
      %151 = sbr.rel (%p148) target = $region12
    $region11: #{decoder_forward.13} parent=5 // pred_region
      %s152 = ssub.s32 %s9, 1
      // Predicated region
      $region13: #{decoder_forward.13} parent=11 // pred_check
        %p153 = pneg %p84
      $region14: #{decoder_forward.13} parent=11 // pred_check_branch
        %155 = sbr.rel (%p153) target = $region16
      $region15: #{decoder_forward.13} parent=11 // pred_region
        %s156 = smul.u32 4, %s21
        %p157 = scmp.lt.s32.totalorder %s156, 3
        %s158 = scalar_select %p157, %s156, 3
        %p159 = scmp.lt.s32.totalorder %s20, 0
        %s160 = scalar_select %p159, %s20, 0
        %s161 = sadd.s32 %s160, %s158
        %s162 = smul.addr %s161, 4
        %s163 = scalar_lea.vmem %s1, %s162
        %s164 = smul.u32 4, %s21
      $region16: #{decoder_forward.13} parent=11 // pred_fallthru
        _
      // Predicated region
      $region17: #{decoder_forward.13} parent=11 // pred_check
        %p165 = pneg %p110
      $region18: #{decoder_forward.13} parent=11 // pred_check_branch
        %167 = sbr.rel (%p165) target = $region20
      $region19: #{decoder_forward.13} parent=11 // pred_region
        %p168 = scmp.lt.s32.totalorder %s20, 0
        %s169 = scalar_select %p168, %s20, 0
        %s170 = scalar_lea.vmem %s2, %s169
      $region20: #{decoder_forward.13} parent=11 // pred_fallthru
        _
    $region12: #{decoder_forward.13} parent=5 // pred_fallthru
      _
    %p171 = scmp.lt.s32.totalorder %s9, 2
    // Predicated region
    $region21: #{decoder_forward.13} parent=5 // pred_check
      %p172 = pneg %p171
    $region22: #{decoder_forward.13} parent=5 // pred_check_branch
      %174 = sbr.rel (%p172) target = $region24
    $region23: #{decoder_forward.13} parent=5 // pred_region
      // Predicated region
      $region25: #{decoder_forward.13} parent=23 // pred_check
        %p175 = pneg %p50
      $region26: #{decoder_forward.13} parent=23 // pred_check_branch
        %177 = sbr.rel (%p175) target = $region28
      $region27: #{decoder_forward.13} parent=23 // pred_region
        %p178 = scmp.lt.s32.totalorder %s16, 1
        %s179 = scalar_select %p178, %s16, 1
        %p180 = scmp.lt.s32.totalorder %s18, 0
        %s181 = scalar_select %p180, %s18, 0
        %s182 = sadd.s32 %s181, %s179
        %s183 = smul.addr %s182, 8
        %s184 = scalar_lea.vmem %s0, %s183
      $region28: #{decoder_forward.13} parent=23 // pred_fallthru
        _
    $region24: #{decoder_forward.13} parent=5 // pred_fallthru
      _
    %p185 = scmp.le.s32.totalorder 1, %s9
    %p186 = scmp.lt.s32.totalorder %s9, 3
    %p187 = pnand %p185, %p186
    %p188 = pneg %p187
    // Predicated region
    $region29: #{decoder_forward.13} parent=5 // pred_check
      _
    $region30: #{decoder_forward.13} parent=5 // pred_check_branch
      %190 = sbr.rel (%p187) target = $region32
    $region31: #{decoder_forward.13} parent=5 // pred_region
      %s191 = ssub.s32 %s9, 1
      %p192 = scmp.lt.s32.totalorder %s19, 1
      %s193 = scalar_select %p192, %s19, 1
      %p194 = scmp.lt.s32.totalorder %s21, 0
      %s195 = scalar_select %p194, %s21, 0
      %s196 = sadd.s32 %s195, %s193
      %s197 = smul.addr %s196, 8
      %s198 = scalar_lea.vmem %s0, %s197
      %p199 = pneg %p56
      %p200 = pneg %p53
      %s201 = smul.u32 4, %s21
      %p202 = scmp.lt.s32.totalorder %s201, 3
      %s203 = scalar_select %p202, %s201, 3
      %p204 = scmp.lt.s32.totalorder %s20, 0
      %s205 = scalar_select %p204, %s20, 0
      %s206 = sadd.s32 %s205, %s203
      %s207 = smul.addr %s206, 4
      %s208 = scalar_lea.vmem %s1, %s207
      %p209 = pneg %p84
      %p210 = pneg %p81
      %p211 = scmp.lt.s32.totalorder %s20, 0
      %s212 = scalar_select %p211, %s20, 0
      %s213 = scalar_lea.vmem %s2, %s212
      %p214 = pneg %p110
      %p215 = pneg %p107
      %p216 = pneg %p138
      %p217 = pneg %p135
      %p218 = scmp.lt.s32.totalorder %s19, 1
      %s219 = scalar_select %p218, %s19, 1
      %p220 = scmp.lt.s32.totalorder %s20, 0
      %s221 = scalar_select %p220, %s20, 0
      %s222 = sadd.s32 %s221, %s219
      %s223 = smul.addr %s222, 4
      %s224 = scalar_lea.vmem %s3, %s223
      %p225 = scmp.lt.s32.totalorder %s19, 1
      %s226 = scalar_select %p225, %s19, 1
      %p227 = scmp.lt.s32.totalorder %s21, 0
      %s228 = scalar_select %p227, %s21, 0
      %s229 = sadd.s32 %s228, %s226
      %s230 = smul.addr %s229, 8
      %s231 = scalar_lea.vmem %s0, %s230
      %s232 = smul.u32 4, %s21
      %p233 = scmp.lt.s32.totalorder %s232, 3
      %s234 = scalar_select %p233, %s232, 3
      %p235 = scmp.lt.s32.totalorder %s20, 0
      %s236 = scalar_select %p235, %s20, 0
      %s237 = sadd.s32 %s236, %s234
      %s238 = smul.addr %s237, 4
      %s239 = scalar_lea.vmem %s1, %s238
      %s240 = smul.u32 4, %s21
      %p241 = scmp.lt.s32.totalorder %s20, 0
      %s242 = scalar_select %p241, %s20, 0
      %s243 = scalar_lea.vmem %s2, %s242
      %p244 = scmp.lt.s32.totalorder %s19, 1
      %s245 = scalar_select %p244, %s19, 1
      %p246 = scmp.lt.s32.totalorder %s20, 0
      %s247 = scalar_select %p246, %s20, 0
      %s248 = sadd.s32 %s247, %s245
      %s249 = smul.addr %s248, 4
      %s250 = scalar_lea.vmem %s3, %s249
      %p252 = scmp.eq.s32.totalorder %s21, 0
      // Predicated region
      $region33: #{decoder_forward.13} parent=31 // pred_check
        %p253 = pneg %p252
      $region34: #{decoder_forward.13} parent=31 // pred_check_branch
        %255 = sbr.rel (%p253) target = $region36
      $region35: #{decoder_forward.13} parent=31 // pred_region
        %vm256 = vcmask 523264
        %257 = vst.msk [vmem:[#allocation2] sm:$0xff] %vm256, 0.0
      $region36: #{decoder_forward.13} parent=31 // pred_fallthru
        _
      %v258 = vld [vmem:[#allocation2] sm:$0xff]
      %v259 = vld [vmem:[%s231] sm:$0xff]
      %v260 = vpack.c.bf16 %v259, %v259
      %v261 = vld [vmem:[%s239] sm:$0xf]
      %v262 = vld [vmem:[%s239 + $0x4] sm:$0xf]
      %v263 = vld [vmem:[%s239 + $0x8] sm:$0xf]
      %v264 = vld [vmem:[%s239 + $0xc] sm:$0xf]
      %v269 = vunpack.c.l.b16 %v261
      %v270 = vunpack.c.l.b16 %v262
      %v271 = vunpack.c.l.b16 %v263
      %v272 = vunpack.c.l.b16 %v264
      %v273 = vpack.c.b16 %v270, %v269
      %v274 = vpack.c.b16 %v272, %v271
      %vm277 = vcmask 261120
      %v279 = vsel %vm277, %v260, 0
      %281 = vmatpush.bf16.msra.mxu0 0
      %282 = vmatpush.bf16.msra.mxu0 0
      %283 = vmatpush.bf16.msra.mxu0 0
      %284 = vmatpush.bf16.msra.mxu0 0
      %285 = vmatpush.bf16.msra.mxu0 0
      %286 = vmatpush.bf16.msra.mxu0 0
      %287 = vmatpush.bf16.msra.mxu0 %v274
      %288 = vmatpush.bf16.msra.mxu0 %v273
      %289 = vmatmul.bf16.gmra.mxu0 %v279
      %v290 = vpop.f32.mrf.mxu0
      %v291 = vadd.f32 0.0, %v290
      %v292 = vpop.f32.mrf.mxu0
      %293 = vdwg.mxu0
      %v294 = vadd.f32 %v258, %v291
      %vm295 = vcmask 523264
      %296 = vst.msk [vmem:[#allocation2] sm:$0xff] %vm295, %v294
      // Predicated region
      $region37: #{decoder_forward.13} parent=31 // pred_check
        %p297 = pneg %p252
      $region38: #{decoder_forward.13} parent=31 // pred_check_branch
        %299 = sbr.rel (%p297) target = $region40
      $region39: #{decoder_forward.13} parent=31 // pred_region
        %v300 = vld [vmem:[#allocation2] sm:$0xff]
        %v301 = vld [vmem:[%s243] sm:$0x1]
        %v303 = vperm.slane %v301, 0
        %v305 = vadd.f32 %v300, %v303
        %v306 = vpack.c.bf16 %v305, %v305
        %vm307 = vcmask 519168
        %308 = vst.msk [vmem:[%s250] sm:$0xf] %vm307, %v306
      $region40: #{decoder_forward.13} parent=31 // pred_fallthru
        _
      %p309 = scmp.lt.s32.totalorder %s19, 1
      %s310 = scalar_select %p309, %s19, 1
      %p311 = scmp.lt.s32.totalorder %s20, 0
      %s312 = scalar_select %p311, %s20, 0
      %s313 = sadd.s32 %s312, %s310
      %s314 = smul.addr %s313, 4
      %s315 = scalar_lea.vmem %s3, %s314
      // Predicated region
      $region41: #{decoder_forward.13} parent=31 // pred_check
        %p316 = pneg %p135
      $region42: #{decoder_forward.13} parent=31 // pred_check_branch
        %318 = sbr.rel (%p316) target = $region44
      $region43: #{decoder_forward.13} parent=31 // pred_region
        _
      $region44: #{decoder_forward.13} parent=31 // pred_fallthru
        _
    $region32: #{decoder_forward.13} parent=5 // pred_fallthru
      _
    %p319 = scmp.le.s32.totalorder 2, %s9
    // Predicated region
    $region45: #{decoder_forward.13} parent=5 // pred_check
      %p320 = pneg %p319
    $region46: #{decoder_forward.13} parent=5 // pred_check_branch
      %322 = sbr.rel (%p320) target = $region48
    $region47: #{decoder_forward.13} parent=5 // pred_region
      %s323 = ssub.s32 %s9, 2
      // Predicated region
      $region49: #{decoder_forward.13} parent=47 // pred_check
        %p324 = pneg %p141
      $region50: #{decoder_forward.13} parent=47 // pred_check_branch
        %326 = sbr.rel (%p324) target = $region52
      $region51: #{decoder_forward.13} parent=47 // pred_region
        %p327 = scmp.lt.s32.totalorder %s22, 1
        %s328 = scalar_select %p327, %s22, 1
        %p329 = scmp.lt.s32.totalorder %s23, 0
        %s330 = scalar_select %p329, %s23, 0
        %s331 = sadd.s32 %s330, %s328
        %s332 = smul.addr %s331, 4
        %s333 = scalar_lea.vmem %s3, %s332
      $region52: #{decoder_forward.13} parent=47 // pred_fallthru
        _
    $region48: #{decoder_forward.13} parent=5 // pred_fallthru
      _
  $region6: #{decoder_forward.13} parent=0 // loop_footer
    %s13 = sadd.s32 1, %s9
  $region7: #{decoder_forward.13} parent=0 // loop_footer_branch
    %8 = sbr.rel target = $region3
  $region8: #{decoder_forward.13} parent=0 // loop_exit
    _

// kernel: decoder_forward.16
$region0: #{decoder_forward.16}
  #allocation0 [shape = 'u32[]', space=smem, size = 0x4, offset = 0x4, fixed_abs, tag = 'smem constant byte address 0x4 - core index']
  #allocation1 [shape = 'u32[72,128]{1,0:T(1,128)}', space=vmem, size = 0x9000, scoped, tag = 'internal scratch']
  #allocation2 [shape = 'f32[8,128]{1,0:T(8,128)}', space=vmem, size = 0x1000, scoped, tag = 'scratch operand']
  %s0 = inlined_call_operand.vmem [shape: f32[16,32], index: 0, kind: input, shape index: {}]
  %s1 = inlined_call_operand.vmem [shape: bf16[32,128], index: 1, kind: input, shape index: {}]
  %s2 = inlined_call_operand.vmem [shape: f32[1,128], index: 2, kind: input, shape index: {}]
  %s3 = inlined_call_operand.vmem [shape: bf16[16,128], index: 3, kind: output, shape index: {}]
  %s4 = sld [smem:[#allocation0]]
  $region53: #{decoder_forward.16} parent=0
    _
  %s6 = ssub.s32 1, %s4
  %s7 = scalar_select 0, %s6, %s4
  loop: start=0, step=1, limit=4
  $region2: #{decoder_forward.16} parent=0 // loop_pre_header
    _
  $region3: #{decoder_forward.16} parent=0 // loop_header
    %s9 = sphi 0, %s13
    %p10 = scmp.ge.s32.totalorder %s9, 4
    %s16 = sphi 0, %s35
    %s17 = sphi 0, %s31
    %s18 = sphi 0, %s27
    %s19 = sphi 0, %s16
    %s20 = sphi 0, %s17
    %s21 = sphi 0, %s18
    %s22 = sphi 0, %s19
    %s23 = sphi 0, %s20
    %s24 = sphi 0, %s21
    %s40 = sphi 0, %s42
    %s43 = sphi 0, %s40
    %s44 = sphi 0, %s43
    %s60 = sphi 0, %s44
    %s68 = sphi 0, %s70
    %s71 = sphi 0, %s68
    %s72 = sphi 0, %s71
    %s88 = sphi 0, %s72
    %s94 = sphi 0, %s96
    %s97 = sphi 0, %s94
    %s98 = sphi 0, %s97
    %s114 = sphi 0, %s98
    %s122 = sphi 0, %s124
    %s125 = sphi 0, %s122
    %s126 = sphi 0, %s125
    %s142 = sphi 0, %s126
  $region4: #{decoder_forward.16} parent=0 // loop_header_branch
    %12 = sbr.rel (%p10) target = $region8
  $region5: #{decoder_forward.16} parent=0 // loop_body
    %s14 = ssub.s32 %s9, 1
    %s15 = ssub.s32 %s9, 2
    %s25 = sadd.s32 1, %s18
    %p26 = scmp.ge.s32.totalorder %s25, 1
    %s27 = scalar_select %p26, 0, %s25
    %s28 = sadd.s32 1, %s17
    %s29 = scalar_select %p26, %s28, %s17
    %p30 = scmp.ge.s32.totalorder %s29, 1
    %s31 = scalar_select %p30, 0, %s29
    %s32 = sadd.s32 1, %s16
    %s33 = scalar_select %p30, %s32, %s16
    %p34 = scmp.ge.s32.totalorder %s33, 2
    %s35 = scalar_select %p34, 0, %s33
    %s36 = ssub.s32 %s16, %s35
    %s37 = ssub.s32 %s18, %s27
    %s38 = sor.u32 %s36, %s37
    %p39 = scmp.eq.s32.totalorder %s38, 0
    %s41 = sadd.s32 %s40, 1
    %s42 = scalar_select %p39, %s40, %s41
    %p45 = pneg %p39
    %p46 = scmp.eq.s32.totalorder %s9, 1
    %p47 = por %p45, %p46
    %p48 = scmp.ne.s32.totalorder %s40, %s43
    %p49 = scmp.eq.s32.totalorder %s9, 0
    %p50 = por %p48, %p49
    %p51 = scmp.ne.s32.totalorder %s40, %s43
    %p52 = scmp.eq.s32.totalorder %s14, 1
    %p53 = por %p51, %p52
    %p54 = scmp.ne.s32.totalorder %s43, %s44
    %p55 = scmp.eq.s32.totalorder %s14, 0
    %p56 = por %p54, %p55
    %p57 = scmp.ne.s32.totalorder %s43, %s44
    %p58 = scmp.eq.s32.totalorder %s15, 1
    %p59 = por %p57, %p58
    %p61 = scmp.ne.s32.totalorder %s44, %s60
    %p62 = scmp.eq.s32.totalorder %s15, 0
    %p63 = por %p61, %p62
    %s64 = ssub.s32 %s18, %s27
    %s65 = ssub.s32 %s17, %s31
    %s66 = sor.u32 %s64, %s65
    %p67 = scmp.eq.s32.totalorder %s66, 0
    %s69 = sadd.s32 %s68, 1
    %s70 = scalar_select %p67, %s68, %s69
    %p73 = pneg %p67
    %p74 = scmp.eq.s32.totalorder %s9, 1
    %p75 = por %p73, %p74
    %p76 = scmp.ne.s32.totalorder %s68, %s71
    %p77 = scmp.eq.s32.totalorder %s9, 0
    %p78 = por %p76, %p77
    %p79 = scmp.ne.s32.totalorder %s68, %s71
    %p80 = scmp.eq.s32.totalorder %s14, 1
    %p81 = por %p79, %p80
    %p82 = scmp.ne.s32.totalorder %s71, %s72
    %p83 = scmp.eq.s32.totalorder %s14, 0
    %p84 = por %p82, %p83
    %p85 = scmp.ne.s32.totalorder %s71, %s72
    %p86 = scmp.eq.s32.totalorder %s15, 1
    %p87 = por %p85, %p86
    %p89 = scmp.ne.s32.totalorder %s72, %s88
    %p90 = scmp.eq.s32.totalorder %s15, 0
    %p91 = por %p89, %p90
    %s92 = ssub.s32 %s17, %s31
    %p93 = scmp.eq.s32.totalorder %s92, 0
    %s95 = sadd.s32 %s94, 1
    %s96 = scalar_select %p93, %s94, %s95
    %p99 = pneg %p93
    %p100 = scmp.eq.s32.totalorder %s9, 1
    %p101 = por %p99, %p100
    %p102 = scmp.ne.s32.totalorder %s94, %s97
    %p103 = scmp.eq.s32.totalorder %s9, 0
    %p104 = por %p102, %p103
    %p105 = scmp.ne.s32.totalorder %s94, %s97
    %p106 = scmp.eq.s32.totalorder %s14, 1
    %p107 = por %p105, %p106
    %p108 = scmp.ne.s32.totalorder %s97, %s98
    %p109 = scmp.eq.s32.totalorder %s14, 0
    %p110 = por %p108, %p109
    %p111 = scmp.ne.s32.totalorder %s97, %s98
    %p112 = scmp.eq.s32.totalorder %s15, 1
    %p113 = por %p111, %p112
    %p115 = scmp.ne.s32.totalorder %s98, %s114
    %p116 = scmp.eq.s32.totalorder %s15, 0
    %p117 = por %p115, %p116
    %s118 = ssub.s32 %s16, %s35
    %s119 = ssub.s32 %s17, %s31
    %s120 = sor.u32 %s118, %s119
    %p121 = scmp.eq.s32.totalorder %s120, 0
    %s123 = sadd.s32 %s122, 1
    %s124 = scalar_select %p121, %s122, %s123
    %p127 = pneg %p121
    %p128 = scmp.eq.s32.totalorder %s9, 1
    %p129 = por %p127, %p128
    %p130 = scmp.ne.s32.totalorder %s122, %s125
    %p131 = scmp.eq.s32.totalorder %s9, 0
    %p132 = por %p130, %p131
    %p133 = scmp.ne.s32.totalorder %s122, %s125
    %p134 = scmp.eq.s32.totalorder %s14, 1
    %p135 = por %p133, %p134
    %p136 = scmp.ne.s32.totalorder %s125, %s126
    %p137 = scmp.eq.s32.totalorder %s14, 0
    %p138 = por %p136, %p137
    %p139 = scmp.ne.s32.totalorder %s125, %s126
    %p140 = scmp.eq.s32.totalorder %s15, 1
    %p141 = por %p139, %p140
    %p143 = scmp.ne.s32.totalorder %s126, %s142
    %p144 = scmp.eq.s32.totalorder %s15, 0
    %p145 = por %p143, %p144
    %p146 = scmp.le.s32.totalorder 1, %s9
    %p147 = scmp.lt.s32.totalorder %s9, 3
    %p148 = pnand %p146, %p147
    %p149 = pneg %p148
    // Predicated region
    $region9: #{decoder_forward.16} parent=5 // pred_check
      _
    $region10: #{decoder_forward.16} parent=5 // pred_check_branch
      %151 = sbr.rel (%p148) target = $region12
    $region11: #{decoder_forward.16} parent=5 // pred_region
      %s152 = ssub.s32 %s9, 1
      // Predicated region
      $region13: #{decoder_forward.16} parent=11 // pred_check
        %p153 = pneg %p84
      $region14: #{decoder_forward.16} parent=11 // pred_check_branch
        %155 = sbr.rel (%p153) target = $region16
      $region15: #{decoder_forward.16} parent=11 // pred_region
        %s156 = smul.u32 4, %s21
        %p157 = scmp.lt.s32.totalorder %s156, 3
        %s158 = scalar_select %p157, %s156, 3
        %p159 = scmp.lt.s32.totalorder %s20, 0
        %s160 = scalar_select %p159, %s20, 0
        %s161 = sadd.s32 %s160, %s158
        %s162 = smul.addr %s161, 4
        %s163 = scalar_lea.vmem %s1, %s162
        %s164 = smul.u32 4, %s21
      $region16: #{decoder_forward.16} parent=11 // pred_fallthru
        _
      // Predicated region
      $region17: #{decoder_forward.16} parent=11 // pred_check
        %p165 = pneg %p110
      $region18: #{decoder_forward.16} parent=11 // pred_check_branch
        %167 = sbr.rel (%p165) target = $region20
      $region19: #{decoder_forward.16} parent=11 // pred_region
        %p168 = scmp.lt.s32.totalorder %s20, 0
        %s169 = scalar_select %p168, %s20, 0
        %s170 = scalar_lea.vmem %s2, %s169
      $region20: #{decoder_forward.16} parent=11 // pred_fallthru
        _
    $region12: #{decoder_forward.16} parent=5 // pred_fallthru
      _
    %p171 = scmp.lt.s32.totalorder %s9, 2
    // Predicated region
    $region21: #{decoder_forward.16} parent=5 // pred_check
      %p172 = pneg %p171
    $region22: #{decoder_forward.16} parent=5 // pred_check_branch
      %174 = sbr.rel (%p172) target = $region24
    $region23: #{decoder_forward.16} parent=5 // pred_region
      // Predicated region
      $region25: #{decoder_forward.16} parent=23 // pred_check
        %p175 = pneg %p50
      $region26: #{decoder_forward.16} parent=23 // pred_check_branch
        %177 = sbr.rel (%p175) target = $region28
      $region27: #{decoder_forward.16} parent=23 // pred_region
        %p178 = scmp.lt.s32.totalorder %s16, 1
        %s179 = scalar_select %p178, %s16, 1
        %p180 = scmp.lt.s32.totalorder %s18, 0
        %s181 = scalar_select %p180, %s18, 0
        %s182 = sadd.s32 %s181, %s179
        %s183 = smul.addr %s182, 8
        %s184 = scalar_lea.vmem %s0, %s183
      $region28: #{decoder_forward.16} parent=23 // pred_fallthru
        _
    $region24: #{decoder_forward.16} parent=5 // pred_fallthru
      _
    %p185 = scmp.le.s32.totalorder 1, %s9
    %p186 = scmp.lt.s32.totalorder %s9, 3
    %p187 = pnand %p185, %p186
    %p188 = pneg %p187
    // Predicated region
    $region29: #{decoder_forward.16} parent=5 // pred_check
      _
    $region30: #{decoder_forward.16} parent=5 // pred_check_branch
      %190 = sbr.rel (%p187) target = $region32
    $region31: #{decoder_forward.16} parent=5 // pred_region
      %s191 = ssub.s32 %s9, 1
      %p192 = scmp.lt.s32.totalorder %s19, 1
      %s193 = scalar_select %p192, %s19, 1
      %p194 = scmp.lt.s32.totalorder %s21, 0
      %s195 = scalar_select %p194, %s21, 0
      %s196 = sadd.s32 %s195, %s193
      %s197 = smul.addr %s196, 8
      %s198 = scalar_lea.vmem %s0, %s197
      %p199 = pneg %p56
      %p200 = pneg %p53
      %s201 = smul.u32 4, %s21
      %p202 = scmp.lt.s32.totalorder %s201, 3
      %s203 = scalar_select %p202, %s201, 3
      %p204 = scmp.lt.s32.totalorder %s20, 0
      %s205 = scalar_select %p204, %s20, 0
      %s206 = sadd.s32 %s205, %s203
      %s207 = smul.addr %s206, 4
      %s208 = scalar_lea.vmem %s1, %s207
      %p209 = pneg %p84
      %p210 = pneg %p81
      %p211 = scmp.lt.s32.totalorder %s20, 0
      %s212 = scalar_select %p211, %s20, 0
      %s213 = scalar_lea.vmem %s2, %s212
      %p214 = pneg %p110
      %p215 = pneg %p107
      %p216 = pneg %p138
      %p217 = pneg %p135
      %p218 = scmp.lt.s32.totalorder %s19, 1
      %s219 = scalar_select %p218, %s19, 1
      %p220 = scmp.lt.s32.totalorder %s20, 0
      %s221 = scalar_select %p220, %s20, 0
      %s222 = sadd.s32 %s221, %s219
      %s223 = smul.addr %s222, 4
      %s224 = scalar_lea.vmem %s3, %s223
      %p225 = scmp.lt.s32.totalorder %s19, 1
      %s226 = scalar_select %p225, %s19, 1
      %p227 = scmp.lt.s32.totalorder %s21, 0
      %s228 = scalar_select %p227, %s21, 0
      %s229 = sadd.s32 %s228, %s226
      %s230 = smul.addr %s229, 8
      %s231 = scalar_lea.vmem %s0, %s230
      %s232 = smul.u32 4, %s21
      %p233 = scmp.lt.s32.totalorder %s232, 3
      %s234 = scalar_select %p233, %s232, 3
      %p235 = scmp.lt.s32.totalorder %s20, 0
      %s236 = scalar_select %p235, %s20, 0
      %s237 = sadd.s32 %s236, %s234
      %s238 = smul.addr %s237, 4
      %s239 = scalar_lea.vmem %s1, %s238
      %s240 = smul.u32 4, %s21
      %p241 = scmp.lt.s32.totalorder %s20, 0
      %s242 = scalar_select %p241, %s20, 0
      %s243 = scalar_lea.vmem %s2, %s242
      %p244 = scmp.lt.s32.totalorder %s19, 1
      %s245 = scalar_select %p244, %s19, 1
      %p246 = scmp.lt.s32.totalorder %s20, 0
      %s247 = scalar_select %p246, %s20, 0
      %s248 = sadd.s32 %s247, %s245
      %s249 = smul.addr %s248, 4
      %s250 = scalar_lea.vmem %s3, %s249
      %p252 = scmp.eq.s32.totalorder %s21, 0
      // Predicated region
      $region33: #{decoder_forward.16} parent=31 // pred_check
        %p253 = pneg %p252
      $region34: #{decoder_forward.16} parent=31 // pred_check_branch
        %255 = sbr.rel (%p253) target = $region36
      $region35: #{decoder_forward.16} parent=31 // pred_region
        %256 = vst [vmem:[#allocation2] sm:$0xff] 0.0
      $region36: #{decoder_forward.16} parent=31 // pred_fallthru
        _
      %v257 = vld [vmem:[#allocation2] sm:$0xff]
      %v258 = vld [vmem:[%s231] sm:$0xff]
      %v259 = vpack.c.bf16 %v258, %v258
      %v260 = vld [vmem:[%s239] sm:$0xf]
      %v261 = vld [vmem:[%s239 + $0x4] sm:$0xf]
      %v262 = vld [vmem:[%s239 + $0x8] sm:$0xf]
      %v263 = vld [vmem:[%s239 + $0xc] sm:$0xf]
      %v268 = vunpack.c.l.b16 %v260
      %v269 = vunpack.c.l.b16 %v261
      %v270 = vunpack.c.l.b16 %v262
      %v271 = vunpack.c.l.b16 %v263
      %v272 = vpack.c.b16 %v269, %v268
      %v273 = vpack.c.b16 %v271, %v270
      %vm276 = vcmask 261120
      %v278 = vsel %vm276, %v259, 0
      %280 = vmatpush.bf16.msra.mxu0 0
      %281 = vmatpush.bf16.msra.mxu0 0
      %282 = vmatpush.bf16.msra.mxu0 0
      %283 = vmatpush.bf16.msra.mxu0 0
      %284 = vmatpush.bf16.msra.mxu0 0
      %285 = vmatpush.bf16.msra.mxu0 0
      %286 = vmatpush.bf16.msra.mxu0 %v273
      %287 = vmatpush.bf16.msra.mxu0 %v272
      %288 = vmatmul.bf16.gmra.mxu0 %v278
      %v289 = vpop.f32.mrf.mxu0
      %v290 = vadd.f32 0.0, %v289
      %v291 = vpop.f32.mrf.mxu0
      %292 = vdwg.mxu0
      %v293 = vadd.f32 %v257, %v290
      %294 = vst [vmem:[#allocation2] sm:$0xff] %v293
      // Predicated region
      $region37: #{decoder_forward.16} parent=31 // pred_check
        %p295 = pneg %p252
      $region38: #{decoder_forward.16} parent=31 // pred_check_branch
        %297 = sbr.rel (%p295) target = $region40
      $region39: #{decoder_forward.16} parent=31 // pred_region
        %v298 = vld [vmem:[#allocation2] sm:$0xff]
        %v299 = vld [vmem:[%s243] sm:$0x1]
        %v301 = vperm.slane %v299, 0
        %v303 = vadd.f32 %v298, %v301
        %v304 = vmax.f32 %v303, 0.0
        %v305 = vpack.c.bf16 %v304, %v304
        %306 = vst [vmem:[%s250] sm:$0xf] %v305
      $region40: #{decoder_forward.16} parent=31 // pred_fallthru
        _
      %p307 = scmp.lt.s32.totalorder %s19, 1
      %s308 = scalar_select %p307, %s19, 1
      %p309 = scmp.lt.s32.totalorder %s20, 0
      %s310 = scalar_select %p309, %s20, 0
      %s311 = sadd.s32 %s310, %s308
      %s312 = smul.addr %s311, 4
      %s313 = scalar_lea.vmem %s3, %s312
      // Predicated region
      $region41: #{decoder_forward.16} parent=31 // pred_check
        %p314 = pneg %p135
      $region42: #{decoder_forward.16} parent=31 // pred_check_branch
        %316 = sbr.rel (%p314) target = $region44
      $region43: #{decoder_forward.16} parent=31 // pred_region
        _
      $region44: #{decoder_forward.16} parent=31 // pred_fallthru
        _
    $region32: #{decoder_forward.16} parent=5 // pred_fallthru
      _
    %p317 = scmp.le.s32.totalorder 2, %s9
    // Predicated region
    $region45: #{decoder_forward.16} parent=5 // pred_check
      %p318 = pneg %p317
    $region46: #{decoder_forward.16} parent=5 // pred_check_branch
      %320 = sbr.rel (%p318) target = $region48
    $region47: #{decoder_forward.16} parent=5 // pred_region
      %s321 = ssub.s32 %s9, 2
      // Predicated region
      $region49: #{decoder_forward.16} parent=47 // pred_check
        %p322 = pneg %p141
      $region50: #{decoder_forward.16} parent=47 // pred_check_branch
        %324 = sbr.rel (%p322) target = $region52
      $region51: #{decoder_forward.16} parent=47 // pred_region
        %p325 = scmp.lt.s32.totalorder %s22, 1
        %s326 = scalar_select %p325, %s22, 1
        %p327 = scmp.lt.s32.totalorder %s23, 0
        %s328 = scalar_select %p327, %s23, 0
        %s329 = sadd.s32 %s328, %s326
        %s330 = smul.addr %s329, 4
        %s331 = scalar_lea.vmem %s3, %s330
      $region52: #{decoder_forward.16} parent=47 // pred_fallthru
        _
    $region48: #{decoder_forward.16} parent=5 // pred_fallthru
      _
  $region6: #{decoder_forward.16} parent=0 // loop_footer
    %s13 = sadd.s32 1, %s9
  $region7: #{decoder_forward.16} parent=0 // loop_footer_branch
    %8 = sbr.rel target = $region3
  $region8: #{decoder_forward.16} parent=0 // loop_exit
    _

// kernel: decoder_forward.17
$region0: #{decoder_forward.17}
  #allocation0 [shape = 'u32[]', space=smem, size = 0x4, offset = 0x4, fixed_abs, tag = 'smem constant byte address 0x4 - core index']
  #allocation1 [shape = 'u32[72,128]{1,0:T(1,128)}', space=vmem, size = 0x9000, scoped, tag = 'internal scratch']
  #allocation2 [shape = 'f32[8,32]{1,0:T(8,128)}', space=vmem, size = 0x1000, scoped, tag = 'scratch operand']
  %s0 = inlined_call_operand.vmem [shape: bf16[16,128], index: 0, kind: input, shape index: {}]
  %s1 = inlined_call_operand.vmem [shape: bf16[128,32], index: 1, kind: input, shape index: {}]
  %s2 = inlined_call_operand.vmem [shape: f32[1,32], index: 2, kind: input, shape index: {}]
  %s3 = inlined_call_operand.vmem [shape: f32[16,32], index: 3, kind: input, shape index: {}]
  %s4 = inlined_call_operand.hbm [shape: f32[16,32], index: 4, kind: output, shape index: {}]
  %s5 = sld [smem:[#allocation0]]
  $region57: #{decoder_forward.17} parent=0
    _
  %s7 = ssub.s32 1, %s5
  %s8 = scalar_select 0, %s7, %s5
  $region1: #{decoder_forward.17} parent=0
    #allocation3 [shape = 'u8[8192]{0}', space=vmem, size = 0x2000, scoped, tag = 'output window, operand 0']
    #allocation4 [shape = 's32[2]{0}', space=sflag, size = 0x8, scoped, tag = 'scoped memory for decoder_forward.17']
    %9 = vsyncpa [#allocation4], 0
    %s10 = scalar_lea.sflag [#allocation4], 1
    %11 = vsyncpa %s10, 0
    loop: start=0, step=1, limit=4
    $region2: #{decoder_forward.17} parent=1 // loop_pre_header
      _
    $region3: #{decoder_forward.17} parent=1 // loop_header
      %s13 = sphi 0, %s17
      %p14 = scmp.ge.s32.totalorder %s13, 4
      %s20 = sphi 0, %s39
      %s21 = sphi 0, %s35
      %s22 = sphi 0, %s31
      %s23 = sphi 0, %s20
      %s24 = sphi 0, %s21
      %s25 = sphi 0, %s22
      %s26 = sphi 0, %s23
      %s27 = sphi 0, %s24
      %s28 = sphi 0, %s25
      %s44 = sphi 0, %s46
      %s47 = sphi 0, %s44
      %s48 = sphi 0, %s47
      %s64 = sphi 0, %s48
      %s72 = sphi 0, %s74
      %s75 = sphi 0, %s72
      %s76 = sphi 0, %s75
      %s92 = sphi 0, %s76
      %s98 = sphi 0, %s100
      %s101 = sphi 0, %s98
      %s102 = sphi 0, %s101
      %s118 = sphi 0, %s102
      %s126 = sphi 0, %s128
      %s129 = sphi 0, %s126
      %s130 = sphi 0, %s129
      %s146 = sphi 0, %s130
      %s154 = sphi 0, %s156
      %s157 = sphi 0, %s154
      %s158 = sphi 0, %s157
      %s174 = sphi 0, %s158
    $region4: #{decoder_forward.17} parent=1 // loop_header_branch
      %16 = sbr.rel (%p14) target = $region8
    $region5: #{decoder_forward.17} parent=1 // loop_body
      %s18 = ssub.s32 %s13, 1
      %s19 = ssub.s32 %s13, 2
      %s29 = sadd.s32 1, %s22
      %p30 = scmp.ge.s32.totalorder %s29, 1
      %s31 = scalar_select %p30, 0, %s29
      %s32 = sadd.s32 1, %s21
      %s33 = scalar_select %p30, %s32, %s21
      %p34 = scmp.ge.s32.totalorder %s33, 1
      %s35 = scalar_select %p34, 0, %s33
      %s36 = sadd.s32 1, %s20
      %s37 = scalar_select %p34, %s36, %s20
      %p38 = scmp.ge.s32.totalorder %s37, 2
      %s39 = scalar_select %p38, 0, %s37
      %s40 = ssub.s32 %s20, %s39
      %s41 = ssub.s32 %s22, %s31
      %s42 = sor.u32 %s40, %s41
      %p43 = scmp.eq.s32.totalorder %s42, 0
      %s45 = sadd.s32 %s44, 1
      %s46 = scalar_select %p43, %s44, %s45
      %p49 = pneg %p43
      %p50 = scmp.eq.s32.totalorder %s13, 1
      %p51 = por %p49, %p50
      %p52 = scmp.ne.s32.totalorder %s44, %s47
      %p53 = scmp.eq.s32.totalorder %s13, 0
      %p54 = por %p52, %p53
      %p55 = scmp.ne.s32.totalorder %s44, %s47
      %p56 = scmp.eq.s32.totalorder %s18, 1
      %p57 = por %p55, %p56
      %p58 = scmp.ne.s32.totalorder %s47, %s48
      %p59 = scmp.eq.s32.totalorder %s18, 0
      %p60 = por %p58, %p59
      %p61 = scmp.ne.s32.totalorder %s47, %s48
      %p62 = scmp.eq.s32.totalorder %s19, 1
      %p63 = por %p61, %p62
      %p65 = scmp.ne.s32.totalorder %s48, %s64
      %p66 = scmp.eq.s32.totalorder %s19, 0
      %p67 = por %p65, %p66
      %s68 = ssub.s32 %s22, %s31
      %s69 = ssub.s32 %s21, %s35
      %s70 = sor.u32 %s68, %s69
      %p71 = scmp.eq.s32.totalorder %s70, 0
      %s73 = sadd.s32 %s72, 1
      %s74 = scalar_select %p71, %s72, %s73
      %p77 = pneg %p71
      %p78 = scmp.eq.s32.totalorder %s13, 1
      %p79 = por %p77, %p78
      %p80 = scmp.ne.s32.totalorder %s72, %s75
      %p81 = scmp.eq.s32.totalorder %s13, 0
      %p82 = por %p80, %p81
      %p83 = scmp.ne.s32.totalorder %s72, %s75
      %p84 = scmp.eq.s32.totalorder %s18, 1
      %p85 = por %p83, %p84
      %p86 = scmp.ne.s32.totalorder %s75, %s76
      %p87 = scmp.eq.s32.totalorder %s18, 0
      %p88 = por %p86, %p87
      %p89 = scmp.ne.s32.totalorder %s75, %s76
      %p90 = scmp.eq.s32.totalorder %s19, 1
      %p91 = por %p89, %p90
      %p93 = scmp.ne.s32.totalorder %s76, %s92
      %p94 = scmp.eq.s32.totalorder %s19, 0
      %p95 = por %p93, %p94
      %s96 = ssub.s32 %s21, %s35
      %p97 = scmp.eq.s32.totalorder %s96, 0
      %s99 = sadd.s32 %s98, 1
      %s100 = scalar_select %p97, %s98, %s99
      %p103 = pneg %p97
      %p104 = scmp.eq.s32.totalorder %s13, 1
      %p105 = por %p103, %p104
      %p106 = scmp.ne.s32.totalorder %s98, %s101
      %p107 = scmp.eq.s32.totalorder %s13, 0
      %p108 = por %p106, %p107
      %p109 = scmp.ne.s32.totalorder %s98, %s101
      %p110 = scmp.eq.s32.totalorder %s18, 1
      %p111 = por %p109, %p110
      %p112 = scmp.ne.s32.totalorder %s101, %s102
      %p113 = scmp.eq.s32.totalorder %s18, 0
      %p114 = por %p112, %p113
      %p115 = scmp.ne.s32.totalorder %s101, %s102
      %p116 = scmp.eq.s32.totalorder %s19, 1
      %p117 = por %p115, %p116
      %p119 = scmp.ne.s32.totalorder %s102, %s118
      %p120 = scmp.eq.s32.totalorder %s19, 0
      %p121 = por %p119, %p120
      %s122 = ssub.s32 %s20, %s39
      %s123 = ssub.s32 %s21, %s35
      %s124 = sor.u32 %s122, %s123
      %p125 = scmp.eq.s32.totalorder %s124, 0
      %s127 = sadd.s32 %s126, 1
      %s128 = scalar_select %p125, %s126, %s127
      %p131 = pneg %p125
      %p132 = scmp.eq.s32.totalorder %s13, 1
      %p133 = por %p131, %p132
      %p134 = scmp.ne.s32.totalorder %s126, %s129
      %p135 = scmp.eq.s32.totalorder %s13, 0
      %p136 = por %p134, %p135
      %p137 = scmp.ne.s32.totalorder %s126, %s129
      %p138 = scmp.eq.s32.totalorder %s18, 1
      %p139 = por %p137, %p138
      %p140 = scmp.ne.s32.totalorder %s129, %s130
      %p141 = scmp.eq.s32.totalorder %s18, 0
      %p142 = por %p140, %p141
      %p143 = scmp.ne.s32.totalorder %s129, %s130
      %p144 = scmp.eq.s32.totalorder %s19, 1
      %p145 = por %p143, %p144
      %p147 = scmp.ne.s32.totalorder %s130, %s146
      %p148 = scmp.eq.s32.totalorder %s19, 0
      %p149 = por %p147, %p148
      %s150 = ssub.s32 %s20, %s39
      %s151 = ssub.s32 %s21, %s35
      %s152 = sor.u32 %s150, %s151
      %p153 = scmp.eq.s32.totalorder %s152, 0
      %s155 = sadd.s32 %s154, 1
      %s156 = scalar_select %p153, %s154, %s155
      %p159 = pneg %p153
      %p160 = scmp.eq.s32.totalorder %s13, 1
      %p161 = por %p159, %p160
      %p162 = scmp.ne.s32.totalorder %s154, %s157
      %p163 = scmp.eq.s32.totalorder %s13, 0
      %p164 = por %p162, %p163
      %p165 = scmp.ne.s32.totalorder %s154, %s157
      %p166 = scmp.eq.s32.totalorder %s18, 1
      %p167 = por %p165, %p166
      %p168 = scmp.ne.s32.totalorder %s157, %s158
      %p169 = scmp.eq.s32.totalorder %s18, 0
      %p170 = por %p168, %p169
      %p171 = scmp.ne.s32.totalorder %s157, %s158
      %p172 = scmp.eq.s32.totalorder %s19, 1
      %p173 = por %p171, %p172
      %p175 = scmp.ne.s32.totalorder %s158, %s174
      %p176 = scmp.eq.s32.totalorder %s19, 0
      %p177 = por %p175, %p176
      %p178 = scmp.le.s32.totalorder 1, %s13
      %p179 = scmp.lt.s32.totalorder %s13, 3
      %p180 = pnand %p178, %p179
      %p181 = pneg %p180
      // Predicated region
      $region9: #{decoder_forward.17} parent=5 // pred_check
        _
      $region10: #{decoder_forward.17} parent=5 // pred_check_branch
        %183 = sbr.rel (%p180) target = $region12
      $region11: #{decoder_forward.17} parent=5 // pred_region
        %s184 = ssub.s32 %s13, 1
        // Predicated region
        $region13: #{decoder_forward.17} parent=11 // pred_check
          %p185 = pneg %p88
        $region14: #{decoder_forward.17} parent=11 // pred_check_branch
          %187 = sbr.rel (%p185) target = $region16
        $region15: #{decoder_forward.17} parent=11 // pred_region
          %s188 = smul.u32 16, %s25
          %p189 = scmp.lt.s32.totalorder %s188, 15
          %s190 = scalar_select %p189, %s188, 15
          %p191 = scmp.lt.s32.totalorder %s24, 0
          %s192 = scalar_select %p191, %s24, 0
          %s193 = sadd.s32 %s192, %s190
          %s194 = smul.addr %s193, 4
          %s195 = scalar_lea.vmem %s1, %s194
          %s196 = smul.u32 16, %s25
        $region16: #{decoder_forward.17} parent=11 // pred_fallthru
          _
        // Predicated region
        $region17: #{decoder_forward.17} parent=11 // pred_check
          %p197 = pneg %p114
        $region18: #{decoder_forward.17} parent=11 // pred_check_branch
          %199 = sbr.rel (%p197) target = $region20
        $region19: #{decoder_forward.17} parent=11 // pred_region
          %p200 = scmp.lt.s32.totalorder %s24, 0
          %s201 = scalar_select %p200, %s24, 0
          %s202 = scalar_lea.vmem %s2, %s201
        $region20: #{decoder_forward.17} parent=11 // pred_fallthru
          _
      $region12: #{decoder_forward.17} parent=5 // pred_fallthru
        _
      %p203 = scmp.lt.s32.totalorder %s13, 2
      // Predicated region
      $region21: #{decoder_forward.17} parent=5 // pred_check
        %p204 = pneg %p203
      $region22: #{decoder_forward.17} parent=5 // pred_check_branch
        %206 = sbr.rel (%p204) target = $region24
      $region23: #{decoder_forward.17} parent=5 // pred_region
        // Predicated region
        $region25: #{decoder_forward.17} parent=23 // pred_check
          %p207 = pneg %p54
        $region26: #{decoder_forward.17} parent=23 // pred_check_branch
          %209 = sbr.rel (%p207) target = $region28
        $region27: #{decoder_forward.17} parent=23 // pred_region
          %p210 = scmp.lt.s32.totalorder %s20, 1
          %s211 = scalar_select %p210, %s20, 1
          %p212 = scmp.lt.s32.totalorder %s22, 0
          %s213 = scalar_select %p212, %s22, 0
          %s214 = sadd.s32 %s213, %s211
          %s215 = smul.addr %s214, 4
          %s216 = scalar_lea.vmem %s0, %s215
        $region28: #{decoder_forward.17} parent=23 // pred_fallthru
          _
        // Predicated region
        $region29: #{decoder_forward.17} parent=23 // pred_check
          %p217 = pneg %p136
        $region30: #{decoder_forward.17} parent=23 // pred_check_branch
          %219 = sbr.rel (%p217) target = $region32
        $region31: #{decoder_forward.17} parent=23 // pred_region
          %p220 = scmp.lt.s32.totalorder %s20, 1
          %s221 = scalar_select %p220, %s20, 1
          %p222 = scmp.lt.s32.totalorder %s21, 0
          %s223 = scalar_select %p222, %s21, 0
          %s224 = sadd.s32 %s223, %s221
          %s225 = smul.addr %s224, 8
          %s226 = scalar_lea.vmem %s3, %s225
        $region32: #{decoder_forward.17} parent=23 // pred_fallthru
          _
      $region24: #{decoder_forward.17} parent=5 // pred_fallthru
        _
      %p227 = scmp.le.s32.totalorder 1, %s13
      %p228 = scmp.lt.s32.totalorder %s13, 3
      %p229 = pnand %p227, %p228
      %p230 = pneg %p229
      // Predicated region
      $region33: #{decoder_forward.17} parent=5 // pred_check
        _
      $region34: #{decoder_forward.17} parent=5 // pred_check_branch
        %232 = sbr.rel (%p229) target = $region36
      $region35: #{decoder_forward.17} parent=5 // pred_region
        %s233 = ssub.s32 %s13, 1
        %p234 = scmp.lt.s32.totalorder %s23, 1
        %s235 = scalar_select %p234, %s23, 1
        %p236 = scmp.lt.s32.totalorder %s25, 0
        %s237 = scalar_select %p236, %s25, 0
        %s238 = sadd.s32 %s237, %s235
        %s239 = smul.addr %s238, 4
        %s240 = scalar_lea.vmem %s0, %s239
        %p241 = pneg %p60
        %p242 = pneg %p57
        %s243 = smul.u32 16, %s25
        %p244 = scmp.lt.s32.totalorder %s243, 15
        %s245 = scalar_select %p244, %s243, 15
        %p246 = scmp.lt.s32.totalorder %s24, 0
        %s247 = scalar_select %p246, %s24, 0
        %s248 = sadd.s32 %s247, %s245
        %s249 = smul.addr %s248, 4
        %s250 = scalar_lea.vmem %s1, %s249
        %p251 = pneg %p88
        %p252 = pneg %p85
        %p253 = scmp.lt.s32.totalorder %s24, 0
        %s254 = scalar_select %p253, %s24, 0
        %s255 = scalar_lea.vmem %s2, %s254
        %p256 = pneg %p114
        %p257 = pneg %p111
        %p258 = scmp.lt.s32.totalorder %s23, 1
        %s259 = scalar_select %p258, %s23, 1
        %p260 = scmp.lt.s32.totalorder %s24, 0
        %s261 = scalar_select %p260, %s24, 0
        %s262 = sadd.s32 %s261, %s259
        %s263 = smul.addr %s262, 8
        %s264 = scalar_lea.vmem %s3, %s263
        %p265 = pneg %p142
        %p266 = pneg %p139
        %p267 = pneg %p170
        %p268 = pneg %p167
        %s269 = sand.u32 %s157, 1
        %s270 = scalar_lea.sflag [#allocation4], %s269
        %s271 = sand.u32 %s157, 1
        %s272 = smul.addr %s271, 8
        %s273 = scalar_lea.vmem [#allocation3], %s272
        %p274 = scmp.lt.s32.totalorder %s23, 1
        %s275 = scalar_select %p274, %s23, 1
        %p276 = scmp.lt.s32.totalorder %s25, 0
        %s277 = scalar_select %p276, %s25, 0
        %s278 = sadd.s32 %s277, %s275
        %s279 = smul.addr %s278, 4
        %s280 = scalar_lea.vmem %s0, %s279
        %s281 = smul.u32 16, %s25
        %p282 = scmp.lt.s32.totalorder %s281, 15
        %s283 = scalar_select %p282, %s281, 15
        %p284 = scmp.lt.s32.totalorder %s24, 0
        %s285 = scalar_select %p284, %s24, 0
        %s286 = sadd.s32 %s285, %s283
        %s287 = smul.addr %s286, 4
        %s288 = scalar_lea.vmem %s1, %s287
        %s289 = smul.u32 16, %s25
        %p290 = scmp.lt.s32.totalorder %s24, 0
        %s291 = scalar_select %p290, %s24, 0
        %s292 = scalar_lea.vmem %s2, %s291
        %p293 = scmp.lt.s32.totalorder %s23, 1
        %s294 = scalar_select %p293, %s23, 1
        %p295 = scmp.lt.s32.totalorder %s24, 0
        %s296 = scalar_select %p295, %s24, 0
        %s297 = sadd.s32 %s296, %s294
        %s298 = smul.addr %s297, 8
        %s299 = scalar_lea.vmem %s3, %s298
        %p300 = scmp.eq.s32.totalorder %s25, 0
        // Predicated region
        $region37: #{decoder_forward.17} parent=35 // pred_check
          %p301 = pneg %p300
        $region38: #{decoder_forward.17} parent=35 // pred_check_branch
          %303 = sbr.rel (%p301) target = $region40
        $region39: #{decoder_forward.17} parent=35 // pred_region
          %vm304 = vcmask 261120
          %305 = vst.msk [vmem:[#allocation2] sm:$0xff] %vm304, 0.0
        $region40: #{decoder_forward.17} parent=35 // pred_fallthru
          _
        %v306 = vld [vmem:[#allocation2] sm:$0xff]
        %v307 = vld [vmem:[%s280] sm:$0xf]
        %v308 = vld [vmem:[%s288] sm:$0xf]
        %v309 = vld [vmem:[%s288 + $0x4] sm:$0xf]
        %v310 = vld [vmem:[%s288 + $0x8] sm:$0xf]
        %v311 = vld [vmem:[%s288 + $0xc] sm:$0xf]
        %v312 = vld [vmem:[%s288 + $0x10] sm:$0xf]
        %v313 = vld [vmem:[%s288 + $0x14] sm:$0xf]
        %v314 = vld [vmem:[%s288 + $0x18] sm:$0xf]
        %v315 = vld [vmem:[%s288 + $0x1c] sm:$0xf]
        %v316 = vld [vmem:[%s288 + $0x20] sm:$0xf]
        %v317 = vld [vmem:[%s288 + $0x24] sm:$0xf]
        %v318 = vld [vmem:[%s288 + $0x28] sm:$0xf]
        %v319 = vld [vmem:[%s288 + $0x2c] sm:$0xf]
        %v320 = vld [vmem:[%s288 + $0x30] sm:$0xf]
        %v321 = vld [vmem:[%s288 + $0x34] sm:$0xf]
        %v322 = vld [vmem:[%s288 + $0x38] sm:$0xf]
        %v323 = vld [vmem:[%s288 + $0x3c] sm:$0xf]
        %v340 = vunpack.c.l.b16 %v308
        %v341 = vunpack.c.l.b16 %v309
        %v342 = vunpack.c.l.b16 %v310
        %v343 = vunpack.c.l.b16 %v311
        %v344 = vunpack.c.l.b16 %v312
        %v345 = vunpack.c.l.b16 %v313
        %v346 = vunpack.c.l.b16 %v314
        %v347 = vunpack.c.l.b16 %v315
        %v348 = vunpack.c.l.b16 %v316
        %v349 = vunpack.c.l.b16 %v317
        %v350 = vunpack.c.l.b16 %v318
        %v351 = vunpack.c.l.b16 %v319
        %v352 = vunpack.c.l.b16 %v320
        %v353 = vunpack.c.l.b16 %v321
        %v354 = vunpack.c.l.b16 %v322
        %v355 = vunpack.c.l.b16 %v323
        %v356 = vpack.c.b16 %v341, %v340
        %v357 = vpack.c.b16 %v343, %v342
        %v358 = vpack.c.b16 %v345, %v344
        %v359 = vpack.c.b16 %v347, %v346
        %v360 = vpack.c.b16 %v349, %v348
        %v361 = vpack.c.b16 %v351, %v350
        %v362 = vpack.c.b16 %v353, %v352
        %v363 = vpack.c.b16 %v355, %v354
        %372 = vmatpush.bf16.msra.mxu0 %v363
        %373 = vmatpush.bf16.msra.mxu0 %v362
        %374 = vmatpush.bf16.msra.mxu0 %v361
        %375 = vmatpush.bf16.msra.mxu0 %v360
        %376 = vmatpush.bf16.msra.mxu0 %v359
        %377 = vmatpush.bf16.msra.mxu0 %v358
        %378 = vmatpush.bf16.msra.mxu0 %v357
        %379 = vmatpush.bf16.msra.mxu0 %v356
        %380 = vmatmul.bf16.gmra.mxu0 %v307
        %v381 = vpop.f32.mrf.mxu0
        %v382 = vadd.f32 0.0, %v381
        %v383 = vpop.f32.mrf.mxu0
        %384 = vdwg.mxu0
        %v385 = vadd.f32 %v306, %v382
        %vm386 = vcmask 261120
        %387 = vst.msk [vmem:[#allocation2] sm:$0xff] %vm386, %v385
        // Predicated region
        $region41: #{decoder_forward.17} parent=35 // pred_check
          %p388 = pneg %p300
        $region42: #{decoder_forward.17} parent=35 // pred_check_branch
          %390 = sbr.rel (%p388) target = $region44
        $region43: #{decoder_forward.17} parent=35 // pred_region
          %v391 = vld [vmem:[#allocation2] sm:$0xff]
          %v392 = vld [vmem:[%s292] sm:$0x1]
          %v394 = vperm.slane %v392, 0
          %v396 = vadd.f32 %v391, %v394
          %v397 = vld [vmem:[%s299] sm:$0xff]
          %v398 = vadd.f32 %v396, %v397
          %399 = vst.msk [vmem:[%s273] sm:$0xff] %vm386, %v398
        $region44: #{decoder_forward.17} parent=35 // pred_fallthru
          _
        %s400 = sand.u32 %s157, 1
        %s401 = scalar_lea.sflag [#allocation4], %s400
        %s402 = sand.u32 %s157, 1
        %s403 = smul.addr %s402, 8
        %s404 = scalar_lea.vmem [#allocation3], %s403
        // Predicated region
        $region45: #{decoder_forward.17} parent=35 // pred_check
          %p405 = pneg %p167
        $region46: #{decoder_forward.17} parent=35 // pred_check_branch
          %407 = sbr.rel (%p405) target = $region48
        $region47: #{decoder_forward.17} parent=35 // pred_region
          %409 = vsyncadd %s401, 0
          %s410 = sadd.s32 %s24, %s23
          %s411 = smul.addr %s410, 8
          %s412 = scalar_lea.hbm %s4, %s411
          %s414 = sshll.u32 %s404, 4
          %s415 = int_to_ptr.vmem [resolvable:$true] %s414
          %s416 = sshll.u32 %s412, 4
          %s417 = int_to_ptr.hbm [resolvable:$true] %s416
          %419 = dma.vmem_to_hbm [thread:$0]  %s415, 128, %s417, %s401
        $region48: #{decoder_forward.17} parent=35 // pred_fallthru
          _
      $region36: #{decoder_forward.17} parent=5 // pred_fallthru
        _
      %p420 = scmp.le.s32.totalorder 2, %s13
      // Predicated region
      $region49: #{decoder_forward.17} parent=5 // pred_check
        %p421 = pneg %p420
      $region50: #{decoder_forward.17} parent=5 // pred_check_branch
        %423 = sbr.rel (%p421) target = $region52
      $region51: #{decoder_forward.17} parent=5 // pred_region
        %s424 = ssub.s32 %s13, 2
        // Predicated region
        $region53: #{decoder_forward.17} parent=51 // pred_check
          %p425 = pneg %p173
        $region54: #{decoder_forward.17} parent=51 // pred_check_branch
          %427 = sbr.rel (%p425) target = $region56
        $region55: #{decoder_forward.17} parent=51 // pred_region
          %s428 = sand.u32 %s158, 1
          %s429 = scalar_lea.sflag [#allocation4], %s428
          %s430 = sand.u32 %s158, 1
          %s431 = smul.addr %s430, 8
          %s432 = scalar_lea.vmem [#allocation3], %s431
          %434 = dma.done %s429, 128
        $region56: #{decoder_forward.17} parent=51 // pred_fallthru
          _
      $region52: #{decoder_forward.17} parent=5 // pred_fallthru
        _
    $region6: #{decoder_forward.17} parent=1 // loop_footer
      %s17 = sadd.s32 1, %s13
    $region7: #{decoder_forward.17} parent=1 // loop_footer_branch
      %12 = sbr.rel target = $region3
    $region8: #{decoder_forward.17} parent=1 // loop_exit
      _
    %435 = vsyncpa [#allocation4], 1
    %s436 = scalar_lea.sflag [#allocation4], 1
    %437 = vsyncpa %s436, 1

</llo_original>
